<compile_context>
chip_gen: v5e
topology: v5e:2x2
jax: 0.10.0
libtpu: 0.0.40
codegen_flags: <defaults>
</compile_context>

<pallas_src>
import jax
import jax.numpy as jnp
from jax.experimental import pallas as pl
from jax.experimental.pallas import tpu as pltpu


def _vmem_limit_bytes():
    """Generation-aware VMEM request (v7x has only 64 MiB per TensorCore)."""
    try:
        cap = pltpu.get_tpu_info().vmem_capacity_bytes
    except Exception:  # conservative fallback if the query is unavailable
        cap = 64 * 1024 * 1024
    return int(min(cap // 2, 32 * 1024 * 1024))


# ----------------------------------------------------------------------------
# Fused kernel: [pre-InstanceNorm (+ReLU)] -> 3x3 conv -> bias -> per-channel
#               sum / sum-of-squares accumulation (pass 1 of the next IN).
# grid = (N, H // TH); the row-tile axis accumulates stats ("arbitrary").
# ----------------------------------------------------------------------------
def _make_conv_kernel(TH, W, Cin, Cout, inv_hw, pre_norm, pre_relu):
    def kernel(*refs):
        if pre_norm:
            x_ref, pstat_ref, w_ref, b_ref, y_ref, stat_ref = refs
        else:
            x_ref, w_ref, b_ref, y_ref, stat_ref = refs

        t = pl.program_id(1)

        if pre_norm:
            # InstanceNorm (+ReLU) of the previous conv output, applied to the
            # padded halo tile. Pointwise -> commutes with reflection padding.
            st = pstat_ref[...]                              # (2, Cin) f32
            mean = st[0:1, :] * inv_hw                       # (1, Cin)
            var = jnp.maximum(st[1:2, :] * inv_hw - mean * mean, 0.0)
            inv = jax.lax.rsqrt(var + 1e-5)
            xf = (x_ref[...].astype(jnp.float32) - mean[None]) * inv[None]
            if pre_relu:
                xf = jnp.maximum(xf, 0.0)
            x = xf.astype(jnp.bfloat16)                      # bf16 MXU inputs
        else:
            x = x_ref[...]                                   # already bf16

        # 3x3 conv as 9 shifted-slice matmuls (no materialized im2col).
        acc = jnp.zeros((TH * W, Cout), jnp.float32)
        for kh in range(3):
            for kw in range(3):
                xs = x[kh:kh + TH, kw:kw + W, :].reshape(TH * W, Cin)
                acc = acc + jnp.dot(xs, w_ref[kh, kw, :, :],
                                    preferred_element_type=jnp.float32)
        acc = acc + b_ref[...]                               # (1, Cout) broadcast

        y_ref[...] = acc                                     # lane-dense f32 tile

        # Two-pass InstanceNorm, pass 1: accumulate per-channel sum / sumsq.
        @pl.when(t == 0)
        def _():
            stat_ref[...] = jnp.zeros_like(stat_ref)

        s = jnp.sum(acc, axis=0, keepdims=True)
        ss = jnp.sum(acc * acc, axis=0, keepdims=True)
        stat_ref[...] += jnp.concatenate([s, ss], axis=0)    # (2, Cout)

    return kernel


def _conv_in_layer(x_tiles, w, b, prev_stats, *, TH, H, W, Cout,
                   pre_norm, pre_relu, vmem_limit):
    """One fused conv block. x_tiles: (N, HT, TH+2, W+2, Cin) halo row tiles."""
    N, HT, THp, Wp, Cin = x_tiles.shape

    kernel = _make_conv_kernel(TH, W, Cin, Cout, 1.0 / float(H * W),
                               pre_norm, pre_relu)

    in_specs = [pl.BlockSpec((None, None, THp, Wp, Cin),
                             lambda n, t: (n, t, 0, 0, 0))]
    args = [x_tiles]
    if pre_norm:
        in_specs.append(pl.BlockSpec((None, 2, Cin), lambda n, t: (n, 0, 0)))
        args.append(prev_stats)
    in_specs += [
        pl.BlockSpec((3, 3, Cin, Cout), lambda n, t: (0, 0, 0, 0)),   # weights
        pl.BlockSpec((1, Cout), lambda n, t: (0, 0)),                 # bias
    ]
    args += [w, b]

    out_shape = (jax.ShapeDtypeStruct((N, H * W, Cout), jnp.float32),
                 jax.ShapeDtypeStruct((N, 2, Cout), jnp.float32))
    out_specs = (pl.BlockSpec((None, TH * W, Cout), lambda n, t: (n, t, 0)),
                 pl.BlockSpec((None, 2, Cout), lambda n, t: (n, 0, 0)))

    y, stats = pl.pallas_call(
        kernel,
        out_shape=out_shape,
        grid=(N, HT),
        in_specs=in_specs,
        out_specs=out_specs,
        compiler_params=pltpu.CompilerParams(
            dimension_semantics=("parallel", "arbitrary"),
            vmem_limit_bytes=vmem_limit),
    )(*args)
    return y, stats


# ----------------------------------------------------------------------------
# Final kernel: InstanceNorm of the second conv output + residual add.
# ----------------------------------------------------------------------------
def _make_norm_residual_kernel(inv_hw):
    def kernel(y_ref, stat_ref, res_ref, o_ref):
        st = stat_ref[...]                                   # (2, C) f32
        mean = st[0:1, :] * inv_hw
        var = jnp.maximum(st[1:2, :] * inv_hw - mean * mean, 0.0)
        inv = jax.lax.rsqrt(var + 1e-5)
        o_ref[...] = res_ref[...] + (y_ref[...] - mean) * inv
    return kernel


def _norm_residual(y, stats, res_flat, *, TH, W, HW, vmem_limit):
    N, P, C = y.shape
    HT = P // (TH * W)
    return pl.pallas_call(
        _make_norm_residual_kernel(1.0 / float(HW)),
        out_shape=jax.ShapeDtypeStruct((N, P, C), jnp.float32),
        grid=(N, HT),
        in_specs=[
            pl.BlockSpec((None, TH * W, C), lambda n, t: (n, t, 0)),
            pl.BlockSpec((None, 2, C), lambda n, t: (n, 0, 0)),
            pl.BlockSpec((None, TH * W, C), lambda n, t: (n, t, 0)),
        ],
        out_specs=pl.BlockSpec((None, TH * W, C), lambda n, t: (n, t, 0)),
        compiler_params=pltpu.CompilerParams(
            dimension_semantics=("parallel", "parallel"),
            vmem_limit_bytes=vmem_limit),
    )(y, stats, res_flat)


# ----------------------------------------------------------------------------
# Glue: reflection pad + overlapping row tiles (1-row halo each side).
# ----------------------------------------------------------------------------
def _reflect_pad(x):
    return jnp.pad(x, ((0, 0), (1, 1), (1, 1), (0, 0)), mode="reflect")


def _halo_tiles(x_pad, TH):
    N, Hp, Wp, C = x_pad.shape
    H = Hp - 2
    HT = H // TH
    tiles = [x_pad[:, i * TH:i * TH + TH + 2] for i in range(HT)]
    return jnp.stack(tiles, axis=1)                          # (N, HT, TH+2, Wp, C)


# ----------------------------------------------------------------------------
# ResidualBlock forward (accepts NCHW like PyTorch, returns NCHW).
# ----------------------------------------------------------------------------
@jax.jit
def residual_block_forward(x_nchw, params):
    x = jnp.transpose(x_nchw, (0, 2, 3, 1)).astype(jnp.float32)   # NHWC
    N, H, W, C = x.shape
    TH = 8 if H % 8 == 0 else H
    assert H % TH == 0 and (TH * W) % 8 == 0
    vmem_limit = _vmem_limit_bytes()

    w1 = params["w1"].astype(jnp.bfloat16)
    w2 = params["w2"].astype(jnp.bfloat16)
    b1 = params["b1"].reshape(1, C).astype(jnp.float32)
    b2 = params["b2"].reshape(1, C).astype(jnp.float32)

    # conv1 (+ IN1 stats) on the reflection-padded input.
    x1_tiles = _halo_tiles(_reflect_pad(x).astype(jnp.bfloat16), TH)
    y1, st1 = _conv_in_layer(x1_tiles, w1, b1, None, TH=TH, H=H, W=W, Cout=C,
                             pre_norm=False, pre_relu=False,
                             vmem_limit=vmem_limit)

    # IN1 + ReLU fused into the conv2 kernel (+ IN2 stats).  IN/ReLU are
    # pointwise, hence commute with the reflection padding done in glue.
    y1_tiles = _halo_tiles(_reflect_pad(y1.reshape(N, H, W, C)), TH)
    y2, st2 = _conv_in_layer(y1_tiles, w2, b2, st1, TH=TH, H=H, W=W, Cout=C,
                             pre_norm=True, pre_relu=True,
                             vmem_limit=vmem_limit)

    # IN2 + residual add.
    out_flat = _norm_residual(y2, st2, x.reshape(N, H * W, C),
                              TH=TH, W=W, HW=H * W, vmem_limit=vmem_limit)
    out = out_flat.reshape(N, H, W, C)
    return jnp.transpose(out, (0, 3, 1, 2))                      # back to NCHW


# ----------------------------------------------------------------------------
# Pure-JAX f32 reference (matches the PyTorch module semantics).
# ----------------------------------------------------------------------------
def _reference_forward(x_nchw, params):
    x = jnp.transpose(x_nchw, (0, 2, 3, 1)).astype(jnp.float32)

    def conv(h, w, b):
        out = jax.lax.conv_general_dilated(
            h, w.astype(jnp.float32), window_strides=(1, 1), padding="VALID",
            dimension_numbers=("NHWC", "HWIO", "NHWC"),
            precision=jax.lax.Precision.HIGHEST)
        return out + b.reshape(1, 1, 1, -1)

    def inorm(h):
        mu = jnp.mean(h, axis=(1, 2), keepdims=True)
        var = jnp.mean((h - mu) ** 2, axis=(1, 2), keepdims=True)
        return (h - mu) * jax.lax.rsqrt(var + 1e-5)

    h = jax.nn.relu(inorm(conv(_reflect_pad(x), params["w1"], params["b1"])))
    h = inorm(conv(_reflect_pad(h), params["w2"], params["b2"]))
    return jnp.transpose(x + h, (0, 3, 1, 2))


if __name__ == "__main__":
    key = jax.random.PRNGKey(0)
    k1, k2, k3, k4, kx = jax.random.split(key, 5)

    # Small but TPU-friendly shapes: C=128 keeps every store lane-dense.
    N, C, H, W = 2, 128, 16, 16
    params = {
        "w1": 0.05 * jax.random.normal(k1, (3, 3, C, C), jnp.float32),  # HWIO
        "b1": 0.05 * jax.random.normal(k2, (C,), jnp.float32),
        "w2": 0.05 * jax.random.normal(k3, (3, 3, C, C), jnp.float32),
        "b2": 0.05 * jax.random.normal(k4, (C,), jnp.float32),
    }
    x = jax.random.normal(kx, (N, C, H, W), jnp.float32)  # NCHW like PyTorch

    out = jax.block_until_ready(residual_block_forward(x, params))
    assert out.shape == (N, C, H, W), out.shape
    assert bool(jnp.all(jnp.isfinite(out)))

    ref = _reference_forward(x, params)
    max_err = float(jnp.max(jnp.abs(out - ref)))
    assert max_err < 1e-1, f"max |err| vs reference = {max_err}"

    print("KERNEL_OK")
</pallas_src>

<mosaic_0001>
module attributes {stable_mosaic.version = 11 : i64} {
  func.func @kernel(%arg0: i32, %arg1: i32, %arg2: memref<1x1x10x18x128xbf16, #tpu.memory_space<vmem>>, %arg3: memref<3x3x128x128xbf16, #tpu.memory_space<vmem>>, %arg4: memref<1x128xf32, #tpu.memory_space<vmem>>, %arg5: memref<1x128x128xf32, #tpu.memory_space<vmem>>, %arg6: memref<1x2x128xf32, #tpu.memory_space<vmem>>) attributes {dimension_semantics = [#tpu.dimension_semantics<parallel>, #tpu.dimension_semantics<arbitrary>], iteration_bounds = array<i64: 2, 2>, scalar_prefetch = 0 : i64, scratch_operands = 0 : i64, tpu.core_type = #tpu.core_type<tc>, window_params = [{transform_indices = @transform_0, window_bounds = array<i64: 1, 1, 10, 18, 128>}, {pipeline_mode = #tpu.pipeline_mode<synchronous>, transform_indices = @transform_1, window_bounds = array<i64: 3, 3, 128, 128>}, {pipeline_mode = #tpu.pipeline_mode<synchronous>, transform_indices = @transform_2, window_bounds = array<i64: 1, 128>}, {transform_indices = @transform_3, window_bounds = array<i64: 1, 128, 128>}, {transform_indices = @transform_4, window_bounds = array<i64: 1, 2, 128>}]} {
    %c0 = arith.constant 0 : index
    %c0_0 = arith.constant 0 : index
    %c0_1 = arith.constant 0 : index
    %c0_2 = arith.constant 0 : index
    %c0_3 = arith.constant 0 : index
    %0 = vector.load %arg2[%c0, %c0_0, %c0_1, %c0_2, %c0_3] : memref<1x1x10x18x128xbf16, #tpu.memory_space<vmem>>, vector<1x1x10x18x128xbf16>
    %1 = vector.shape_cast %0 : vector<1x1x10x18x128xbf16> to vector<10x18x128xbf16>
    %cst = arith.constant 0.000000e+00 : f32
    %2 = vector.broadcast %cst : f32 to vector<128x128xf32>
    %3 = vector.extract_strided_slice %1 {offsets = [0, 0, 0], sizes = [8, 16, 128], strides = [1, 1, 1]} : vector<10x18x128xbf16> to vector<8x16x128xbf16>
    %4 = vector.shape_cast %3 : vector<8x16x128xbf16> to vector<128x128xbf16>
    %c0_4 = arith.constant 0 : index
    %c0_5 = arith.constant 0 : index
    %c0_6 = arith.constant 0 : index
    %c0_7 = arith.constant 0 : index
    %5 = vector.load %arg3[%c0_4, %c0_5, %c0_6, %c0_7] : memref<3x3x128x128xbf16, #tpu.memory_space<vmem>>, vector<1x1x128x128xbf16>
    %6 = vector.shape_cast %5 : vector<1x1x128x128xbf16> to vector<128x128xbf16>
    %cst_8 = arith.constant dense<0.000000e+00> : vector<128x128xf32>
    %7 = tpu.matmul %4, %6, %cst_8 {dimension_numbers = #tpu.dot_dimension_numbers<[1], [0], [0], [1], [0, 0, 1, 1], [], []>} : vector<128x128xbf16>, vector<128x128xbf16>, vector<128x128xf32> -> vector<128x128xf32>
    %8 = arith.addf %2, %7 : vector<128x128xf32>
    %9 = vector.extract_strided_slice %1 {offsets = [0, 1, 0], sizes = [8, 16, 128], strides = [1, 1, 1]} : vector<10x18x128xbf16> to vector<8x16x128xbf16>
    %10 = vector.shape_cast %9 : vector<8x16x128xbf16> to vector<128x128xbf16>
    %c0_9 = arith.constant 0 : index
    %c1 = arith.constant 1 : index
    %c0_10 = arith.constant 0 : index
    %c0_11 = arith.constant 0 : index
    %11 = vector.load %arg3[%c0_9, %c1, %c0_10, %c0_11] : memref<3x3x128x128xbf16, #tpu.memory_space<vmem>>, vector<1x1x128x128xbf16>
    %12 = vector.shape_cast %11 : vector<1x1x128x128xbf16> to vector<128x128xbf16>
    %cst_12 = arith.constant dense<0.000000e+00> : vector<128x128xf32>
    %13 = tpu.matmul %10, %12, %cst_12 {dimension_numbers = #tpu.dot_dimension_numbers<[1], [0], [0], [1], [0, 0, 1, 1], [], []>} : vector<128x128xbf16>, vector<128x128xbf16>, vector<128x128xf32> -> vector<128x128xf32>
    %14 = arith.addf %8, %13 : vector<128x128xf32>
    %15 = vector.extract_strided_slice %1 {offsets = [0, 2, 0], sizes = [8, 16, 128], strides = [1, 1, 1]} : vector<10x18x128xbf16> to vector<8x16x128xbf16>
    %16 = vector.shape_cast %15 : vector<8x16x128xbf16> to vector<128x128xbf16>
    %c0_13 = arith.constant 0 : index
    %c2 = arith.constant 2 : index
    %c0_14 = arith.constant 0 : index
    %c0_15 = arith.constant 0 : index
    %17 = vector.load %arg3[%c0_13, %c2, %c0_14, %c0_15] : memref<3x3x128x128xbf16, #tpu.memory_space<vmem>>, vector<1x1x128x128xbf16>
    %18 = vector.shape_cast %17 : vector<1x1x128x128xbf16> to vector<128x128xbf16>
    %cst_16 = arith.constant dense<0.000000e+00> : vector<128x128xf32>
    %19 = tpu.matmul %16, %18, %cst_16 {dimension_numbers = #tpu.dot_dimension_numbers<[1], [0], [0], [1], [0, 0, 1, 1], [], []>} : vector<128x128xbf16>, vector<128x128xbf16>, vector<128x128xf32> -> vector<128x128xf32>
    %20 = arith.addf %14, %19 : vector<128x128xf32>
    %21 = vector.extract_strided_slice %1 {offsets = [1, 0, 0], sizes = [8, 16, 128], strides = [1, 1, 1]} : vector<10x18x128xbf16> to vector<8x16x128xbf16>
    %22 = vector.shape_cast %21 : vector<8x16x128xbf16> to vector<128x128xbf16>
    %c1_17 = arith.constant 1 : index
    %c0_18 = arith.constant 0 : index
    %c0_19 = arith.constant 0 : index
    %c0_20 = arith.constant 0 : index
    %23 = vector.load %arg3[%c1_17, %c0_18, %c0_19, %c0_20] : memref<3x3x128x128xbf16, #tpu.memory_space<vmem>>, vector<1x1x128x128xbf16>
    %24 = vector.shape_cast %23 : vector<1x1x128x128xbf16> to vector<128x128xbf16>
    %cst_21 = arith.constant dense<0.000000e+00> : vector<128x128xf32>
    %25 = tpu.matmul %22, %24, %cst_21 {dimension_numbers = #tpu.dot_dimension_numbers<[1], [0], [0], [1], [0, 0, 1, 1], [], []>} : vector<128x128xbf16>, vector<128x128xbf16>, vector<128x128xf32> -> vector<128x128xf32>
    %26 = arith.addf %20, %25 : vector<128x128xf32>
    %27 = vector.extract_strided_slice %1 {offsets = [1, 1, 0], sizes = [8, 16, 128], strides = [1, 1, 1]} : vector<10x18x128xbf16> to vector<8x16x128xbf16>
    %28 = vector.shape_cast %27 : vector<8x16x128xbf16> to vector<128x128xbf16>
    %c1_22 = arith.constant 1 : index
    %c1_23 = arith.constant 1 : index
    %c0_24 = arith.constant 0 : index
    %c0_25 = arith.constant 0 : index
    %29 = vector.load %arg3[%c1_22, %c1_23, %c0_24, %c0_25] : memref<3x3x128x128xbf16, #tpu.memory_space<vmem>>, vector<1x1x128x128xbf16>
    %30 = vector.shape_cast %29 : vector<1x1x128x128xbf16> to vector<128x128xbf16>
    %cst_26 = arith.constant dense<0.000000e+00> : vector<128x128xf32>
    %31 = tpu.matmul %28, %30, %cst_26 {dimension_numbers = #tpu.dot_dimension_numbers<[1], [0], [0], [1], [0, 0, 1, 1], [], []>} : vector<128x128xbf16>, vector<128x128xbf16>, vector<128x128xf32> -> vector<128x128xf32>
    %32 = arith.addf %26, %31 : vector<128x128xf32>
    %33 = vector.extract_strided_slice %1 {offsets = [1, 2, 0], sizes = [8, 16, 128], strides = [1, 1, 1]} : vector<10x18x128xbf16> to vector<8x16x128xbf16>
    %34 = vector.shape_cast %33 : vector<8x16x128xbf16> to vector<128x128xbf16>
    %c1_27 = arith.constant 1 : index
    %c2_28 = arith.constant 2 : index
    %c0_29 = arith.constant 0 : index
    %c0_30 = arith.constant 0 : index
    %35 = vector.load %arg3[%c1_27, %c2_28, %c0_29, %c0_30] : memref<3x3x128x128xbf16, #tpu.memory_space<vmem>>, vector<1x1x128x128xbf16>
    %36 = vector.shape_cast %35 : vector<1x1x128x128xbf16> to vector<128x128xbf16>
    %cst_31 = arith.constant dense<0.000000e+00> : vector<128x128xf32>
    %37 = tpu.matmul %34, %36, %cst_31 {dimension_numbers = #tpu.dot_dimension_numbers<[1], [0], [0], [1], [0, 0, 1, 1], [], []>} : vector<128x128xbf16>, vector<128x128xbf16>, vector<128x128xf32> -> vector<128x128xf32>
    %38 = arith.addf %32, %37 : vector<128x128xf32>
    %39 = vector.extract_strided_slice %1 {offsets = [2, 0, 0], sizes = [8, 16, 128], strides = [1, 1, 1]} : vector<10x18x128xbf16> to vector<8x16x128xbf16>
    %40 = vector.shape_cast %39 : vector<8x16x128xbf16> to vector<128x128xbf16>
    %c2_32 = arith.constant 2 : index
    %c0_33 = arith.constant 0 : index
    %c0_34 = arith.constant 0 : index
    %c0_35 = arith.constant 0 : index
    %41 = vector.load %arg3[%c2_32, %c0_33, %c0_34, %c0_35] : memref<3x3x128x128xbf16, #tpu.memory_space<vmem>>, vector<1x1x128x128xbf16>
    %42 = vector.shape_cast %41 : vector<1x1x128x128xbf16> to vector<128x128xbf16>
    %cst_36 = arith.constant dense<0.000000e+00> : vector<128x128xf32>
    %43 = tpu.matmul %40, %42, %cst_36 {dimension_numbers = #tpu.dot_dimension_numbers<[1], [0], [0], [1], [0, 0, 1, 1], [], []>} : vector<128x128xbf16>, vector<128x128xbf16>, vector<128x128xf32> -> vector<128x128xf32>
    %44 = arith.addf %38, %43 : vector<128x128xf32>
    %45 = vector.extract_strided_slice %1 {offsets = [2, 1, 0], sizes = [8, 16, 128], strides = [1, 1, 1]} : vector<10x18x128xbf16> to vector<8x16x128xbf16>
    %46 = vector.shape_cast %45 : vector<8x16x128xbf16> to vector<128x128xbf16>
    %c2_37 = arith.constant 2 : index
    %c1_38 = arith.constant 1 : index
    %c0_39 = arith.constant 0 : index
    %c0_40 = arith.constant 0 : index
    %47 = vector.load %arg3[%c2_37, %c1_38, %c0_39, %c0_40] : memref<3x3x128x128xbf16, #tpu.memory_space<vmem>>, vector<1x1x128x128xbf16>
    %48 = vector.shape_cast %47 : vector<1x1x128x128xbf16> to vector<128x128xbf16>
    %cst_41 = arith.constant dense<0.000000e+00> : vector<128x128xf32>
    %49 = tpu.matmul %46, %48, %cst_41 {dimension_numbers = #tpu.dot_dimension_numbers<[1], [0], [0], [1], [0, 0, 1, 1], [], []>} : vector<128x128xbf16>, vector<128x128xbf16>, vector<128x128xf32> -> vector<128x128xf32>
    %50 = arith.addf %44, %49 : vector<128x128xf32>
    %51 = vector.extract_strided_slice %1 {offsets = [2, 2, 0], sizes = [8, 16, 128], strides = [1, 1, 1]} : vector<10x18x128xbf16> to vector<8x16x128xbf16>
    %52 = vector.shape_cast %51 : vector<8x16x128xbf16> to vector<128x128xbf16>
    %c2_42 = arith.constant 2 : index
    %c2_43 = arith.constant 2 : index
    %c0_44 = arith.constant 0 : index
    %c0_45 = arith.constant 0 : index
    %53 = vector.load %arg3[%c2_42, %c2_43, %c0_44, %c0_45] : memref<3x3x128x128xbf16, #tpu.memory_space<vmem>>, vector<1x1x128x128xbf16>
    %54 = vector.shape_cast %53 : vector<1x1x128x128xbf16> to vector<128x128xbf16>
    %cst_46 = arith.constant dense<0.000000e+00> : vector<128x128xf32>
    %55 = tpu.matmul %52, %54, %cst_46 {dimension_numbers = #tpu.dot_dimension_numbers<[1], [0], [0], [1], [0, 0, 1, 1], [], []>} : vector<128x128xbf16>, vector<128x128xbf16>, vector<128x128xf32> -> vector<128x128xf32>
    %56 = arith.addf %50, %55 : vector<128x128xf32>
    %c0_47 = arith.constant 0 : index
    %c0_48 = arith.constant 0 : index
    %57 = vector.load %arg4[%c0_47, %c0_48] : memref<1x128xf32, #tpu.memory_space<vmem>>, vector<1x128xf32>
    %58 = vector.broadcast %57 : vector<1x128xf32> to vector<128x128xf32>
    %59 = arith.addf %56, %58 : vector<128x128xf32>
    %c0_49 = arith.constant 0 : index
    %c0_50 = arith.constant 0 : index
    %c0_51 = arith.constant 0 : index
    %60 = vector.load %arg5[%c0_49, %c0_50, %c0_51] : memref<1x128x128xf32, #tpu.memory_space<vmem>>, vector<1x128x128xf32>
    %61 = vector.shape_cast %60 : vector<1x128x128xf32> to vector<128x128xf32>
    %62 = vector.shape_cast %59 : vector<128x128xf32> to vector<1x128x128xf32>
    tpu.vector_store %arg5[%c0_49, %c0_50, %c0_51], %62 {strides = array<i32>} : memref<1x128x128xf32, #tpu.memory_space<vmem>>, vector<1x128x128xf32>,
    %c0_i32 = arith.constant 0 : i32
    %63 = arith.cmpi eq, %arg1, %c0_i32 : i32
    %64 = arith.extui %63 : i1 to i32
    %c0_i32_52 = arith.constant 0 : i32
    %65 = arith.cmpi ne, %64, %c0_i32_52 : i32
    scf.if %65 {
      %cst_61 = arith.constant 0.000000e+00 : f32
      %78 = vector.broadcast %cst_61 : f32 to vector<2x128xf32>
      %c0_62 = arith.constant 0 : index
      %c0_63 = arith.constant 0 : index
      %c0_64 = arith.constant 0 : index
      %79 = vector.load %arg6[%c0_62, %c0_63, %c0_64] : memref<1x2x128xf32, #tpu.memory_space<vmem>>, vector<1x2x128xf32>
      %80 = vector.shape_cast %79 : vector<1x2x128xf32> to vector<2x128xf32>
      %81 = vector.shape_cast %78 : vector<2x128xf32> to vector<1x2x128xf32>
      tpu.vector_store %arg6[%c0_62, %c0_63, %c0_64], %81 {strides = array<i32>} : memref<1x2x128xf32, #tpu.memory_space<vmem>>, vector<1x2x128xf32>,
    } else {
    }
    %cst_53 = arith.constant dense<0.000000e+00> : vector<128xf32>
    %66 = vector.multi_reduction <add>, %59, %cst_53 [0] : vector<128x128xf32> to vector<128xf32>
    %67 = vector.shape_cast %66 : vector<128xf32> to vector<1x128xf32>
    %68 = arith.mulf %59, %59 : vector<128x128xf32>
    %cst_54 = arith.constant dense<0.000000e+00> : vector<128xf32>
    %69 = vector.multi_reduction <add>, %68, %cst_54 [0] : vector<128x128xf32> to vector<128xf32>
    %70 = vector.shape_cast %69 : vector<128xf32> to vector<1x128xf32>
    %c0_55 = arith.constant 0 : index
    %c0_56 = arith.constant 0 : index
    %c0_57 = arith.constant 0 : index
    %71 = vector.load %arg6[%c0_55, %c0_56, %c0_57] : memref<1x2x128xf32, #tpu.memory_space<vmem>>, vector<1x2x128xf32>
    %72 = vector.shape_cast %71 : vector<1x2x128xf32> to vector<2x128xf32>
    %73 = tpu.concatenate %67, %70 in 0 : vector<1x128xf32>, vector<1x128xf32> -> vector<2x128xf32>
    %74 = arith.addf %72, %73 : vector<2x128xf32>
    %c0_58 = arith.constant 0 : index
    %c0_59 = arith.constant 0 : index
    %c0_60 = arith.constant 0 : index
    %75 = vector.load %arg6[%c0_58, %c0_59, %c0_60] : memref<1x2x128xf32, #tpu.memory_space<vmem>>, vector<1x2x128xf32>
    %76 = vector.shape_cast %75 : vector<1x2x128xf32> to vector<2x128xf32>
    %77 = vector.shape_cast %74 : vector<2x128xf32> to vector<1x2x128xf32>
    tpu.vector_store %arg6[%c0_58, %c0_59, %c0_60], %77 {strides = array<i32>} : memref<1x2x128xf32, #tpu.memory_space<vmem>>, vector<1x2x128xf32>,
    return
  }
  func.func @transform_0(%arg0: i32, %arg1: i32) -> (i32, i32, i32, i32, i32) {
    %c0_i32 = arith.constant 0 : i32
    %c0_i32_0 = arith.constant 0 : i32
    %c0_i32_1 = arith.constant 0 : i32
    %c0_i32_2 = arith.constant 0 : i32
    return %arg0, %arg1, %c0_i32, %c0_i32_0, %c0_i32_1 : i32, i32, i32, i32, i32
  }
  func.func @transform_1(%arg0: i32, %arg1: i32) -> (i32, i32, i32, i32) {
    %c0_i32 = arith.constant 0 : i32
    %c0_i32_0 = arith.constant 0 : i32
    %c0_i32_1 = arith.constant 0 : i32
    %c0_i32_2 = arith.constant 0 : i32
    %c0_i32_3 = arith.constant 0 : i32
    return %c0_i32, %c0_i32_0, %c0_i32_1, %c0_i32_2 : i32, i32, i32, i32
  }
  func.func @transform_2(%arg0: i32, %arg1: i32) -> (i32, i32) {
    %c0_i32 = arith.constant 0 : i32
    %c0_i32_0 = arith.constant 0 : i32
    %c0_i32_1 = arith.constant 0 : i32
    return %c0_i32, %c0_i32_0 : i32, i32
  }
  func.func @transform_3(%arg0: i32, %arg1: i32) -> (i32, i32, i32) {
    %c0_i32 = arith.constant 0 : i32
    %c0_i32_0 = arith.constant 0 : i32
    return %arg0, %arg1, %c0_i32 : i32, i32, i32
  }
  func.func @transform_4(%arg0: i32, %arg1: i32) -> (i32, i32, i32) {
    %c0_i32 = arith.constant 0 : i32
    %c0_i32_0 = arith.constant 0 : i32
    %c0_i32_1 = arith.constant 0 : i32
    return %arg0, %c0_i32, %c0_i32_0 : i32, i32, i32
  }
}

module attributes {stable_mosaic.version = 11 : i64} {
  func.func @kernel(%arg0: i32, %arg1: i32, %arg2: memref<1x128x128xf32, #tpu.memory_space<vmem>>, %arg3: memref<1x2x128xf32, #tpu.memory_space<vmem>>, %arg4: memref<1x128x128xf32, #tpu.memory_space<vmem>>, %arg5: memref<1x128x128xf32, #tpu.memory_space<vmem>>) attributes {dimension_semantics = [#tpu.dimension_semantics<parallel>, #tpu.dimension_semantics<parallel>], iteration_bounds = array<i64: 2, 2>, scalar_prefetch = 0 : i64, scratch_operands = 0 : i64, tpu.core_type = #tpu.core_type<tc>, window_params = [{transform_indices = @transform_0, window_bounds = array<i64: 1, 128, 128>}, {transform_indices = @transform_1, window_bounds = array<i64: 1, 2, 128>}, {transform_indices = @transform_2, window_bounds = array<i64: 1, 128, 128>}, {transform_indices = @transform_3, window_bounds = array<i64: 1, 128, 128>}]} {
    %c0 = arith.constant 0 : index
    %c0_0 = arith.constant 0 : index
    %c0_1 = arith.constant 0 : index
    %0 = vector.load %arg3[%c0, %c0_0, %c0_1] : memref<1x2x128xf32, #tpu.memory_space<vmem>>, vector<1x2x128xf32>
    %1 = vector.shape_cast %0 : vector<1x2x128xf32> to vector<2x128xf32>
    %2 = vector.extract_strided_slice %1 {offsets = [0, 0], sizes = [1, 128], strides = [1, 1]} : vector<2x128xf32> to vector<1x128xf32>
    %cst = arith.constant 3.906250e-03 : f32
    %3 = vector.broadcast %cst : f32 to vector<1x128xf32>
    %4 = arith.mulf %2, %3 : vector<1x128xf32>
    %5 = vector.extract_strided_slice %1 {offsets = [1, 0], sizes = [1, 128], strides = [1, 1]} : vector<2x128xf32> to vector<1x128xf32>
    %cst_2 = arith.constant 3.906250e-03 : f32
    %6 = vector.broadcast %cst_2 : f32 to vector<1x128xf32>
    %7 = arith.mulf %5, %6 : vector<1x128xf32>
    %8 = arith.mulf %4, %4 : vector<1x128xf32>
    %9 = arith.subf %7, %8 : vector<1x128xf32>
    %cst_3 = arith.constant 0.000000e+00 : f32
    %10 = vector.broadcast %cst_3 : f32 to vector<1x128xf32>
    %11 = arith.maximumf %9, %10 : vector<1x128xf32>
    %cst_4 = arith.constant 9.99999974E-6 : f32
    %12 = vector.broadcast %cst_4 : f32 to vector<1x128xf32>
    %13 = arith.addf %11, %12 : vector<1x128xf32>
    %14 = math.rsqrt %13 : vector<1x128xf32>
    %c0_5 = arith.constant 0 : index
    %c0_6 = arith.constant 0 : index
    %c0_7 = arith.constant 0 : index
    %15 = vector.load %arg4[%c0_5, %c0_6, %c0_7] : memref<1x128x128xf32, #tpu.memory_space<vmem>>, vector<1x128x128xf32>
    %16 = vector.shape_cast %15 : vector<1x128x128xf32> to vector<128x128xf32>
    %c0_8 = arith.constant 0 : index
    %c0_9 = arith.constant 0 : index
    %c0_10 = arith.constant 0 : index
    %17 = vector.load %arg2[%c0_8, %c0_9, %c0_10] : memref<1x128x128xf32, #tpu.memory_space<vmem>>, vector<1x128x128xf32>
    %18 = vector.shape_cast %17 : vector<1x128x128xf32> to vector<128x128xf32>
    %19 = vector.broadcast %4 : vector<1x128xf32> to vector<128x128xf32>
    %20 = arith.subf %18, %19 : vector<128x128xf32>
    %21 = vector.broadcast %14 : vector<1x128xf32> to vector<128x128xf32>
    %22 = arith.mulf %20, %21 : vector<128x128xf32>
    %23 = arith.addf %16, %22 : vector<128x128xf32>
    %c0_11 = arith.constant 0 : index
    %c0_12 = arith.constant 0 : index
    %c0_13 = arith.constant 0 : index
    %24 = vector.load %arg5[%c0_11, %c0_12, %c0_13] : memref<1x128x128xf32, #tpu.memory_space<vmem>>, vector<1x128x128xf32>
    %25 = vector.shape_cast %24 : vector<1x128x128xf32> to vector<128x128xf32>
    %26 = vector.shape_cast %23 : vector<128x128xf32> to vector<1x128x128xf32>
    tpu.vector_store %arg5[%c0_11, %c0_12, %c0_13], %26 {strides = array<i32>} : memref<1x128x128xf32, #tpu.memory_space<vmem>>, vector<1x128x128xf32>,
    return
  }
  func.func @transform_0(%arg0: i32, %arg1: i32) -> (i32, i32, i32) {
    %c0_i32 = arith.constant 0 : i32
    %c0_i32_0 = arith.constant 0 : i32
    return %arg0, %arg1, %c0_i32 : i32, i32, i32
  }
  func.func @transform_1(%arg0: i32, %arg1: i32) -> (i32, i32, i32) {
    %c0_i32 = arith.constant 0 : i32
    %c0_i32_0 = arith.constant 0 : i32
    %c0_i32_1 = arith.constant 0 : i32
    return %arg0, %c0_i32, %c0_i32_0 : i32, i32, i32
  }
  func.func @transform_2(%arg0: i32, %arg1: i32) -> (i32, i32, i32) {
    %c0_i32 = arith.constant 0 : i32
    %c0_i32_0 = arith.constant 0 : i32
    return %arg0, %arg1, %c0_i32 : i32, i32, i32
  }
  func.func @transform_3(%arg0: i32, %arg1: i32) -> (i32, i32, i32) {
    %c0_i32 = arith.constant 0 : i32
    %c0_i32_0 = arith.constant 0 : i32
    return %arg0, %arg1, %c0_i32 : i32, i32, i32
  }
}

module attributes {stable_mosaic.version = 11 : i64} {
  func.func @kernel(%arg0: i32, %arg1: i32, %arg2: memref<1x1x10x18x128xf32, #tpu.memory_space<vmem>>, %arg3: memref<1x2x128xf32, #tpu.memory_space<vmem>>, %arg4: memref<3x3x128x128xbf16, #tpu.memory_space<vmem>>, %arg5: memref<1x128xf32, #tpu.memory_space<vmem>>, %arg6: memref<1x128x128xf32, #tpu.memory_space<vmem>>, %arg7: memref<1x2x128xf32, #tpu.memory_space<vmem>>) attributes {dimension_semantics = [#tpu.dimension_semantics<parallel>, #tpu.dimension_semantics<arbitrary>], iteration_bounds = array<i64: 2, 2>, scalar_prefetch = 0 : i64, scratch_operands = 0 : i64, tpu.core_type = #tpu.core_type<tc>, window_params = [{transform_indices = @transform_0, window_bounds = array<i64: 1, 1, 10, 18, 128>}, {transform_indices = @transform_1, window_bounds = array<i64: 1, 2, 128>}, {pipeline_mode = #tpu.pipeline_mode<synchronous>, transform_indices = @transform_2, window_bounds = array<i64: 3, 3, 128, 128>}, {pipeline_mode = #tpu.pipeline_mode<synchronous>, transform_indices = @transform_3, window_bounds = array<i64: 1, 128>}, {transform_indices = @transform_4, window_bounds = array<i64: 1, 128, 128>}, {transform_indices = @transform_5, window_bounds = array<i64: 1, 2, 128>}]} {
    %c0 = arith.constant 0 : index
    %c0_0 = arith.constant 0 : index
    %c0_1 = arith.constant 0 : index
    %0 = vector.load %arg3[%c0, %c0_0, %c0_1] : memref<1x2x128xf32, #tpu.memory_space<vmem>>, vector<1x2x128xf32>
    %1 = vector.shape_cast %0 : vector<1x2x128xf32> to vector<2x128xf32>
    %2 = vector.extract_strided_slice %1 {offsets = [0, 0], sizes = [1, 128], strides = [1, 1]} : vector<2x128xf32> to vector<1x128xf32>
    %cst = arith.constant 3.906250e-03 : f32
    %3 = vector.broadcast %cst : f32 to vector<1x128xf32>
    %4 = arith.mulf %2, %3 : vector<1x128xf32>
    %5 = vector.extract_strided_slice %1 {offsets = [1, 0], sizes = [1, 128], strides = [1, 1]} : vector<2x128xf32> to vector<1x128xf32>
    %cst_2 = arith.constant 3.906250e-03 : f32
    %6 = vector.broadcast %cst_2 : f32 to vector<1x128xf32>
    %7 = arith.mulf %5, %6 : vector<1x128xf32>
    %8 = arith.mulf %4, %4 : vector<1x128xf32>
    %9 = arith.subf %7, %8 : vector<1x128xf32>
    %cst_3 = arith.constant 0.000000e+00 : f32
    %10 = vector.broadcast %cst_3 : f32 to vector<1x128xf32>
    %11 = arith.maximumf %9, %10 : vector<1x128xf32>
    %cst_4 = arith.constant 9.99999974E-6 : f32
    %12 = vector.broadcast %cst_4 : f32 to vector<1x128xf32>
    %13 = arith.addf %11, %12 : vector<1x128xf32>
    %14 = math.rsqrt %13 : vector<1x128xf32>
    %c0_5 = arith.constant 0 : index
    %c0_6 = arith.constant 0 : index
    %c0_7 = arith.constant 0 : index
    %c0_8 = arith.constant 0 : index
    %c0_9 = arith.constant 0 : index
    %15 = vector.load %arg2[%c0_5, %c0_6, %c0_7, %c0_8, %c0_9] : memref<1x1x10x18x128xf32, #tpu.memory_space<vmem>>, vector<1x1x10x18x128xf32>
    %16 = vector.shape_cast %15 : vector<1x1x10x18x128xf32> to vector<10x18x128xf32>
    %17 = vector.shape_cast %4 : vector<1x128xf32> to vector<1x1x128xf32>
    %18 = vector.broadcast %17 : vector<1x1x128xf32> to vector<10x18x128xf32>
    %19 = arith.subf %16, %18 : vector<10x18x128xf32>
    %20 = vector.shape_cast %14 : vector<1x128xf32> to vector<1x1x128xf32>
    %21 = vector.broadcast %20 : vector<1x1x128xf32> to vector<10x18x128xf32>
    %22 = arith.mulf %19, %21 : vector<10x18x128xf32>
    %cst_10 = arith.constant 0.000000e+00 : f32
    %23 = vector.broadcast %cst_10 : f32 to vector<10x18x128xf32>
    %24 = arith.maximumf %22, %23 : vector<10x18x128xf32>
    %25 = arith.truncf %24 : vector<10x18x128xf32> to vector<10x18x128xbf16>
    %cst_11 = arith.constant 0.000000e+00 : f32
    %26 = vector.broadcast %cst_11 : f32 to vector<128x128xf32>
    %27 = vector.extract_strided_slice %25 {offsets = [0, 0, 0], sizes = [8, 16, 128], strides = [1, 1, 1]} : vector<10x18x128xbf16> to vector<8x16x128xbf16>
    %28 = vector.shape_cast %27 : vector<8x16x128xbf16> to vector<128x128xbf16>
    %c0_12 = arith.constant 0 : index
    %c0_13 = arith.constant 0 : index
    %c0_14 = arith.constant 0 : index
    %c0_15 = arith.constant 0 : index
    %29 = vector.load %arg4[%c0_12, %c0_13, %c0_14, %c0_15] : memref<3x3x128x128xbf16, #tpu.memory_space<vmem>>, vector<1x1x128x128xbf16>
    %30 = vector.shape_cast %29 : vector<1x1x128x128xbf16> to vector<128x128xbf16>
    %cst_16 = arith.constant dense<0.000000e+00> : vector<128x128xf32>
    %31 = tpu.matmul %28, %30, %cst_16 {dimension_numbers = #tpu.dot_dimension_numbers<[1], [0], [0], [1], [0, 0, 1, 1], [], []>} : vector<128x128xbf16>, vector<128x128xbf16>, vector<128x128xf32> -> vector<128x128xf32>
    %32 = arith.addf %26, %31 : vector<128x128xf32>
    %33 = vector.extract_strided_slice %25 {offsets = [0, 1, 0], sizes = [8, 16, 128], strides = [1, 1, 1]} : vector<10x18x128xbf16> to vector<8x16x128xbf16>
    %34 = vector.shape_cast %33 : vector<8x16x128xbf16> to vector<128x128xbf16>
    %c0_17 = arith.constant 0 : index
    %c1 = arith.constant 1 : index
    %c0_18 = arith.constant 0 : index
    %c0_19 = arith.constant 0 : index
    %35 = vector.load %arg4[%c0_17, %c1, %c0_18, %c0_19] : memref<3x3x128x128xbf16, #tpu.memory_space<vmem>>, vector<1x1x128x128xbf16>
    %36 = vector.shape_cast %35 : vector<1x1x128x128xbf16> to vector<128x128xbf16>
    %cst_20 = arith.constant dense<0.000000e+00> : vector<128x128xf32>
    %37 = tpu.matmul %34, %36, %cst_20 {dimension_numbers = #tpu.dot_dimension_numbers<[1], [0], [0], [1], [0, 0, 1, 1], [], []>} : vector<128x128xbf16>, vector<128x128xbf16>, vector<128x128xf32> -> vector<128x128xf32>
    %38 = arith.addf %32, %37 : vector<128x128xf32>
    %39 = vector.extract_strided_slice %25 {offsets = [0, 2, 0], sizes = [8, 16, 128], strides = [1, 1, 1]} : vector<10x18x128xbf16> to vector<8x16x128xbf16>
    %40 = vector.shape_cast %39 : vector<8x16x128xbf16> to vector<128x128xbf16>
    %c0_21 = arith.constant 0 : index
    %c2 = arith.constant 2 : index
    %c0_22 = arith.constant 0 : index
    %c0_23 = arith.constant 0 : index
    %41 = vector.load %arg4[%c0_21, %c2, %c0_22, %c0_23] : memref<3x3x128x128xbf16, #tpu.memory_space<vmem>>, vector<1x1x128x128xbf16>
    %42 = vector.shape_cast %41 : vector<1x1x128x128xbf16> to vector<128x128xbf16>
    %cst_24 = arith.constant dense<0.000000e+00> : vector<128x128xf32>
    %43 = tpu.matmul %40, %42, %cst_24 {dimension_numbers = #tpu.dot_dimension_numbers<[1], [0], [0], [1], [0, 0, 1, 1], [], []>} : vector<128x128xbf16>, vector<128x128xbf16>, vector<128x128xf32> -> vector<128x128xf32>
    %44 = arith.addf %38, %43 : vector<128x128xf32>
    %45 = vector.extract_strided_slice %25 {offsets = [1, 0, 0], sizes = [8, 16, 128], strides = [1, 1, 1]} : vector<10x18x128xbf16> to vector<8x16x128xbf16>
    %46 = vector.shape_cast %45 : vector<8x16x128xbf16> to vector<128x128xbf16>
    %c1_25 = arith.constant 1 : index
    %c0_26 = arith.constant 0 : index
    %c0_27 = arith.constant 0 : index
    %c0_28 = arith.constant 0 : index
    %47 = vector.load %arg4[%c1_25, %c0_26, %c0_27, %c0_28] : memref<3x3x128x128xbf16, #tpu.memory_space<vmem>>, vector<1x1x128x128xbf16>
    %48 = vector.shape_cast %47 : vector<1x1x128x128xbf16> to vector<128x128xbf16>
    %cst_29 = arith.constant dense<0.000000e+00> : vector<128x128xf32>
    %49 = tpu.matmul %46, %48, %cst_29 {dimension_numbers = #tpu.dot_dimension_numbers<[1], [0], [0], [1], [0, 0, 1, 1], [], []>} : vector<128x128xbf16>, vector<128x128xbf16>, vector<128x128xf32> -> vector<128x128xf32>
    %50 = arith.addf %44, %49 : vector<128x128xf32>
    %51 = vector.extract_strided_slice %25 {offsets = [1, 1, 0], sizes = [8, 16, 128], strides = [1, 1, 1]} : vector<10x18x128xbf16> to vector<8x16x128xbf16>
    %52 = vector.shape_cast %51 : vector<8x16x128xbf16> to vector<128x128xbf16>
    %c1_30 = arith.constant 1 : index
    %c1_31 = arith.constant 1 : index
    %c0_32 = arith.constant 0 : index
    %c0_33 = arith.constant 0 : index
    %53 = vector.load %arg4[%c1_30, %c1_31, %c0_32, %c0_33] : memref<3x3x128x128xbf16, #tpu.memory_space<vmem>>, vector<1x1x128x128xbf16>
    %54 = vector.shape_cast %53 : vector<1x1x128x128xbf16> to vector<128x128xbf16>
    %cst_34 = arith.constant dense<0.000000e+00> : vector<128x128xf32>
    %55 = tpu.matmul %52, %54, %cst_34 {dimension_numbers = #tpu.dot_dimension_numbers<[1], [0], [0], [1], [0, 0, 1, 1], [], []>} : vector<128x128xbf16>, vector<128x128xbf16>, vector<128x128xf32> -> vector<128x128xf32>
    %56 = arith.addf %50, %55 : vector<128x128xf32>
    %57 = vector.extract_strided_slice %25 {offsets = [1, 2, 0], sizes = [8, 16, 128], strides = [1, 1, 1]} : vector<10x18x128xbf16> to vector<8x16x128xbf16>
    %58 = vector.shape_cast %57 : vector<8x16x128xbf16> to vector<128x128xbf16>
    %c1_35 = arith.constant 1 : index
    %c2_36 = arith.constant 2 : index
    %c0_37 = arith.constant 0 : index
    %c0_38 = arith.constant 0 : index
    %59 = vector.load %arg4[%c1_35, %c2_36, %c0_37, %c0_38] : memref<3x3x128x128xbf16, #tpu.memory_space<vmem>>, vector<1x1x128x128xbf16>
    %60 = vector.shape_cast %59 : vector<1x1x128x128xbf16> to vector<128x128xbf16>
    %cst_39 = arith.constant dense<0.000000e+00> : vector<128x128xf32>
    %61 = tpu.matmul %58, %60, %cst_39 {dimension_numbers = #tpu.dot_dimension_numbers<[1], [0], [0], [1], [0, 0, 1, 1], [], []>} : vector<128x128xbf16>, vector<128x128xbf16>, vector<128x128xf32> -> vector<128x128xf32>
    %62 = arith.addf %56, %61 : vector<128x128xf32>
    %63 = vector.extract_strided_slice %25 {offsets = [2, 0, 0], sizes = [8, 16, 128], strides = [1, 1, 1]} : vector<10x18x128xbf16> to vector<8x16x128xbf16>
    %64 = vector.shape_cast %63 : vector<8x16x128xbf16> to vector<128x128xbf16>
    %c2_40 = arith.constant 2 : index
    %c0_41 = arith.constant 0 : index
    %c0_42 = arith.constant 0 : index
    %c0_43 = arith.constant 0 : index
    %65 = vector.load %arg4[%c2_40, %c0_41, %c0_42, %c0_43] : memref<3x3x128x128xbf16, #tpu.memory_space<vmem>>, vector<1x1x128x128xbf16>
    %66 = vector.shape_cast %65 : vector<1x1x128x128xbf16> to vector<128x128xbf16>
    %cst_44 = arith.constant dense<0.000000e+00> : vector<128x128xf32>
    %67 = tpu.matmul %64, %66, %cst_44 {dimension_numbers = #tpu.dot_dimension_numbers<[1], [0], [0], [1], [0, 0, 1, 1], [], []>} : vector<128x128xbf16>, vector<128x128xbf16>, vector<128x128xf32> -> vector<128x128xf32>
    %68 = arith.addf %62, %67 : vector<128x128xf32>
    %69 = vector.extract_strided_slice %25 {offsets = [2, 1, 0], sizes = [8, 16, 128], strides = [1, 1, 1]} : vector<10x18x128xbf16> to vector<8x16x128xbf16>
    %70 = vector.shape_cast %69 : vector<8x16x128xbf16> to vector<128x128xbf16>
    %c2_45 = arith.constant 2 : index
    %c1_46 = arith.constant 1 : index
    %c0_47 = arith.constant 0 : index
    %c0_48 = arith.constant 0 : index
    %71 = vector.load %arg4[%c2_45, %c1_46, %c0_47, %c0_48] : memref<3x3x128x128xbf16, #tpu.memory_space<vmem>>, vector<1x1x128x128xbf16>
    %72 = vector.shape_cast %71 : vector<1x1x128x128xbf16> to vector<128x128xbf16>
    %cst_49 = arith.constant dense<0.000000e+00> : vector<128x128xf32>
    %73 = tpu.matmul %70, %72, %cst_49 {dimension_numbers = #tpu.dot_dimension_numbers<[1], [0], [0], [1], [0, 0, 1, 1], [], []>} : vector<128x128xbf16>, vector<128x128xbf16>, vector<128x128xf32> -> vector<128x128xf32>
    %74 = arith.addf %68, %73 : vector<128x128xf32>
    %75 = vector.extract_strided_slice %25 {offsets = [2, 2, 0], sizes = [8, 16, 128], strides = [1, 1, 1]} : vector<10x18x128xbf16> to vector<8x16x128xbf16>
    %76 = vector.shape_cast %75 : vector<8x16x128xbf16> to vector<128x128xbf16>
    %c2_50 = arith.constant 2 : index
    %c2_51 = arith.constant 2 : index
    %c0_52 = arith.constant 0 : index
    %c0_53 = arith.constant 0 : index
    %77 = vector.load %arg4[%c2_50, %c2_51, %c0_52, %c0_53] : memref<3x3x128x128xbf16, #tpu.memory_space<vmem>>, vector<1x1x128x128xbf16>
    %78 = vector.shape_cast %77 : vector<1x1x128x128xbf16> to vector<128x128xbf16>
    %cst_54 = arith.constant dense<0.000000e+00> : vector<128x128xf32>
    %79 = tpu.matmul %76, %78, %cst_54 {dimension_numbers = #tpu.dot_dimension_numbers<[1], [0], [0], [1], [0, 0, 1, 1], [], []>} : vector<128x128xbf16>, vector<128x128xbf16>, vector<128x128xf32> -> vector<128x128xf32>
    %80 = arith.addf %74, %79 : vector<128x128xf32>
    %c0_55 = arith.constant 0 : index
    %c0_56 = arith.constant 0 : index
    %81 = vector.load %arg5[%c0_55, %c0_56] : memref<1x128xf32, #tpu.memory_space<vmem>>, vector<1x128xf32>
    %82 = vector.broadcast %81 : vector<1x128xf32> to vector<128x128xf32>
    %83 = arith.addf %80, %82 : vector<128x128xf32>
    %c0_57 = arith.constant 0 : index
    %c0_58 = arith.constant 0 : index
    %c0_59 = arith.constant 0 : index
    %84 = vector.load %arg6[%c0_57, %c0_58, %c0_59] : memref<1x128x128xf32, #tpu.memory_space<vmem>>, vector<1x128x128xf32>
    %85 = vector.shape_cast %84 : vector<1x128x128xf32> to vector<128x128xf32>
    %86 = vector.shape_cast %83 : vector<128x128xf32> to vector<1x128x128xf32>
    tpu.vector_store %arg6[%c0_57, %c0_58, %c0_59], %86 {strides = array<i32>} : memref<1x128x128xf32, #tpu.memory_space<vmem>>, vector<1x128x128xf32>,
    %c0_i32 = arith.constant 0 : i32
    %87 = arith.cmpi eq, %arg1, %c0_i32 : i32
    %88 = arith.extui %87 : i1 to i32
    %c0_i32_60 = arith.constant 0 : i32
    %89 = arith.cmpi ne, %88, %c0_i32_60 : i32
    scf.if %89 {
      %cst_69 = arith.constant 0.000000e+00 : f32
      %102 = vector.broadcast %cst_69 : f32 to vector<2x128xf32>
      %c0_70 = arith.constant 0 : index
      %c0_71 = arith.constant 0 : index
      %c0_72 = arith.constant 0 : index
      %103 = vector.load %arg7[%c0_70, %c0_71, %c0_72] : memref<1x2x128xf32, #tpu.memory_space<vmem>>, vector<1x2x128xf32>
      %104 = vector.shape_cast %103 : vector<1x2x128xf32> to vector<2x128xf32>
      %105 = vector.shape_cast %102 : vector<2x128xf32> to vector<1x2x128xf32>
      tpu.vector_store %arg7[%c0_70, %c0_71, %c0_72], %105 {strides = array<i32>} : memref<1x2x128xf32, #tpu.memory_space<vmem>>, vector<1x2x128xf32>,
    } else {
    }
    %cst_61 = arith.constant dense<0.000000e+00> : vector<128xf32>
    %90 = vector.multi_reduction <add>, %83, %cst_61 [0] : vector<128x128xf32> to vector<128xf32>
    %91 = vector.shape_cast %90 : vector<128xf32> to vector<1x128xf32>
    %92 = arith.mulf %83, %83 : vector<128x128xf32>
    %cst_62 = arith.constant dense<0.000000e+00> : vector<128xf32>
    %93 = vector.multi_reduction <add>, %92, %cst_62 [0] : vector<128x128xf32> to vector<128xf32>
    %94 = vector.shape_cast %93 : vector<128xf32> to vector<1x128xf32>
    %c0_63 = arith.constant 0 : index
    %c0_64 = arith.constant 0 : index
    %c0_65 = arith.constant 0 : index
    %95 = vector.load %arg7[%c0_63, %c0_64, %c0_65] : memref<1x2x128xf32, #tpu.memory_space<vmem>>, vector<1x2x128xf32>
    %96 = vector.shape_cast %95 : vector<1x2x128xf32> to vector<2x128xf32>
    %97 = tpu.concatenate %91, %94 in 0 : vector<1x128xf32>, vector<1x128xf32> -> vector<2x128xf32>
    %98 = arith.addf %96, %97 : vector<2x128xf32>
    %c0_66 = arith.constant 0 : index
    %c0_67 = arith.constant 0 : index
    %c0_68 = arith.constant 0 : index
    %99 = vector.load %arg7[%c0_66, %c0_67, %c0_68] : memref<1x2x128xf32, #tpu.memory_space<vmem>>, vector<1x2x128xf32>
    %100 = vector.shape_cast %99 : vector<1x2x128xf32> to vector<2x128xf32>
    %101 = vector.shape_cast %98 : vector<2x128xf32> to vector<1x2x128xf32>
    tpu.vector_store %arg7[%c0_66, %c0_67, %c0_68], %101 {strides = array<i32>} : memref<1x2x128xf32, #tpu.memory_space<vmem>>, vector<1x2x128xf32>,
    return
  }
  func.func @transform_0(%arg0: i32, %arg1: i32) -> (i32, i32, i32, i32, i32) {
    %c0_i32 = arith.constant 0 : i32
    %c0_i32_0 = arith.constant 0 : i32
    %c0_i32_1 = arith.constant 0 : i32
    %c0_i32_2 = arith.constant 0 : i32
    return %arg0, %arg1, %c0_i32, %c0_i32_0, %c0_i32_1 : i32, i32, i32, i32, i32
  }
  func.func @transform_1(%arg0: i32, %arg1: i32) -> (i32, i32, i32) {
    %c0_i32 = arith.constant 0 : i32
    %c0_i32_0 = arith.constant 0 : i32
    %c0_i32_1 = arith.constant 0 : i32
    return %arg0, %c0_i32, %c0_i32_0 : i32, i32, i32
  }
  func.func @transform_2(%arg0: i32, %arg1: i32) -> (i32, i32, i32, i32) {
    %c0_i32 = arith.constant 0 : i32
    %c0_i32_0 = arith.constant 0 : i32
    %c0_i32_1 = arith.constant 0 : i32
    %c0_i32_2 = arith.constant 0 : i32
    %c0_i32_3 = arith.constant 0 : i32
    return %c0_i32, %c0_i32_0, %c0_i32_1, %c0_i32_2 : i32, i32, i32, i32
  }
  func.func @transform_3(%arg0: i32, %arg1: i32) -> (i32, i32) {
    %c0_i32 = arith.constant 0 : i32
    %c0_i32_0 = arith.constant 0 : i32
    %c0_i32_1 = arith.constant 0 : i32
    return %c0_i32, %c0_i32_0 : i32, i32
  }
  func.func @transform_4(%arg0: i32, %arg1: i32) -> (i32, i32, i32) {
    %c0_i32 = arith.constant 0 : i32
    %c0_i32_0 = arith.constant 0 : i32
    return %arg0, %arg1, %c0_i32 : i32, i32, i32
  }
  func.func @transform_5(%arg0: i32, %arg1: i32) -> (i32, i32, i32) {
    %c0_i32 = arith.constant 0 : i32
    %c0_i32_0 = arith.constant 0 : i32
    %c0_i32_1 = arith.constant 0 : i32
    return %arg0, %c0_i32, %c0_i32_0 : i32, i32, i32
  }
}

</mosaic_0001>

<llo_original>
// kernel: residual_block_forward.5
$region0: #{residual_block_forward.5}
  #allocation0 [shape = 'u32[]', space=smem, size = 0x4, offset = 0x4, fixed_abs, tag = 'smem constant byte address 0x4 - core index']
  #allocation1 [shape = 'u32[72,128]{1,0:T(1,128)}', space=vmem, size = 0x9000, scoped, tag = 'internal scratch']
  %s0 = inlined_call_operand.vmem [shape: f32[2,256,128], index: 0, kind: input, shape index: {}]
  %s1 = inlined_call_operand.vmem [shape: f32[2,2,128], index: 1, kind: input, shape index: {}]
  %s2 = inlined_call_operand.vmem [shape: f32[2,256,128], index: 2, kind: input, shape index: {}]
  %s3 = inlined_call_operand.hbm [shape: f32[2,256,128], index: 3, kind: output, shape index: {}]
  %s4 = sld [smem:[#allocation0]]
  $region45: #{residual_block_forward.5} parent=0
    _
  %s6 = ssub.s32 1, %s4
  %s7 = scalar_select 0, %s6, %s4
  $region1: #{residual_block_forward.5} parent=0
    #allocation2 [shape = 'u8[131072]{0}', space=vmem, size = 0x20000, scoped, tag = 'output window, operand 0']
    #allocation3 [shape = 's32[2]{0}', space=sflag, size = 0x8, scoped, tag = 'scoped memory for residual_block_forward.5']
    %8 = vsyncpa [#allocation3], 0
    %s9 = scalar_lea.sflag [#allocation3], 1
    %10 = vsyncpa %s9, 0
    loop: start=0, step=1, limit=6
    $region2: #{residual_block_forward.5} parent=1 // loop_pre_header
      _
    $region3: #{residual_block_forward.5} parent=1 // loop_header
      %s12 = sphi 0, %s16
      %p13 = scmp.ge.s32.totalorder %s12, 6
      %s19 = sphi 0, %s31
      %s20 = sphi 0, %s27
      %s21 = sphi 0, %s19
      %s22 = sphi 0, %s20
      %s23 = sphi 0, %s21
      %s24 = sphi 0, %s22
      %s36 = sphi 0, %s38
      %s39 = sphi 0, %s36
      %s40 = sphi 0, %s39
      %s56 = sphi 0, %s40
      %s62 = sphi 0, %s64
      %s65 = sphi 0, %s62
      %s66 = sphi 0, %s65
      %s82 = sphi 0, %s66
      %s90 = sphi 0, %s92
      %s93 = sphi 0, %s90
      %s94 = sphi 0, %s93
      %s110 = sphi 0, %s94
      %s118 = sphi 0, %s120
      %s121 = sphi 0, %s118
      %s122 = sphi 0, %s121
      %s138 = sphi 0, %s122
    $region4: #{residual_block_forward.5} parent=1 // loop_header_branch
      %15 = sbr.rel (%p13) target = $region8
    $region5: #{residual_block_forward.5} parent=1 // loop_body
      %s17 = ssub.s32 %s12, 1
      %s18 = ssub.s32 %s12, 2
      %s25 = sadd.s32 1, %s20
      %p26 = scmp.ge.s32.totalorder %s25, 2
      %s27 = scalar_select %p26, 0, %s25
      %s28 = sadd.s32 1, %s19
      %s29 = scalar_select %p26, %s28, %s19
      %p30 = scmp.ge.s32.totalorder %s29, 2
      %s31 = scalar_select %p30, 0, %s29
      %s32 = ssub.s32 %s19, %s31
      %s33 = ssub.s32 %s20, %s27
      %s34 = sor.u32 %s32, %s33
      %p35 = scmp.eq.s32.totalorder %s34, 0
      %s37 = sadd.s32 %s36, 1
      %s38 = scalar_select %p35, %s36, %s37
      %p41 = pneg %p35
      %p42 = scmp.eq.s32.totalorder %s12, 3
      %p43 = por %p41, %p42
      %p44 = scmp.ne.s32.totalorder %s36, %s39
      %p45 = scmp.eq.s32.totalorder %s12, 0
      %p46 = por %p44, %p45
      %p47 = scmp.ne.s32.totalorder %s36, %s39
      %p48 = scmp.eq.s32.totalorder %s17, 3
      %p49 = por %p47, %p48
      %p50 = scmp.ne.s32.totalorder %s39, %s40
      %p51 = scmp.eq.s32.totalorder %s17, 0
      %p52 = por %p50, %p51
      %p53 = scmp.ne.s32.totalorder %s39, %s40
      %p54 = scmp.eq.s32.totalorder %s18, 3
      %p55 = por %p53, %p54
      %p57 = scmp.ne.s32.totalorder %s40, %s56
      %p58 = scmp.eq.s32.totalorder %s18, 0
      %p59 = por %p57, %p58
      %s60 = ssub.s32 %s19, %s31
      %p61 = scmp.eq.s32.totalorder %s60, 0
      %s63 = sadd.s32 %s62, 1
      %s64 = scalar_select %p61, %s62, %s63
      %p67 = pneg %p61
      %p68 = scmp.eq.s32.totalorder %s12, 3
      %p69 = por %p67, %p68
      %p70 = scmp.ne.s32.totalorder %s62, %s65
      %p71 = scmp.eq.s32.totalorder %s12, 0
      %p72 = por %p70, %p71
      %p73 = scmp.ne.s32.totalorder %s62, %s65
      %p74 = scmp.eq.s32.totalorder %s17, 3
      %p75 = por %p73, %p74
      %p76 = scmp.ne.s32.totalorder %s65, %s66
      %p77 = scmp.eq.s32.totalorder %s17, 0
      %p78 = por %p76, %p77
      %p79 = scmp.ne.s32.totalorder %s65, %s66
      %p80 = scmp.eq.s32.totalorder %s18, 3
      %p81 = por %p79, %p80
      %p83 = scmp.ne.s32.totalorder %s66, %s82
      %p84 = scmp.eq.s32.totalorder %s18, 0
      %p85 = por %p83, %p84
      %s86 = ssub.s32 %s19, %s31
      %s87 = ssub.s32 %s20, %s27
      %s88 = sor.u32 %s86, %s87
      %p89 = scmp.eq.s32.totalorder %s88, 0
      %s91 = sadd.s32 %s90, 1
      %s92 = scalar_select %p89, %s90, %s91
      %p95 = pneg %p89
      %p96 = scmp.eq.s32.totalorder %s12, 3
      %p97 = por %p95, %p96
      %p98 = scmp.ne.s32.totalorder %s90, %s93
      %p99 = scmp.eq.s32.totalorder %s12, 0
      %p100 = por %p98, %p99
      %p101 = scmp.ne.s32.totalorder %s90, %s93
      %p102 = scmp.eq.s32.totalorder %s17, 3
      %p103 = por %p101, %p102
      %p104 = scmp.ne.s32.totalorder %s93, %s94
      %p105 = scmp.eq.s32.totalorder %s17, 0
      %p106 = por %p104, %p105
      %p107 = scmp.ne.s32.totalorder %s93, %s94
      %p108 = scmp.eq.s32.totalorder %s18, 3
      %p109 = por %p107, %p108
      %p111 = scmp.ne.s32.totalorder %s94, %s110
      %p112 = scmp.eq.s32.totalorder %s18, 0
      %p113 = por %p111, %p112
      %s114 = ssub.s32 %s19, %s31
      %s115 = ssub.s32 %s20, %s27
      %s116 = sor.u32 %s114, %s115
      %p117 = scmp.eq.s32.totalorder %s116, 0
      %s119 = sadd.s32 %s118, 1
      %s120 = scalar_select %p117, %s118, %s119
      %p123 = pneg %p117
      %p124 = scmp.eq.s32.totalorder %s12, 3
      %p125 = por %p123, %p124
      %p126 = scmp.ne.s32.totalorder %s118, %s121
      %p127 = scmp.eq.s32.totalorder %s12, 0
      %p128 = por %p126, %p127
      %p129 = scmp.ne.s32.totalorder %s118, %s121
      %p130 = scmp.eq.s32.totalorder %s17, 3
      %p131 = por %p129, %p130
      %p132 = scmp.ne.s32.totalorder %s121, %s122
      %p133 = scmp.eq.s32.totalorder %s17, 0
      %p134 = por %p132, %p133
      %p135 = scmp.ne.s32.totalorder %s121, %s122
      %p136 = scmp.eq.s32.totalorder %s18, 3
      %p137 = por %p135, %p136
      %p139 = scmp.ne.s32.totalorder %s122, %s138
      %p140 = scmp.eq.s32.totalorder %s18, 0
      %p141 = por %p139, %p140
      %p142 = scmp.le.s32.totalorder 1, %s12
      %p143 = scmp.lt.s32.totalorder %s12, 5
      %p144 = pnand %p142, %p143
      %p145 = pneg %p144
      // Predicated region
      $region9: #{residual_block_forward.5} parent=5 // pred_check
        _
      $region10: #{residual_block_forward.5} parent=5 // pred_check_branch
        %147 = sbr.rel (%p144) target = $region12
      $region11: #{residual_block_forward.5} parent=5 // pred_region
        %s148 = ssub.s32 %s12, 1
      $region12: #{residual_block_forward.5} parent=5 // pred_fallthru
        _
      %p149 = scmp.lt.s32.totalorder %s12, 4
      // Predicated region
      $region13: #{residual_block_forward.5} parent=5 // pred_check
        %p150 = pneg %p149
      $region14: #{residual_block_forward.5} parent=5 // pred_check_branch
        %152 = sbr.rel (%p150) target = $region16
      $region15: #{residual_block_forward.5} parent=5 // pred_region
        // Predicated region
        $region17: #{residual_block_forward.5} parent=15 // pred_check
          %p153 = pneg %p46
        $region18: #{residual_block_forward.5} parent=15 // pred_check_branch
          %155 = sbr.rel (%p153) target = $region20
        $region19: #{residual_block_forward.5} parent=15 // pred_region
          %s156 = smul.u32 16, %s20
          %p157 = scmp.lt.s32.totalorder %s19, 1
          %s158 = scalar_select %p157, %s19, 1
          %p159 = scmp.lt.s32.totalorder %s156, 31
          %s160 = scalar_select %p159, %s156, 31
          %s161 = smul.addr %s158, 32
          %s162 = sadd.s32 %s160, %s161
          %s163 = smul.addr %s162, 8
          %s164 = scalar_lea.vmem %s0, %s163
          %s165 = smul.u32 16, %s20
        $region20: #{residual_block_forward.5} parent=15 // pred_fallthru
          _
        // Predicated region
        $region21: #{residual_block_forward.5} parent=15 // pred_check
          %p166 = pneg %p72
        $region22: #{residual_block_forward.5} parent=15 // pred_check_branch
          %168 = sbr.rel (%p166) target = $region24
        $region23: #{residual_block_forward.5} parent=15 // pred_region
          %p169 = scmp.lt.s32.totalorder %s19, 1
          %s170 = scalar_select %p169, %s19, 1
          %s171 = smul.addr %s170, 2
          %s172 = scalar_lea.vmem %s1, %s171
        $region24: #{residual_block_forward.5} parent=15 // pred_fallthru
          _
        // Predicated region
        $region25: #{residual_block_forward.5} parent=15 // pred_check
          %p173 = pneg %p100
        $region26: #{residual_block_forward.5} parent=15 // pred_check_branch
          %175 = sbr.rel (%p173) target = $region28
        $region27: #{residual_block_forward.5} parent=15 // pred_region
          %s176 = smul.u32 16, %s20
          %p177 = scmp.lt.s32.totalorder %s19, 1
          %s178 = scalar_select %p177, %s19, 1
          %p179 = scmp.lt.s32.totalorder %s176, 31
          %s180 = scalar_select %p179, %s176, 31
          %s181 = smul.addr %s178, 32
          %s182 = sadd.s32 %s180, %s181
          %s183 = smul.addr %s182, 8
          %s184 = scalar_lea.vmem %s2, %s183
          %s185 = smul.u32 16, %s20
        $region28: #{residual_block_forward.5} parent=15 // pred_fallthru
          _
      $region16: #{residual_block_forward.5} parent=5 // pred_fallthru
        _
      %p186 = scmp.le.s32.totalorder 1, %s12
      %p187 = scmp.lt.s32.totalorder %s12, 5
      %p188 = pnand %p186, %p187
      %p189 = pneg %p188
      // Predicated region
      $region29: #{residual_block_forward.5} parent=5 // pred_check
        _
      $region30: #{residual_block_forward.5} parent=5 // pred_check_branch
        %191 = sbr.rel (%p188) target = $region32
      $region31: #{residual_block_forward.5} parent=5 // pred_region
        %s192 = ssub.s32 %s12, 1
        %s193 = smul.u32 16, %s22
        %p194 = scmp.lt.s32.totalorder %s21, 1
        %s195 = scalar_select %p194, %s21, 1
        %p196 = scmp.lt.s32.totalorder %s193, 31
        %s197 = scalar_select %p196, %s193, 31
        %s198 = smul.addr %s195, 32
        %s199 = sadd.s32 %s197, %s198
        %s200 = smul.addr %s199, 8
        %s201 = scalar_lea.vmem %s0, %s200
        %p202 = pneg %p52
        %p203 = pneg %p49
        %p204 = scmp.lt.s32.totalorder %s21, 1
        %s205 = scalar_select %p204, %s21, 1
        %s206 = smul.addr %s205, 2
        %s207 = scalar_lea.vmem %s1, %s206
        %p208 = pneg %p78
        %p209 = pneg %p75
        %s210 = smul.u32 16, %s22
        %p211 = scmp.lt.s32.totalorder %s21, 1
        %s212 = scalar_select %p211, %s21, 1
        %p213 = scmp.lt.s32.totalorder %s210, 31
        %s214 = scalar_select %p213, %s210, 31
        %s215 = smul.addr %s212, 32
        %s216 = sadd.s32 %s214, %s215
        %s217 = smul.addr %s216, 8
        %s218 = scalar_lea.vmem %s2, %s217
        %p219 = pneg %p106
        %p220 = pneg %p103
        %p221 = pneg %p134
        %p222 = pneg %p131
        %s223 = sand.u32 %s121, 1
        %s224 = scalar_lea.sflag [#allocation3], %s223
        %s225 = sand.u32 %s121, 1
        %s226 = smul.addr %s225, 128
        %s227 = scalar_lea.vmem [#allocation2], %s226
        %s228 = smul.u32 16, %s22
        %p229 = scmp.lt.s32.totalorder %s21, 1
        %s230 = scalar_select %p229, %s21, 1
        %p231 = scmp.lt.s32.totalorder %s228, 31
        %s232 = scalar_select %p231, %s228, 31
        %s233 = smul.addr %s230, 32
        %s234 = sadd.s32 %s232, %s233
        %s235 = smul.addr %s234, 8
        %s236 = scalar_lea.vmem %s0, %s235
        %s237 = smul.u32 16, %s22
        %p238 = scmp.lt.s32.totalorder %s21, 1
        %s239 = scalar_select %p238, %s21, 1
        %s240 = smul.addr %s239, 2
        %s241 = scalar_lea.vmem %s1, %s240
        %s242 = smul.u32 16, %s22
        %p243 = scmp.lt.s32.totalorder %s21, 1
        %s244 = scalar_select %p243, %s21, 1
        %p245 = scmp.lt.s32.totalorder %s242, 31
        %s246 = scalar_select %p245, %s242, 31
        %s247 = smul.addr %s244, 32
        %s248 = sadd.s32 %s246, %s247
        %s249 = smul.addr %s248, 8
        %s250 = scalar_lea.vmem %s2, %s249
        %s251 = smul.u32 16, %s22
        %s252 = smul.u32 16, %s22
        %v253 = vld [vmem:[%s241] sm:$0x3]
        %v254 = vmul.f32 %v253, 0.00390625
        %v255 = vmul.f32 %v254, %v254
        %v257 = vrot.slane %v255, 7
        %v259 = vsub.f32 %v254, %v257
        %v260 = vmax.f32 %v259, 0.0
        %v261 = vadd.f32 %v260, 1e-05
        %v262 = vrsqrt.pop %v261
        %v263 = vmul.f32 %v262, %v261
        %v264 = vmul.f32 %v263, %v262
        %v265 = vmul.f32 0.5, %v264
        %v266 = vsub.f32 1.5, %v265
        %v267 = vmul.f32 %v262, %v266
        %vm268 = vweird.f32 %v261
        %vm269 = vweird.f32 %v262
        %vm270 = vmor %vm268, %vm269
        %v271 = vsel %vm270, %v262, %v267
        %v272 = vld [vmem:[%s250] sm:$0xff]
        %v273 = vld [vmem:[%s250 + $0x8] sm:$0xff]
        %v274 = vld [vmem:[%s250 + $0x10] sm:$0xff]
        %v275 = vld [vmem:[%s250 + $0x18] sm:$0xff]
        %v276 = vld [vmem:[%s250 + $0x20] sm:$0xff]
        %v277 = vld [vmem:[%s250 + $0x28] sm:$0xff]
        %v278 = vld [vmem:[%s250 + $0x30] sm:$0xff]
        %v279 = vld [vmem:[%s250 + $0x38] sm:$0xff]
        %v280 = vld [vmem:[%s250 + $0x40] sm:$0xff]
        %v281 = vld [vmem:[%s250 + $0x48] sm:$0xff]
        %v282 = vld [vmem:[%s250 + $0x50] sm:$0xff]
        %v283 = vld [vmem:[%s250 + $0x58] sm:$0xff]
        %v284 = vld [vmem:[%s250 + $0x60] sm:$0xff]
        %v285 = vld [vmem:[%s250 + $0x68] sm:$0xff]
        %v286 = vld [vmem:[%s250 + $0x70] sm:$0xff]
        %v287 = vld [vmem:[%s250 + $0x78] sm:$0xff]
        %v288 = vld [vmem:[%s236] sm:$0xff]
        %v289 = vld [vmem:[%s236 + $0x8] sm:$0xff]
        %v290 = vld [vmem:[%s236 + $0x10] sm:$0xff]
        %v291 = vld [vmem:[%s236 + $0x18] sm:$0xff]
        %v292 = vld [vmem:[%s236 + $0x20] sm:$0xff]
        %v293 = vld [vmem:[%s236 + $0x28] sm:$0xff]
        %v294 = vld [vmem:[%s236 + $0x30] sm:$0xff]
        %v295 = vld [vmem:[%s236 + $0x38] sm:$0xff]
        %v296 = vld [vmem:[%s236 + $0x40] sm:$0xff]
        %v297 = vld [vmem:[%s236 + $0x48] sm:$0xff]
        %v298 = vld [vmem:[%s236 + $0x50] sm:$0xff]
        %v299 = vld [vmem:[%s236 + $0x58] sm:$0xff]
        %v300 = vld [vmem:[%s236 + $0x60] sm:$0xff]
        %v301 = vld [vmem:[%s236 + $0x68] sm:$0xff]
        %v302 = vld [vmem:[%s236 + $0x70] sm:$0xff]
        %v303 = vld [vmem:[%s236 + $0x78] sm:$0xff]
        %v304 = vperm.slane %v254, 0
        %v305 = vsub.f32 %v288, %v304
        %v306 = vsub.f32 %v289, %v304
        %v307 = vsub.f32 %v290, %v304
        %v308 = vsub.f32 %v291, %v304
        %v309 = vsub.f32 %v292, %v304
        %v310 = vsub.f32 %v293, %v304
        %v311 = vsub.f32 %v294, %v304
        %v312 = vsub.f32 %v295, %v304
        %v313 = vsub.f32 %v296, %v304
        %v314 = vsub.f32 %v297, %v304
        %v315 = vsub.f32 %v298, %v304
        %v316 = vsub.f32 %v299, %v304
        %v317 = vsub.f32 %v300, %v304
        %v318 = vsub.f32 %v301, %v304
        %v319 = vsub.f32 %v302, %v304
        %v320 = vsub.f32 %v303, %v304
        %v321 = vperm.slane %v271, 1
        %v322 = vmul.f32 %v305, %v321
        %v323 = vmul.f32 %v306, %v321
        %v324 = vmul.f32 %v307, %v321
        %v325 = vmul.f32 %v308, %v321
        %v326 = vmul.f32 %v309, %v321
        %v327 = vmul.f32 %v310, %v321
        %v328 = vmul.f32 %v311, %v321
        %v329 = vmul.f32 %v312, %v321
        %v330 = vmul.f32 %v313, %v321
        %v331 = vmul.f32 %v314, %v321
        %v332 = vmul.f32 %v315, %v321
        %v333 = vmul.f32 %v316, %v321
        %v334 = vmul.f32 %v317, %v321
        %v335 = vmul.f32 %v318, %v321
        %v336 = vmul.f32 %v319, %v321
        %v337 = vmul.f32 %v320, %v321
        %v338 = vadd.f32 %v272, %v322
        %v339 = vadd.f32 %v273, %v323
        %v340 = vadd.f32 %v274, %v324
        %v341 = vadd.f32 %v275, %v325
        %v342 = vadd.f32 %v276, %v326
        %v343 = vadd.f32 %v277, %v327
        %v344 = vadd.f32 %v278, %v328
        %v345 = vadd.f32 %v279, %v329
        %v346 = vadd.f32 %v280, %v330
        %v347 = vadd.f32 %v281, %v331
        %v348 = vadd.f32 %v282, %v332
        %v349 = vadd.f32 %v283, %v333
        %v350 = vadd.f32 %v284, %v334
        %v351 = vadd.f32 %v285, %v335
        %v352 = vadd.f32 %v286, %v336
        %v353 = vadd.f32 %v287, %v337
        %354 = vst [vmem:[%s227] sm:$0xff] %v338
        %355 = vst [vmem:[%s227 + $0x8] sm:$0xff] %v339
        %356 = vst [vmem:[%s227 + $0x10] sm:$0xff] %v340
        %357 = vst [vmem:[%s227 + $0x18] sm:$0xff] %v341
        %358 = vst [vmem:[%s227 + $0x20] sm:$0xff] %v342
        %359 = vst [vmem:[%s227 + $0x28] sm:$0xff] %v343
        %360 = vst [vmem:[%s227 + $0x30] sm:$0xff] %v344
        %361 = vst [vmem:[%s227 + $0x38] sm:$0xff] %v345
        %362 = vst [vmem:[%s227 + $0x40] sm:$0xff] %v346
        %363 = vst [vmem:[%s227 + $0x48] sm:$0xff] %v347
        %364 = vst [vmem:[%s227 + $0x50] sm:$0xff] %v348
        %365 = vst [vmem:[%s227 + $0x58] sm:$0xff] %v349
        %366 = vst [vmem:[%s227 + $0x60] sm:$0xff] %v350
        %367 = vst [vmem:[%s227 + $0x68] sm:$0xff] %v351
        %368 = vst [vmem:[%s227 + $0x70] sm:$0xff] %v352
        %369 = vst [vmem:[%s227 + $0x78] sm:$0xff] %v353
        %s370 = sand.u32 %s121, 1
        %s371 = scalar_lea.sflag [#allocation3], %s370
        %s372 = sand.u32 %s121, 1
        %s373 = smul.addr %s372, 128
        %s374 = scalar_lea.vmem [#allocation2], %s373
        // Predicated region
        $region33: #{residual_block_forward.5} parent=31 // pred_check
          %p375 = pneg %p131
        $region34: #{residual_block_forward.5} parent=31 // pred_check_branch
          %377 = sbr.rel (%p375) target = $region36
        $region35: #{residual_block_forward.5} parent=31 // pred_region
          %s378 = smul.u32 16, %s22
          %380 = vsyncadd %s371, 0
          %s381 = smul.addr %s21, 32
          %s382 = sadd.s32 %s378, %s381
          %s383 = smul.addr %s382, 8
          %s384 = scalar_lea.hbm %s3, %s383
          %s385 = sshll.u32 %s374, 4
          %s386 = int_to_ptr.vmem [resolvable:$true] %s385
          %s387 = sshll.u32 %s384, 4
          %s388 = int_to_ptr.hbm [resolvable:$true] %s387
          %393 = dma.vmem_to_hbm [thread:$0]  %s386, 2048, %s388, %s371, 128, 128, 8
        $region36: #{residual_block_forward.5} parent=31 // pred_fallthru
          _
      $region32: #{residual_block_forward.5} parent=5 // pred_fallthru
        _
      %p394 = scmp.le.s32.totalorder 2, %s12
      // Predicated region
      $region37: #{residual_block_forward.5} parent=5 // pred_check
        %p395 = pneg %p394
      $region38: #{residual_block_forward.5} parent=5 // pred_check_branch
        %397 = sbr.rel (%p395) target = $region40
      $region39: #{residual_block_forward.5} parent=5 // pred_region
        %s398 = ssub.s32 %s12, 2
        // Predicated region
        $region41: #{residual_block_forward.5} parent=39 // pred_check
          %p399 = pneg %p137
        $region42: #{residual_block_forward.5} parent=39 // pred_check_branch
          %401 = sbr.rel (%p399) target = $region44
        $region43: #{residual_block_forward.5} parent=39 // pred_region
          %s402 = sand.u32 %s122, 1
          %s403 = scalar_lea.sflag [#allocation3], %s402
          %s404 = sand.u32 %s122, 1
          %s405 = smul.addr %s404, 128
          %s406 = scalar_lea.vmem [#allocation2], %s405
          %408 = dma.done %s403, 2048
        $region44: #{residual_block_forward.5} parent=39 // pred_fallthru
          _
      $region40: #{residual_block_forward.5} parent=5 // pred_fallthru
        _
    $region6: #{residual_block_forward.5} parent=1 // loop_footer
      %s16 = sadd.s32 1, %s12
    $region7: #{residual_block_forward.5} parent=1 // loop_footer_branch
      %11 = sbr.rel target = $region3
    $region8: #{residual_block_forward.5} parent=1 // loop_exit
      _
    %409 = vsyncpa [#allocation3], 1
    %s410 = scalar_lea.sflag [#allocation3], 1
    %411 = vsyncpa %s410, 1

// kernel: residual_block_forward.3
$region0: #{residual_block_forward.3}
  #allocation0 [shape = 'u32[]', space=smem, size = 0x4, offset = 0x4, fixed_abs, tag = 'smem constant byte address 0x4 - core index']
  #allocation1 [shape = 'u32[72,128]{1,0:T(1,128)}', space=vmem, size = 0x9000, scoped, tag = 'internal scratch']
  %s0 = inlined_call_operand.vmem [shape: bf16[2,2,10,18,128], index: 0, kind: input, shape index: {}]
  %s1 = inlined_call_operand.vmem [shape: bf16[3,3,128,128], index: 1, kind: input, shape index: {}]
  %s2 = inlined_call_operand.vmem [shape: f32[1,128], index: 2, kind: input, shape index: {}]
  %s3 = inlined_call_operand.vmem [shape: f32[2,256,128], index: 3, kind: output, shape index: {0}]
  %s4 = inlined_call_operand.vmem [shape: f32[2,2,128], index: 4, kind: output, shape index: {1}]
  %5 = xla_tuple %s3, %s4
  %s6 = sld [smem:[#allocation0]]
  $region57: #{residual_block_forward.3} parent=0
    _
  %s8 = ssub.s32 1, %s6
  %s9 = scalar_select 0, %s8, %s6
  loop: start=0, step=1, limit=6
  $region2: #{residual_block_forward.3} parent=0 // loop_pre_header
    _
  $region3: #{residual_block_forward.3} parent=0 // loop_header
    %s11 = sphi 0, %s15
    %p12 = scmp.ge.s32.totalorder %s11, 6
    %s18 = sphi 0, %s30
    %s19 = sphi 0, %s26
    %s20 = sphi 0, %s18
    %s21 = sphi 0, %s19
    %s22 = sphi 0, %s20
    %s23 = sphi 0, %s21
    %s35 = sphi 0, %s37
    %s38 = sphi 0, %s35
    %s39 = sphi 0, %s38
    %s55 = sphi 0, %s39
    %s59 = sphi 0, %s59
    %s61 = sphi 0, %s59
    %s62 = sphi 0, %s61
    %s76 = sphi 0, %s62
    %s80 = sphi 0, %s80
    %s82 = sphi 0, %s80
    %s83 = sphi 0, %s82
    %s97 = sphi 0, %s83
    %s105 = sphi 0, %s107
    %s108 = sphi 0, %s105
    %s109 = sphi 0, %s108
    %s125 = sphi 0, %s109
    %s131 = sphi 0, %s133
    %s134 = sphi 0, %s131
    %s135 = sphi 0, %s134
    %s151 = sphi 0, %s135
  $region4: #{residual_block_forward.3} parent=0 // loop_header_branch
    %14 = sbr.rel (%p12) target = $region8
  $region5: #{residual_block_forward.3} parent=0 // loop_body
    %s16 = ssub.s32 %s11, 1
    %s17 = ssub.s32 %s11, 2
    %s24 = sadd.s32 1, %s19
    %p25 = scmp.ge.s32.totalorder %s24, 2
    %s26 = scalar_select %p25, 0, %s24
    %s27 = sadd.s32 1, %s18
    %s28 = scalar_select %p25, %s27, %s18
    %p29 = scmp.ge.s32.totalorder %s28, 2
    %s30 = scalar_select %p29, 0, %s28
    %s31 = ssub.s32 %s18, %s30
    %s32 = ssub.s32 %s19, %s26
    %s33 = sor.u32 %s31, %s32
    %p34 = scmp.eq.s32.totalorder %s33, 0
    %s36 = sadd.s32 %s35, 1
    %s37 = scalar_select %p34, %s35, %s36
    %p40 = pneg %p34
    %p41 = scmp.eq.s32.totalorder %s11, 3
    %p42 = por %p40, %p41
    %p43 = scmp.ne.s32.totalorder %s35, %s38
    %p44 = scmp.eq.s32.totalorder %s11, 0
    %p45 = por %p43, %p44
    %p46 = scmp.ne.s32.totalorder %s35, %s38
    %p47 = scmp.eq.s32.totalorder %s16, 3
    %p48 = por %p46, %p47
    %p49 = scmp.ne.s32.totalorder %s38, %s39
    %p50 = scmp.eq.s32.totalorder %s16, 0
    %p51 = por %p49, %p50
    %p52 = scmp.ne.s32.totalorder %s38, %s39
    %p53 = scmp.eq.s32.totalorder %s17, 3
    %p54 = por %p52, %p53
    %p56 = scmp.ne.s32.totalorder %s39, %s55
    %p57 = scmp.eq.s32.totalorder %s17, 0
    %p58 = por %p56, %p57
    %s60 = sadd.s32 %s59, 1
    %p63 = scmp.eq.s32.totalorder %s11, 3
    %p64 = scmp.ne.s32.totalorder %s59, %s61
    %p65 = scmp.eq.s32.totalorder %s11, 0
    %p66 = por %p64, %p65
    %p67 = scmp.ne.s32.totalorder %s59, %s61
    %p68 = scmp.eq.s32.totalorder %s16, 3
    %p69 = por %p67, %p68
    %p70 = scmp.ne.s32.totalorder %s61, %s62
    %p71 = scmp.eq.s32.totalorder %s16, 0
    %p72 = por %p70, %p71
    %p73 = scmp.ne.s32.totalorder %s61, %s62
    %p74 = scmp.eq.s32.totalorder %s17, 3
    %p75 = por %p73, %p74
    %p77 = scmp.ne.s32.totalorder %s62, %s76
    %p78 = scmp.eq.s32.totalorder %s17, 0
    %p79 = por %p77, %p78
    %s81 = sadd.s32 %s80, 1
    %p84 = scmp.eq.s32.totalorder %s11, 3
    %p85 = scmp.ne.s32.totalorder %s80, %s82
    %p86 = scmp.eq.s32.totalorder %s11, 0
    %p87 = por %p85, %p86
    %p88 = scmp.ne.s32.totalorder %s80, %s82
    %p89 = scmp.eq.s32.totalorder %s16, 3
    %p90 = por %p88, %p89
    %p91 = scmp.ne.s32.totalorder %s82, %s83
    %p92 = scmp.eq.s32.totalorder %s16, 0
    %p93 = por %p91, %p92
    %p94 = scmp.ne.s32.totalorder %s82, %s83
    %p95 = scmp.eq.s32.totalorder %s17, 3
    %p96 = por %p94, %p95
    %p98 = scmp.ne.s32.totalorder %s83, %s97
    %p99 = scmp.eq.s32.totalorder %s17, 0
    %p100 = por %p98, %p99
    %s101 = ssub.s32 %s18, %s30
    %s102 = ssub.s32 %s19, %s26
    %s103 = sor.u32 %s101, %s102
    %p104 = scmp.eq.s32.totalorder %s103, 0
    %s106 = sadd.s32 %s105, 1
    %s107 = scalar_select %p104, %s105, %s106
    %p110 = pneg %p104
    %p111 = scmp.eq.s32.totalorder %s11, 3
    %p112 = por %p110, %p111
    %p113 = scmp.ne.s32.totalorder %s105, %s108
    %p114 = scmp.eq.s32.totalorder %s11, 0
    %p115 = por %p113, %p114
    %p116 = scmp.ne.s32.totalorder %s105, %s108
    %p117 = scmp.eq.s32.totalorder %s16, 3
    %p118 = por %p116, %p117
    %p119 = scmp.ne.s32.totalorder %s108, %s109
    %p120 = scmp.eq.s32.totalorder %s16, 0
    %p121 = por %p119, %p120
    %p122 = scmp.ne.s32.totalorder %s108, %s109
    %p123 = scmp.eq.s32.totalorder %s17, 3
    %p124 = por %p122, %p123
    %p126 = scmp.ne.s32.totalorder %s109, %s125
    %p127 = scmp.eq.s32.totalorder %s17, 0
    %p128 = por %p126, %p127
    %s129 = ssub.s32 %s18, %s30
    %p130 = scmp.eq.s32.totalorder %s129, 0
    %s132 = sadd.s32 %s131, 1
    %s133 = scalar_select %p130, %s131, %s132
    %p136 = pneg %p130
    %p137 = scmp.eq.s32.totalorder %s11, 3
    %p138 = por %p136, %p137
    %p139 = scmp.ne.s32.totalorder %s131, %s134
    %p140 = scmp.eq.s32.totalorder %s11, 0
    %p141 = por %p139, %p140
    %p142 = scmp.ne.s32.totalorder %s131, %s134
    %p143 = scmp.eq.s32.totalorder %s16, 3
    %p144 = por %p142, %p143
    %p145 = scmp.ne.s32.totalorder %s134, %s135
    %p146 = scmp.eq.s32.totalorder %s16, 0
    %p147 = por %p145, %p146
    %p148 = scmp.ne.s32.totalorder %s134, %s135
    %p149 = scmp.eq.s32.totalorder %s17, 3
    %p150 = por %p148, %p149
    %p152 = scmp.ne.s32.totalorder %s135, %s151
    %p153 = scmp.eq.s32.totalorder %s17, 0
    %p154 = por %p152, %p153
    %p155 = scmp.le.s32.totalorder 1, %s11
    %p156 = scmp.lt.s32.totalorder %s11, 5
    %p157 = pnand %p155, %p156
    %p158 = pneg %p157
    // Predicated region
    $region9: #{residual_block_forward.3} parent=5 // pred_check
      _
    $region10: #{residual_block_forward.3} parent=5 // pred_check_branch
      %160 = sbr.rel (%p157) target = $region12
    $region11: #{residual_block_forward.3} parent=5 // pred_region
      %s161 = ssub.s32 %s11, 1
      // Predicated region
      $region13: #{residual_block_forward.3} parent=11 // pred_check
        %p162 = pneg %p72
      $region14: #{residual_block_forward.3} parent=11 // pred_check_branch
        %164 = sbr.rel (%p162) target = $region16
      $region15: #{residual_block_forward.3} parent=11 // pred_region
        _
      $region16: #{residual_block_forward.3} parent=11 // pred_fallthru
        _
      // Predicated region
      $region17: #{residual_block_forward.3} parent=11 // pred_check
        %p165 = pneg %p93
      $region18: #{residual_block_forward.3} parent=11 // pred_check_branch
        %167 = sbr.rel (%p165) target = $region20
      $region19: #{residual_block_forward.3} parent=11 // pred_region
        _
      $region20: #{residual_block_forward.3} parent=11 // pred_fallthru
        _
    $region12: #{residual_block_forward.3} parent=5 // pred_fallthru
      _
    %p168 = scmp.lt.s32.totalorder %s11, 4
    // Predicated region
    $region21: #{residual_block_forward.3} parent=5 // pred_check
      %p169 = pneg %p168
    $region22: #{residual_block_forward.3} parent=5 // pred_check_branch
      %171 = sbr.rel (%p169) target = $region24
    $region23: #{residual_block_forward.3} parent=5 // pred_region
      // Predicated region
      $region25: #{residual_block_forward.3} parent=23 // pred_check
        %p172 = pneg %p45
      $region26: #{residual_block_forward.3} parent=23 // pred_check_branch
        %174 = sbr.rel (%p172) target = $region28
      $region27: #{residual_block_forward.3} parent=23 // pred_region
        %p175 = scmp.lt.s32.totalorder %s18, 1
        %s176 = scalar_select %p175, %s18, 1
        %p177 = scmp.lt.s32.totalorder %s19, 1
        %s178 = scalar_select %p177, %s19, 1
        %s179 = smul.addr %s178, 30
        %s180 = smul.addr %s176, 60
        %s181 = sadd.s32 %s179, %s180
        %s182 = smul.addr %s181, 4
        %s183 = scalar_lea.vmem %s0, %s182
      $region28: #{residual_block_forward.3} parent=23 // pred_fallthru
        _
    $region24: #{residual_block_forward.3} parent=5 // pred_fallthru
      _
    %p184 = scmp.le.s32.totalorder 1, %s11
    %p185 = scmp.lt.s32.totalorder %s11, 5
    %p186 = pnand %p184, %p185
    %p187 = pneg %p186
    // Predicated region
    $region29: #{residual_block_forward.3} parent=5 // pred_check
      _
    $region30: #{residual_block_forward.3} parent=5 // pred_check_branch
      %189 = sbr.rel (%p186) target = $region32
    $region31: #{residual_block_forward.3} parent=5 // pred_region
      %s190 = ssub.s32 %s11, 1
      %p191 = scmp.lt.s32.totalorder %s20, 1
      %s192 = scalar_select %p191, %s20, 1
      %p193 = scmp.lt.s32.totalorder %s21, 1
      %s194 = scalar_select %p193, %s21, 1
      %s195 = smul.addr %s194, 30
      %s196 = smul.addr %s192, 60
      %s197 = sadd.s32 %s195, %s196
      %s198 = smul.addr %s197, 4
      %s199 = scalar_lea.vmem %s0, %s198
      %p200 = pneg %p51
      %p201 = pneg %p48
      %p202 = pneg %p72
      %p203 = pneg %p69
      %p204 = pneg %p93
      %p205 = pneg %p90
      %p206 = pneg %p121
      %p207 = pneg %p118
      %s208 = smul.u32 16, %s21
      %p209 = scmp.lt.s32.totalorder %s20, 1
      %s210 = scalar_select %p209, %s20, 1
      %p211 = scmp.lt.s32.totalorder %s208, 31
      %s212 = scalar_select %p211, %s208, 31
      %s213 = smul.addr %s210, 32
      %s214 = sadd.s32 %s212, %s213
      %s215 = smul.addr %s214, 8
      %s216 = scalar_lea.vmem %s3, %s215
      %p217 = pneg %p147
      %p218 = pneg %p144
      %p219 = scmp.lt.s32.totalorder %s20, 1
      %s220 = scalar_select %p219, %s20, 1
      %s221 = smul.addr %s220, 2
      %s222 = scalar_lea.vmem %s4, %s221
      %p223 = scmp.lt.s32.totalorder %s20, 1
      %s224 = scalar_select %p223, %s20, 1
      %p225 = scmp.lt.s32.totalorder %s21, 1
      %s226 = scalar_select %p225, %s21, 1
      %s227 = smul.addr %s226, 30
      %s228 = smul.addr %s224, 60
      %s229 = sadd.s32 %s227, %s228
      %s230 = smul.addr %s229, 4
      %s231 = scalar_lea.vmem %s0, %s230
      %s232 = smul.u32 16, %s21
      %p233 = scmp.lt.s32.totalorder %s20, 1
      %s234 = scalar_select %p233, %s20, 1
      %p235 = scmp.lt.s32.totalorder %s232, 31
      %s236 = scalar_select %p235, %s232, 31
      %s237 = smul.addr %s234, 32
      %s238 = sadd.s32 %s236, %s237
      %s239 = smul.addr %s238, 8
      %s240 = scalar_lea.vmem %s3, %s239
      %s241 = smul.u32 16, %s21
      %p242 = scmp.lt.s32.totalorder %s20, 1
      %s243 = scalar_select %p242, %s20, 1
      %s244 = smul.addr %s243, 2
      %s245 = scalar_lea.vmem %s4, %s244
      %v246 = vld [vmem:[%s231] sm:$0xf]
      %v247 = vld [vmem:[%s231 + $0x4] sm:$0xf]
      %v248 = vld [vmem:[%s231 + $0x8] sm:$0x1]
      %v249 = vld [vmem:[%s231 + $0xc] sm:$0xf]
      %v250 = vld [vmem:[%s231 + $0x10] sm:$0xf]
      %v251 = vld [vmem:[%s231 + $0x14] sm:$0x1]
      %v252 = vld [vmem:[%s231 + $0x18] sm:$0xf]
      %v253 = vld [vmem:[%s231 + $0x1c] sm:$0xf]
      %v254 = vld [vmem:[%s231 + $0x20] sm:$0x1]
      %v255 = vld [vmem:[%s231 + $0x24] sm:$0xf]
      %v256 = vld [vmem:[%s231 + $0x28] sm:$0xf]
      %v257 = vld [vmem:[%s231 + $0x2c] sm:$0x1]
      %v258 = vld [vmem:[%s231 + $0x30] sm:$0xf]
      %v259 = vld [vmem:[%s231 + $0x34] sm:$0xf]
      %v260 = vld [vmem:[%s231 + $0x38] sm:$0x1]
      %v261 = vld [vmem:[%s231 + $0x3c] sm:$0xf]
      %v262 = vld [vmem:[%s231 + $0x40] sm:$0xf]
      %v263 = vld [vmem:[%s231 + $0x44] sm:$0x1]
      %v264 = vld [vmem:[%s231 + $0x48] sm:$0xf]
      %v265 = vld [vmem:[%s231 + $0x4c] sm:$0xf]
      %v266 = vld [vmem:[%s231 + $0x50] sm:$0x1]
      %v267 = vld [vmem:[%s231 + $0x54] sm:$0xf]
      %v268 = vld [vmem:[%s231 + $0x58] sm:$0xf]
      %v269 = vld [vmem:[%s231 + $0x5c] sm:$0x1]
      %v270 = vld [vmem:[%s231 + $0x60] sm:$0xf]
      %v271 = vld [vmem:[%s231 + $0x64] sm:$0xf]
      %v272 = vld [vmem:[%s231 + $0x68] sm:$0x1]
      %v273 = vld [vmem:[%s231 + $0x6c] sm:$0xf]
      %v274 = vld [vmem:[%s231 + $0x70] sm:$0xf]
      %v275 = vld [vmem:[%s231 + $0x74] sm:$0x1]
      %v276 = vld [vmem:[%s1] sm:$0xf]
      %v277 = vld [vmem:[%s1 + $0x4] sm:$0xf]
      %v278 = vld [vmem:[%s1 + $0x8] sm:$0xf]
      %v279 = vld [vmem:[%s1 + $0xc] sm:$0xf]
      %v280 = vld [vmem:[%s1 + $0x10] sm:$0xf]
      %v281 = vld [vmem:[%s1 + $0x14] sm:$0xf]
      %v282 = vld [vmem:[%s1 + $0x18] sm:$0xf]
      %v283 = vld [vmem:[%s1 + $0x1c] sm:$0xf]
      %v284 = vld [vmem:[%s1 + $0x20] sm:$0xf]
      %v285 = vld [vmem:[%s1 + $0x24] sm:$0xf]
      %v286 = vld [vmem:[%s1 + $0x28] sm:$0xf]
      %v287 = vld [vmem:[%s1 + $0x2c] sm:$0xf]
      %v288 = vld [vmem:[%s1 + $0x30] sm:$0xf]
      %v289 = vld [vmem:[%s1 + $0x34] sm:$0xf]
      %v290 = vld [vmem:[%s1 + $0x38] sm:$0xf]
      %v291 = vld [vmem:[%s1 + $0x3c] sm:$0xf]
      %vm292 = vsmask.f32 3328
      %vm293 = vsmask.f32 7440
      %vm294 = vmor %vm292, %vm293
      %v296 = vshrl.u32 %v246, 16
      %v298 = vrot.slane %v296, 4
      %v299 = vshll.u32 %v246, 16
      %v301 = vrot.slane %v299, 5
      %v302 = vor.u32 %v298, %v301
      %v303 = vrot.slane %v302, 4
      %v305 = vshll.u32 %v247, 16
      %v307 = vrot.slane %v305, 5
      %v308 = vsel %vm294, %v303, %v307
      %v309 = vshrl.u32 %v247, 16
      %v311 = vrot.slane %v309, 4
      %v312 = vor.u32 %v311, %v307
      %v313 = vrot.slane %v312, 4
      %v315 = vshll.u32 %v248, 16
      %v317 = vrot.slane %v315, 5
      %v318 = vsel %vm294, %v313, %v317
      %v320 = vshrl.u32 %v249, 16
      %v322 = vrot.slane %v320, 4
      %v323 = vshll.u32 %v249, 16
      %v325 = vrot.slane %v323, 5
      %v326 = vor.u32 %v322, %v325
      %v327 = vrot.slane %v326, 4
      %v329 = vshll.u32 %v250, 16
      %v331 = vrot.slane %v329, 5
      %v332 = vsel %vm294, %v327, %v331
      %v333 = vshrl.u32 %v250, 16
      %v335 = vrot.slane %v333, 4
      %v336 = vor.u32 %v335, %v331
      %v337 = vrot.slane %v336, 4
      %v339 = vshll.u32 %v251, 16
      %v341 = vrot.slane %v339, 5
      %v342 = vsel %vm294, %v337, %v341
      %v344 = vshrl.u32 %v252, 16
      %v346 = vrot.slane %v344, 4
      %v347 = vshll.u32 %v252, 16
      %v349 = vrot.slane %v347, 5
      %v350 = vor.u32 %v346, %v349
      %v351 = vrot.slane %v350, 4
      %v353 = vshll.u32 %v253, 16
      %v355 = vrot.slane %v353, 5
      %v356 = vsel %vm294, %v351, %v355
      %v357 = vshrl.u32 %v253, 16
      %v359 = vrot.slane %v357, 4
      %v360 = vor.u32 %v359, %v355
      %v361 = vrot.slane %v360, 4
      %v363 = vshll.u32 %v254, 16
      %v365 = vrot.slane %v363, 5
      %v366 = vsel %vm294, %v361, %v365
      %v368 = vshrl.u32 %v255, 16
      %v370 = vrot.slane %v368, 4
      %v371 = vshll.u32 %v255, 16
      %v373 = vrot.slane %v371, 5
      %v374 = vor.u32 %v370, %v373
      %v375 = vrot.slane %v374, 4
      %v377 = vshll.u32 %v256, 16
      %v379 = vrot.slane %v377, 5
      %v380 = vsel %vm294, %v375, %v379
      %v381 = vshrl.u32 %v256, 16
      %v383 = vrot.slane %v381, 4
      %v384 = vor.u32 %v383, %v379
      %v385 = vrot.slane %v384, 4
      %v387 = vshll.u32 %v257, 16
      %v389 = vrot.slane %v387, 5
      %v390 = vsel %vm294, %v385, %v389
      %v392 = vshrl.u32 %v258, 16
      %v394 = vrot.slane %v392, 4
      %v395 = vshll.u32 %v258, 16
      %v397 = vrot.slane %v395, 5
      %v398 = vor.u32 %v394, %v397
      %v399 = vrot.slane %v398, 4
      %v401 = vshll.u32 %v259, 16
      %v403 = vrot.slane %v401, 5
      %v404 = vsel %vm294, %v399, %v403
      %v405 = vshrl.u32 %v259, 16
      %v407 = vrot.slane %v405, 4
      %v408 = vor.u32 %v407, %v403
      %v409 = vrot.slane %v408, 4
      %v411 = vshll.u32 %v260, 16
      %v413 = vrot.slane %v411, 5
      %v414 = vsel %vm294, %v409, %v413
      %v416 = vshrl.u32 %v261, 16
      %v418 = vrot.slane %v416, 4
      %v419 = vshll.u32 %v261, 16
      %v421 = vrot.slane %v419, 5
      %v422 = vor.u32 %v418, %v421
      %v423 = vrot.slane %v422, 4
      %v425 = vshll.u32 %v262, 16
      %v427 = vrot.slane %v425, 5
      %v428 = vsel %vm294, %v423, %v427
      %v429 = vshrl.u32 %v262, 16
      %v431 = vrot.slane %v429, 4
      %v432 = vor.u32 %v431, %v427
      %v433 = vrot.slane %v432, 4
      %v435 = vshll.u32 %v263, 16
      %v437 = vrot.slane %v435, 5
      %v438 = vsel %vm294, %v433, %v437
      %v440 = vshrl.u32 %v264, 16
      %v442 = vrot.slane %v440, 4
      %v443 = vshll.u32 %v264, 16
      %v445 = vrot.slane %v443, 5
      %v446 = vor.u32 %v442, %v445
      %v447 = vrot.slane %v446, 4
      %v449 = vshll.u32 %v265, 16
      %v451 = vrot.slane %v449, 5
      %v452 = vsel %vm294, %v447, %v451
      %v453 = vshrl.u32 %v265, 16
      %v455 = vrot.slane %v453, 4
      %v456 = vor.u32 %v455, %v451
      %v457 = vrot.slane %v456, 4
      %v459 = vshll.u32 %v266, 16
      %v461 = vrot.slane %v459, 5
      %v462 = vsel %vm294, %v457, %v461
      %v464 = vshrl.u32 %v267, 16
      %v466 = vrot.slane %v464, 4
      %v467 = vshll.u32 %v267, 16
      %v469 = vrot.slane %v467, 5
      %v470 = vor.u32 %v466, %v469
      %v471 = vrot.slane %v470, 4
      %v473 = vshll.u32 %v268, 16
      %v475 = vrot.slane %v473, 5
      %v476 = vsel %vm294, %v471, %v475
      %v477 = vshrl.u32 %v268, 16
      %v479 = vrot.slane %v477, 4
      %v480 = vor.u32 %v479, %v475
      %v481 = vrot.slane %v480, 4
      %v483 = vshll.u32 %v269, 16
      %v485 = vrot.slane %v483, 5
      %v486 = vsel %vm294, %v481, %v485
      %s487 = scalar_lea.vmem %s1, 64
      %v488 = vld [vmem:[%s487] sm:$0xf]
      %v489 = vld [vmem:[%s487 + $0x4] sm:$0xf]
      %v490 = vld [vmem:[%s487 + $0x8] sm:$0xf]
      %v491 = vld [vmem:[%s487 + $0xc] sm:$0xf]
      %v492 = vld [vmem:[%s487 + $0x10] sm:$0xf]
      %v493 = vld [vmem:[%s487 + $0x14] sm:$0xf]
      %v494 = vld [vmem:[%s487 + $0x18] sm:$0xf]
      %v495 = vld [vmem:[%s487 + $0x1c] sm:$0xf]
      %v496 = vld [vmem:[%s487 + $0x20] sm:$0xf]
      %v497 = vld [vmem:[%s487 + $0x24] sm:$0xf]
      %v498 = vld [vmem:[%s487 + $0x28] sm:$0xf]
      %v499 = vld [vmem:[%s487 + $0x2c] sm:$0xf]
      %v500 = vld [vmem:[%s487 + $0x30] sm:$0xf]
      %v501 = vld [vmem:[%s487 + $0x34] sm:$0xf]
      %v502 = vld [vmem:[%s487 + $0x38] sm:$0xf]
      %v503 = vld [vmem:[%s487 + $0x3c] sm:$0xf]
      %v504 = vunpack.c.l.b16 %v308
      %v505 = vunpack.c.l.b16 %v318
      %v506 = vunpack.c.l.b16 %v332
      %v507 = vunpack.c.l.b16 %v342
      %v508 = vunpack.c.l.b16 %v356
      %v509 = vunpack.c.l.b16 %v366
      %v510 = vunpack.c.l.b16 %v380
      %v511 = vunpack.c.l.b16 %v390
      %v512 = vunpack.c.l.b16 %v404
      %v513 = vunpack.c.l.b16 %v414
      %v514 = vunpack.c.l.b16 %v428
      %v515 = vunpack.c.l.b16 %v438
      %v516 = vunpack.c.l.b16 %v452
      %v517 = vunpack.c.l.b16 %v462
      %v518 = vunpack.c.l.b16 %v476
      %v519 = vunpack.c.l.b16 %v486
      %v520 = vpack.c.b16 %v505, %v504
      %v521 = vpack.c.b16 %v507, %v506
      %v522 = vpack.c.b16 %v509, %v508
      %v523 = vpack.c.b16 %v511, %v510
      %v524 = vpack.c.b16 %v513, %v512
      %v525 = vpack.c.b16 %v515, %v514
      %v526 = vpack.c.b16 %v517, %v516
      %v527 = vpack.c.b16 %v519, %v518
      %v552 = vunpack.c.l.b16 %v488
      %v553 = vunpack.c.l.b16 %v489
      %v554 = vunpack.c.l.b16 %v490
      %v555 = vunpack.c.l.b16 %v491
      %v556 = vunpack.c.l.b16 %v492
      %v557 = vunpack.c.l.b16 %v493
      %v558 = vunpack.c.l.b16 %v494
      %v559 = vunpack.c.l.b16 %v495
      %v560 = vunpack.c.l.b16 %v496
      %v561 = vunpack.c.l.b16 %v497
      %v562 = vunpack.c.l.b16 %v498
      %v563 = vunpack.c.l.b16 %v499
      %v564 = vunpack.c.l.b16 %v500
      %v565 = vunpack.c.l.b16 %v501
      %v566 = vunpack.c.l.b16 %v502
      %v567 = vunpack.c.l.b16 %v503
      %v568 = vpack.c.b16 %v553, %v552
      %v569 = vpack.c.b16 %v555, %v554
      %v570 = vpack.c.b16 %v557, %v556
      %v571 = vpack.c.b16 %v559, %v558
      %v572 = vpack.c.b16 %v561, %v560
      %v573 = vpack.c.b16 %v563, %v562
      %v574 = vpack.c.b16 %v565, %v564
      %v575 = vpack.c.b16 %v567, %v566
      %584 = vmatpush.bf16.msra.mxu0 %v575
      %585 = vmatpush.bf16.msra.mxu0 %v574
      %586 = vmatpush.bf16.msra.mxu0 %v573
      %587 = vmatpush.bf16.msra.mxu0 %v572
      %588 = vmatpush.bf16.msra.mxu0 %v571
      %589 = vmatpush.bf16.msra.mxu0 %v570
      %590 = vmatpush.bf16.msra.mxu0 %v569
      %591 = vmatpush.bf16.msra.mxu0 %v568
      %592 = vmatmul.bf16.gmra.mxu0 %v520
      %v593 = vpop.f32.mrf.mxu0
      %v594 = vadd.f32 0.0, %v593
      %v595 = vpop.f32.mrf.mxu0
      %v596 = vadd.f32 0.0, %v595
      %597 = vmatmul.bf16.gmra.mxu0 %v521
      %v598 = vpop.f32.mrf.mxu0
      %v599 = vadd.f32 0.0, %v598
      %v600 = vpop.f32.mrf.mxu0
      %v601 = vadd.f32 0.0, %v600
      %602 = vmatmul.bf16.gmra.mxu0 %v522
      %v603 = vpop.f32.mrf.mxu0
      %v604 = vadd.f32 0.0, %v603
      %v605 = vpop.f32.mrf.mxu0
      %v606 = vadd.f32 0.0, %v605
      %607 = vmatmul.bf16.gmra.mxu0 %v523
      %v608 = vpop.f32.mrf.mxu0
      %v609 = vadd.f32 0.0, %v608
      %v610 = vpop.f32.mrf.mxu0
      %v611 = vadd.f32 0.0, %v610
      %612 = vmatmul.bf16.gmra.mxu0 %v524
      %v613 = vpop.f32.mrf.mxu0
      %v614 = vadd.f32 0.0, %v613
      %v615 = vpop.f32.mrf.mxu0
      %v616 = vadd.f32 0.0, %v615
      %617 = vmatmul.bf16.gmra.mxu0 %v525
      %v618 = vpop.f32.mrf.mxu0
      %v619 = vadd.f32 0.0, %v618
      %v620 = vpop.f32.mrf.mxu0
      %v621 = vadd.f32 0.0, %v620
      %622 = vmatmul.bf16.gmra.mxu0 %v526
      %v623 = vpop.f32.mrf.mxu0
      %v624 = vadd.f32 0.0, %v623
      %v625 = vpop.f32.mrf.mxu0
      %v626 = vadd.f32 0.0, %v625
      %627 = vmatmul.bf16.gmra.mxu0 %v527
      %v628 = vpop.f32.mrf.mxu0
      %v629 = vadd.f32 0.0, %v628
      %v630 = vpop.f32.mrf.mxu0
      %v631 = vadd.f32 0.0, %v630
      %632 = vdwg.mxu0
      %v649 = vunpack.c.l.b16 %v246
      %v650 = vunpack.c.l.b16 %v247
      %v651 = vunpack.c.l.b16 %v249
      %v652 = vunpack.c.l.b16 %v250
      %v653 = vunpack.c.l.b16 %v252
      %v654 = vunpack.c.l.b16 %v253
      %v655 = vunpack.c.l.b16 %v255
      %v656 = vunpack.c.l.b16 %v256
      %v657 = vunpack.c.l.b16 %v258
      %v658 = vunpack.c.l.b16 %v259
      %v659 = vunpack.c.l.b16 %v261
      %v660 = vunpack.c.l.b16 %v262
      %v661 = vunpack.c.l.b16 %v264
      %v662 = vunpack.c.l.b16 %v265
      %v663 = vunpack.c.l.b16 %v267
      %v664 = vunpack.c.l.b16 %v268
      %v665 = vpack.c.b16 %v650, %v649
      %v666 = vpack.c.b16 %v652, %v651
      %v667 = vpack.c.b16 %v654, %v653
      %v668 = vpack.c.b16 %v656, %v655
      %v669 = vpack.c.b16 %v658, %v657
      %v670 = vpack.c.b16 %v660, %v659
      %v671 = vpack.c.b16 %v662, %v661
      %v672 = vpack.c.b16 %v664, %v663
      %v697 = vunpack.c.l.b16 %v276
      %v698 = vunpack.c.l.b16 %v277
      %v699 = vunpack.c.l.b16 %v278
      %v700 = vunpack.c.l.b16 %v279
      %v701 = vunpack.c.l.b16 %v280
      %v702 = vunpack.c.l.b16 %v281
      %v703 = vunpack.c.l.b16 %v282
      %v704 = vunpack.c.l.b16 %v283
      %v705 = vunpack.c.l.b16 %v284
      %v706 = vunpack.c.l.b16 %v285
      %v707 = vunpack.c.l.b16 %v286
      %v708 = vunpack.c.l.b16 %v287
      %v709 = vunpack.c.l.b16 %v288
      %v710 = vunpack.c.l.b16 %v289
      %v711 = vunpack.c.l.b16 %v290
      %v712 = vunpack.c.l.b16 %v291
      %v713 = vpack.c.b16 %v698, %v697
      %v714 = vpack.c.b16 %v700, %v699
      %v715 = vpack.c.b16 %v702, %v701
      %v716 = vpack.c.b16 %v704, %v703
      %v717 = vpack.c.b16 %v706, %v705
      %v718 = vpack.c.b16 %v708, %v707
      %v719 = vpack.c.b16 %v710, %v709
      %v720 = vpack.c.b16 %v712, %v711
      %729 = vmatpush.bf16.msra.mxu0 %v720
      %730 = vmatpush.bf16.msra.mxu0 %v719
      %731 = vmatpush.bf16.msra.mxu0 %v718
      %732 = vmatpush.bf16.msra.mxu0 %v717
      %733 = vmatpush.bf16.msra.mxu0 %v716
      %734 = vmatpush.bf16.msra.mxu0 %v715
      %735 = vmatpush.bf16.msra.mxu0 %v714
      %736 = vmatpush.bf16.msra.mxu0 %v713
      %737 = vmatmul.bf16.gmra.mxu0 %v665
      %v738 = vpop.f32.mrf.mxu0
      %v739 = vadd.f32 %v594, %v738
      %v740 = vpop.f32.mrf.mxu0
      %v741 = vadd.f32 %v596, %v740
      %742 = vmatmul.bf16.gmra.mxu0 %v666
      %v743 = vpop.f32.mrf.mxu0
      %v744 = vadd.f32 %v599, %v743
      %v745 = vpop.f32.mrf.mxu0
      %v746 = vadd.f32 %v601, %v745
      %747 = vmatmul.bf16.gmra.mxu0 %v667
      %v748 = vpop.f32.mrf.mxu0
      %v749 = vadd.f32 %v604, %v748
      %v750 = vpop.f32.mrf.mxu0
      %v751 = vadd.f32 %v606, %v750
      %752 = vmatmul.bf16.gmra.mxu0 %v668
      %v753 = vpop.f32.mrf.mxu0
      %v754 = vadd.f32 %v609, %v753
      %v755 = vpop.f32.mrf.mxu0
      %v756 = vadd.f32 %v611, %v755
      %757 = vmatmul.bf16.gmra.mxu0 %v669
      %v758 = vpop.f32.mrf.mxu0
      %v759 = vadd.f32 %v614, %v758
      %v760 = vpop.f32.mrf.mxu0
      %v761 = vadd.f32 %v616, %v760
      %762 = vmatmul.bf16.gmra.mxu0 %v670
      %v763 = vpop.f32.mrf.mxu0
      %v764 = vadd.f32 %v619, %v763
      %v765 = vpop.f32.mrf.mxu0
      %v766 = vadd.f32 %v621, %v765
      %767 = vmatmul.bf16.gmra.mxu0 %v671
      %v768 = vpop.f32.mrf.mxu0
      %v769 = vadd.f32 %v624, %v768
      %v770 = vpop.f32.mrf.mxu0
      %v771 = vadd.f32 %v626, %v770
      %772 = vmatmul.bf16.gmra.mxu0 %v672
      %v773 = vpop.f32.mrf.mxu0
      %v774 = vadd.f32 %v629, %v773
      %v775 = vpop.f32.mrf.mxu0
      %v776 = vadd.f32 %v631, %v775
      %777 = vdwg.mxu0
      %vm786 = vcmask 1042432
      %vm787 = vcmask 1046532
      %vm788 = vmor %vm786, %vm787
      %v789 = vrot.slane %v246, 5
      %v790 = vrot.slane %v789, 4
      %v791 = vrot.slane %v247, 5
      %v792 = vsel %vm788, %v790, %v791
      %v793 = vrot.slane %v791, 4
      %v794 = vrot.slane %v248, 5
      %v795 = vsel %vm788, %v793, %v794
      %v796 = vrot.slane %v249, 5
      %v797 = vrot.slane %v796, 4
      %v798 = vrot.slane %v250, 5
      %v799 = vsel %vm788, %v797, %v798
      %v800 = vrot.slane %v798, 4
      %v801 = vrot.slane %v251, 5
      %v802 = vsel %vm788, %v800, %v801
      %v803 = vrot.slane %v252, 5
      %v804 = vrot.slane %v803, 4
      %v805 = vrot.slane %v253, 5
      %v806 = vsel %vm788, %v804, %v805
      %v807 = vrot.slane %v805, 4
      %v808 = vrot.slane %v254, 5
      %v809 = vsel %vm788, %v807, %v808
      %v810 = vrot.slane %v255, 5
      %v811 = vrot.slane %v810, 4
      %v812 = vrot.slane %v256, 5
      %v813 = vsel %vm788, %v811, %v812
      %v814 = vrot.slane %v812, 4
      %v815 = vrot.slane %v257, 5
      %v816 = vsel %vm788, %v814, %v815
      %v817 = vrot.slane %v258, 5
      %v818 = vrot.slane %v817, 4
      %v819 = vrot.slane %v259, 5
      %v820 = vsel %vm788, %v818, %v819
      %v821 = vrot.slane %v819, 4
      %v822 = vrot.slane %v260, 5
      %v823 = vsel %vm788, %v821, %v822
      %v824 = vrot.slane %v261, 5
      %v825 = vrot.slane %v824, 4
      %v826 = vrot.slane %v262, 5
      %v827 = vsel %vm788, %v825, %v826
      %v828 = vrot.slane %v826, 4
      %v829 = vrot.slane %v263, 5
      %v830 = vsel %vm788, %v828, %v829
      %v831 = vrot.slane %v264, 5
      %v832 = vrot.slane %v831, 4
      %v833 = vrot.slane %v265, 5
      %v834 = vsel %vm788, %v832, %v833
      %v835 = vrot.slane %v833, 4
      %v836 = vrot.slane %v266, 5
      %v837 = vsel %vm788, %v835, %v836
      %v838 = vrot.slane %v267, 5
      %v839 = vrot.slane %v838, 4
      %v840 = vrot.slane %v268, 5
      %v841 = vsel %vm788, %v839, %v840
      %v842 = vrot.slane %v840, 4
      %v843 = vrot.slane %v269, 5
      %v844 = vsel %vm788, %v842, %v843
      %s845 = scalar_lea.vmem %s1, 128
      %v846 = vld [vmem:[%s845] sm:$0xf]
      %v847 = vld [vmem:[%s845 + $0x4] sm:$0xf]
      %v848 = vld [vmem:[%s845 + $0x8] sm:$0xf]
      %v849 = vld [vmem:[%s845 + $0xc] sm:$0xf]
      %v850 = vld [vmem:[%s845 + $0x10] sm:$0xf]
      %v851 = vld [vmem:[%s845 + $0x14] sm:$0xf]
      %v852 = vld [vmem:[%s845 + $0x18] sm:$0xf]
      %v853 = vld [vmem:[%s845 + $0x1c] sm:$0xf]
      %v854 = vld [vmem:[%s845 + $0x20] sm:$0xf]
      %v855 = vld [vmem:[%s845 + $0x24] sm:$0xf]
      %v856 = vld [vmem:[%s845 + $0x28] sm:$0xf]
      %v857 = vld [vmem:[%s845 + $0x2c] sm:$0xf]
      %v858 = vld [vmem:[%s845 + $0x30] sm:$0xf]
      %v859 = vld [vmem:[%s845 + $0x34] sm:$0xf]
      %v860 = vld [vmem:[%s845 + $0x38] sm:$0xf]
      %v861 = vld [vmem:[%s845 + $0x3c] sm:$0xf]
      %v862 = vunpack.c.l.b16 %v792
      %v863 = vunpack.c.l.b16 %v795
      %v864 = vunpack.c.l.b16 %v799
      %v865 = vunpack.c.l.b16 %v802
      %v866 = vunpack.c.l.b16 %v806
      %v867 = vunpack.c.l.b16 %v809
      %v868 = vunpack.c.l.b16 %v813
      %v869 = vunpack.c.l.b16 %v816
      %v870 = vunpack.c.l.b16 %v820
      %v871 = vunpack.c.l.b16 %v823
      %v872 = vunpack.c.l.b16 %v827
      %v873 = vunpack.c.l.b16 %v830
      %v874 = vunpack.c.l.b16 %v834
      %v875 = vunpack.c.l.b16 %v837
      %v876 = vunpack.c.l.b16 %v841
      %v877 = vunpack.c.l.b16 %v844
      %v878 = vpack.c.b16 %v863, %v862
      %v879 = vpack.c.b16 %v865, %v864
      %v880 = vpack.c.b16 %v867, %v866
      %v881 = vpack.c.b16 %v869, %v868
      %v882 = vpack.c.b16 %v871, %v870
      %v883 = vpack.c.b16 %v873, %v872
      %v884 = vpack.c.b16 %v875, %v874
      %v885 = vpack.c.b16 %v877, %v876
      %v910 = vunpack.c.l.b16 %v846
      %v911 = vunpack.c.l.b16 %v847
      %v912 = vunpack.c.l.b16 %v848
      %v913 = vunpack.c.l.b16 %v849
      %v914 = vunpack.c.l.b16 %v850
      %v915 = vunpack.c.l.b16 %v851
      %v916 = vunpack.c.l.b16 %v852
      %v917 = vunpack.c.l.b16 %v853
      %v918 = vunpack.c.l.b16 %v854
      %v919 = vunpack.c.l.b16 %v855
      %v920 = vunpack.c.l.b16 %v856
      %v921 = vunpack.c.l.b16 %v857
      %v922 = vunpack.c.l.b16 %v858
      %v923 = vunpack.c.l.b16 %v859
      %v924 = vunpack.c.l.b16 %v860
      %v925 = vunpack.c.l.b16 %v861
      %v926 = vpack.c.b16 %v911, %v910
      %v927 = vpack.c.b16 %v913, %v912
      %v928 = vpack.c.b16 %v915, %v914
      %v929 = vpack.c.b16 %v917, %v916
      %v930 = vpack.c.b16 %v919, %v918
      %v931 = vpack.c.b16 %v921, %v920
      %v932 = vpack.c.b16 %v923, %v922
      %v933 = vpack.c.b16 %v925, %v924
      %942 = vmatpush.bf16.msra.mxu0 %v933
      %943 = vmatpush.bf16.msra.mxu0 %v932
      %944 = vmatpush.bf16.msra.mxu0 %v931
      %945 = vmatpush.bf16.msra.mxu0 %v930
      %946 = vmatpush.bf16.msra.mxu0 %v929
      %947 = vmatpush.bf16.msra.mxu0 %v928
      %948 = vmatpush.bf16.msra.mxu0 %v927
      %949 = vmatpush.bf16.msra.mxu0 %v926
      %950 = vmatmul.bf16.gmra.mxu0 %v878
      %v951 = vpop.f32.mrf.mxu0
      %v952 = vadd.f32 0.0, %v951
      %v953 = vpop.f32.mrf.mxu0
      %v954 = vadd.f32 0.0, %v953
      %955 = vmatmul.bf16.gmra.mxu0 %v879
      %v956 = vpop.f32.mrf.mxu0
      %v957 = vadd.f32 0.0, %v956
      %v958 = vpop.f32.mrf.mxu0
      %v959 = vadd.f32 0.0, %v958
      %960 = vmatmul.bf16.gmra.mxu0 %v880
      %v961 = vpop.f32.mrf.mxu0
      %v962 = vadd.f32 0.0, %v961
      %v963 = vpop.f32.mrf.mxu0
      %v964 = vadd.f32 0.0, %v963
      %965 = vmatmul.bf16.gmra.mxu0 %v881
      %v966 = vpop.f32.mrf.mxu0
      %v967 = vadd.f32 0.0, %v966
      %v968 = vpop.f32.mrf.mxu0
      %v969 = vadd.f32 0.0, %v968
      %970 = vmatmul.bf16.gmra.mxu0 %v882
      %v971 = vpop.f32.mrf.mxu0
      %v972 = vadd.f32 0.0, %v971
      %v973 = vpop.f32.mrf.mxu0
      %v974 = vadd.f32 0.0, %v973
      %975 = vmatmul.bf16.gmra.mxu0 %v883
      %v976 = vpop.f32.mrf.mxu0
      %v977 = vadd.f32 0.0, %v976
      %v978 = vpop.f32.mrf.mxu0
      %v979 = vadd.f32 0.0, %v978
      %980 = vmatmul.bf16.gmra.mxu0 %v884
      %v981 = vpop.f32.mrf.mxu0
      %v982 = vadd.f32 0.0, %v981
      %v983 = vpop.f32.mrf.mxu0
      %v984 = vadd.f32 0.0, %v983
      %985 = vmatmul.bf16.gmra.mxu0 %v885
      %v986 = vpop.f32.mrf.mxu0
      %v987 = vadd.f32 0.0, %v986
      %v988 = vpop.f32.mrf.mxu0
      %v989 = vadd.f32 0.0, %v988
      %990 = vdwg.mxu0
      %v991 = vadd.f32 %v739, %v952
      %v992 = vadd.f32 %v741, %v954
      %v993 = vadd.f32 %v744, %v957
      %v994 = vadd.f32 %v746, %v959
      %v995 = vadd.f32 %v749, %v962
      %v996 = vadd.f32 %v751, %v964
      %v997 = vadd.f32 %v754, %v967
      %v998 = vadd.f32 %v756, %v969
      %v999 = vadd.f32 %v759, %v972
      %v1000 = vadd.f32 %v761, %v974
      %v1001 = vadd.f32 %v764, %v977
      %v1002 = vadd.f32 %v766, %v979
      %v1003 = vadd.f32 %v769, %v982
      %v1004 = vadd.f32 %v771, %v984
      %v1005 = vadd.f32 %v774, %v987
      %v1006 = vadd.f32 %v776, %v989
      %s1007 = scalar_lea.vmem %s1, 192
      %v1008 = vld [vmem:[%s1007] sm:$0xf]
      %v1009 = vld [vmem:[%s1007 + $0x4] sm:$0xf]
      %v1010 = vld [vmem:[%s1007 + $0x8] sm:$0xf]
      %v1011 = vld [vmem:[%s1007 + $0xc] sm:$0xf]
      %v1012 = vld [vmem:[%s1007 + $0x10] sm:$0xf]
      %v1013 = vld [vmem:[%s1007 + $0x14] sm:$0xf]
      %v1014 = vld [vmem:[%s1007 + $0x18] sm:$0xf]
      %v1015 = vld [vmem:[%s1007 + $0x1c] sm:$0xf]
      %v1016 = vld [vmem:[%s1007 + $0x20] sm:$0xf]
      %v1017 = vld [vmem:[%s1007 + $0x24] sm:$0xf]
      %v1018 = vld [vmem:[%s1007 + $0x28] sm:$0xf]
      %v1019 = vld [vmem:[%s1007 + $0x2c] sm:$0xf]
      %v1020 = vld [vmem:[%s1007 + $0x30] sm:$0xf]
      %v1021 = vld [vmem:[%s1007 + $0x34] sm:$0xf]
      %v1022 = vld [vmem:[%s1007 + $0x38] sm:$0xf]
      %v1023 = vld [vmem:[%s1007 + $0x3c] sm:$0xf]
      %v1026 = vunpack.c.l.b16 %v270
      %v1027 = vunpack.c.l.b16 %v271
      %v1028 = vpack.c.b16 %v1027, %v1026
      %v1046 = vunpack.c.l.b16 %v1008
      %v1047 = vunpack.c.l.b16 %v1009
      %v1048 = vunpack.c.l.b16 %v1010
      %v1049 = vunpack.c.l.b16 %v1011
      %v1050 = vunpack.c.l.b16 %v1012
      %v1051 = vunpack.c.l.b16 %v1013
      %v1052 = vunpack.c.l.b16 %v1014
      %v1053 = vunpack.c.l.b16 %v1015
      %v1054 = vunpack.c.l.b16 %v1016
      %v1055 = vunpack.c.l.b16 %v1017
      %v1056 = vunpack.c.l.b16 %v1018
      %v1057 = vunpack.c.l.b16 %v1019
      %v1058 = vunpack.c.l.b16 %v1020
      %v1059 = vunpack.c.l.b16 %v1021
      %v1060 = vunpack.c.l.b16 %v1022
      %v1061 = vunpack.c.l.b16 %v1023
      %v1062 = vpack.c.b16 %v1047, %v1046
      %v1063 = vpack.c.b16 %v1049, %v1048
      %v1064 = vpack.c.b16 %v1051, %v1050
      %v1065 = vpack.c.b16 %v1053, %v1052
      %v1066 = vpack.c.b16 %v1055, %v1054
      %v1067 = vpack.c.b16 %v1057, %v1056
      %v1068 = vpack.c.b16 %v1059, %v1058
      %v1069 = vpack.c.b16 %v1061, %v1060
      %1078 = vmatpush.bf16.msra.mxu0 %v1069
      %1079 = vmatpush.bf16.msra.mxu0 %v1068
      %1080 = vmatpush.bf16.msra.mxu0 %v1067
      %1081 = vmatpush.bf16.msra.mxu0 %v1066
      %1082 = vmatpush.bf16.msra.mxu0 %v1065
      %1083 = vmatpush.bf16.msra.mxu0 %v1064
      %1084 = vmatpush.bf16.msra.mxu0 %v1063
      %1085 = vmatpush.bf16.msra.mxu0 %v1062
      %1086 = vmatmul.bf16.gmra.mxu0 %v666
      %v1087 = vpop.f32.mrf.mxu0
      %v1088 = vadd.f32 0.0, %v1087
      %v1089 = vpop.f32.mrf.mxu0
      %v1090 = vadd.f32 0.0, %v1089
      %1091 = vmatmul.bf16.gmra.mxu0 %v667
      %v1092 = vpop.f32.mrf.mxu0
      %v1093 = vadd.f32 0.0, %v1092
      %v1094 = vpop.f32.mrf.mxu0
      %v1095 = vadd.f32 0.0, %v1094
      %1096 = vmatmul.bf16.gmra.mxu0 %v668
      %v1097 = vpop.f32.mrf.mxu0
      %v1098 = vadd.f32 0.0, %v1097
      %v1099 = vpop.f32.mrf.mxu0
      %v1100 = vadd.f32 0.0, %v1099
      %1101 = vmatmul.bf16.gmra.mxu0 %v669
      %v1102 = vpop.f32.mrf.mxu0
      %v1103 = vadd.f32 0.0, %v1102
      %v1104 = vpop.f32.mrf.mxu0
      %v1105 = vadd.f32 0.0, %v1104
      %1106 = vmatmul.bf16.gmra.mxu0 %v670
      %v1107 = vpop.f32.mrf.mxu0
      %v1108 = vadd.f32 0.0, %v1107
      %v1109 = vpop.f32.mrf.mxu0
      %v1110 = vadd.f32 0.0, %v1109
      %1111 = vmatmul.bf16.gmra.mxu0 %v671
      %v1112 = vpop.f32.mrf.mxu0
      %v1113 = vadd.f32 0.0, %v1112
      %v1114 = vpop.f32.mrf.mxu0
      %v1115 = vadd.f32 0.0, %v1114
      %1116 = vmatmul.bf16.gmra.mxu0 %v672
      %v1117 = vpop.f32.mrf.mxu0
      %v1118 = vadd.f32 0.0, %v1117
      %v1119 = vpop.f32.mrf.mxu0
      %v1120 = vadd.f32 0.0, %v1119
      %1121 = vmatmul.bf16.gmra.mxu0 %v1028
      %v1122 = vpop.f32.mrf.mxu0
      %v1123 = vadd.f32 0.0, %v1122
      %v1124 = vpop.f32.mrf.mxu0
      %v1125 = vadd.f32 0.0, %v1124
      %1126 = vdwg.mxu0
      %v1127 = vadd.f32 %v991, %v1088
      %v1128 = vadd.f32 %v992, %v1090
      %v1129 = vadd.f32 %v993, %v1093
      %v1130 = vadd.f32 %v994, %v1095
      %v1131 = vadd.f32 %v995, %v1098
      %v1132 = vadd.f32 %v996, %v1100
      %v1133 = vadd.f32 %v997, %v1103
      %v1134 = vadd.f32 %v998, %v1105
      %v1135 = vadd.f32 %v999, %v1108
      %v1136 = vadd.f32 %v1000, %v1110
      %v1137 = vadd.f32 %v1001, %v1113
      %v1138 = vadd.f32 %v1002, %v1115
      %v1139 = vadd.f32 %v1003, %v1118
      %v1140 = vadd.f32 %v1004, %v1120
      %v1141 = vadd.f32 %v1005, %v1123
      %v1142 = vadd.f32 %v1006, %v1125
      %v1144 = vshrl.u32 %v270, 16
      %v1146 = vrot.slane %v1144, 4
      %v1147 = vshll.u32 %v270, 16
      %v1149 = vrot.slane %v1147, 5
      %v1150 = vor.u32 %v1146, %v1149
      %v1151 = vrot.slane %v1150, 4
      %v1153 = vshll.u32 %v271, 16
      %v1155 = vrot.slane %v1153, 5
      %v1156 = vsel %vm294, %v1151, %v1155
      %v1157 = vshrl.u32 %v271, 16
      %v1159 = vrot.slane %v1157, 4
      %v1160 = vor.u32 %v1159, %v1155
      %v1161 = vrot.slane %v1160, 4
      %v1163 = vshll.u32 %v272, 16
      %v1165 = vrot.slane %v1163, 5
      %v1166 = vsel %vm294, %v1161, %v1165
      %s1167 = scalar_lea.vmem %s1, 256
      %v1168 = vld [vmem:[%s1167] sm:$0xf]
      %v1169 = vld [vmem:[%s1167 + $0x4] sm:$0xf]
      %v1170 = vld [vmem:[%s1167 + $0x8] sm:$0xf]
      %v1171 = vld [vmem:[%s1167 + $0xc] sm:$0xf]
      %v1172 = vld [vmem:[%s1167 + $0x10] sm:$0xf]
      %v1173 = vld [vmem:[%s1167 + $0x14] sm:$0xf]
      %v1174 = vld [vmem:[%s1167 + $0x18] sm:$0xf]
      %v1175 = vld [vmem:[%s1167 + $0x1c] sm:$0xf]
      %v1176 = vld [vmem:[%s1167 + $0x20] sm:$0xf]
      %v1177 = vld [vmem:[%s1167 + $0x24] sm:$0xf]
      %v1178 = vld [vmem:[%s1167 + $0x28] sm:$0xf]
      %v1179 = vld [vmem:[%s1167 + $0x2c] sm:$0xf]
      %v1180 = vld [vmem:[%s1167 + $0x30] sm:$0xf]
      %v1181 = vld [vmem:[%s1167 + $0x34] sm:$0xf]
      %v1182 = vld [vmem:[%s1167 + $0x38] sm:$0xf]
      %v1183 = vld [vmem:[%s1167 + $0x3c] sm:$0xf]
      %v1184 = vunpack.c.l.b16 %v1156
      %v1185 = vunpack.c.l.b16 %v1166
      %v1186 = vpack.c.b16 %v1185, %v1184
      %v1204 = vunpack.c.l.b16 %v1168
      %v1205 = vunpack.c.l.b16 %v1169
      %v1206 = vunpack.c.l.b16 %v1170
      %v1207 = vunpack.c.l.b16 %v1171
      %v1208 = vunpack.c.l.b16 %v1172
      %v1209 = vunpack.c.l.b16 %v1173
      %v1210 = vunpack.c.l.b16 %v1174
      %v1211 = vunpack.c.l.b16 %v1175
      %v1212 = vunpack.c.l.b16 %v1176
      %v1213 = vunpack.c.l.b16 %v1177
      %v1214 = vunpack.c.l.b16 %v1178
      %v1215 = vunpack.c.l.b16 %v1179
      %v1216 = vunpack.c.l.b16 %v1180
      %v1217 = vunpack.c.l.b16 %v1181
      %v1218 = vunpack.c.l.b16 %v1182
      %v1219 = vunpack.c.l.b16 %v1183
      %v1220 = vpack.c.b16 %v1205, %v1204
      %v1221 = vpack.c.b16 %v1207, %v1206
      %v1222 = vpack.c.b16 %v1209, %v1208
      %v1223 = vpack.c.b16 %v1211, %v1210
      %v1224 = vpack.c.b16 %v1213, %v1212
      %v1225 = vpack.c.b16 %v1215, %v1214
      %v1226 = vpack.c.b16 %v1217, %v1216
      %v1227 = vpack.c.b16 %v1219, %v1218
      %1236 = vmatpush.bf16.msra.mxu0 %v1227
      %1237 = vmatpush.bf16.msra.mxu0 %v1226
      %1238 = vmatpush.bf16.msra.mxu0 %v1225
      %1239 = vmatpush.bf16.msra.mxu0 %v1224
      %1240 = vmatpush.bf16.msra.mxu0 %v1223
      %1241 = vmatpush.bf16.msra.mxu0 %v1222
      %1242 = vmatpush.bf16.msra.mxu0 %v1221
      %1243 = vmatpush.bf16.msra.mxu0 %v1220
      %1244 = vmatmul.bf16.gmra.mxu0 %v521
      %v1245 = vpop.f32.mrf.mxu0
      %v1246 = vadd.f32 0.0, %v1245
      %v1247 = vpop.f32.mrf.mxu0
      %v1248 = vadd.f32 0.0, %v1247
      %1249 = vmatmul.bf16.gmra.mxu0 %v522
      %v1250 = vpop.f32.mrf.mxu0
      %v1251 = vadd.f32 0.0, %v1250
      %v1252 = vpop.f32.mrf.mxu0
      %v1253 = vadd.f32 0.0, %v1252
      %1254 = vmatmul.bf16.gmra.mxu0 %v523
      %v1255 = vpop.f32.mrf.mxu0
      %v1256 = vadd.f32 0.0, %v1255
      %v1257 = vpop.f32.mrf.mxu0
      %v1258 = vadd.f32 0.0, %v1257
      %1259 = vmatmul.bf16.gmra.mxu0 %v524
      %v1260 = vpop.f32.mrf.mxu0
      %v1261 = vadd.f32 0.0, %v1260
      %v1262 = vpop.f32.mrf.mxu0
      %v1263 = vadd.f32 0.0, %v1262
      %1264 = vmatmul.bf16.gmra.mxu0 %v525
      %v1265 = vpop.f32.mrf.mxu0
      %v1266 = vadd.f32 0.0, %v1265
      %v1267 = vpop.f32.mrf.mxu0
      %v1268 = vadd.f32 0.0, %v1267
      %1269 = vmatmul.bf16.gmra.mxu0 %v526
      %v1270 = vpop.f32.mrf.mxu0
      %v1271 = vadd.f32 0.0, %v1270
      %v1272 = vpop.f32.mrf.mxu0
      %v1273 = vadd.f32 0.0, %v1272
      %1274 = vmatmul.bf16.gmra.mxu0 %v527
      %v1275 = vpop.f32.mrf.mxu0
      %v1276 = vadd.f32 0.0, %v1275
      %v1277 = vpop.f32.mrf.mxu0
      %v1278 = vadd.f32 0.0, %v1277
      %1279 = vmatmul.bf16.gmra.mxu0 %v1186
      %v1280 = vpop.f32.mrf.mxu0
      %v1281 = vadd.f32 0.0, %v1280
      %v1282 = vpop.f32.mrf.mxu0
      %v1283 = vadd.f32 0.0, %v1282
      %1284 = vdwg.mxu0
      %v1285 = vadd.f32 %v1127, %v1246
      %v1286 = vadd.f32 %v1128, %v1248
      %v1287 = vadd.f32 %v1129, %v1251
      %v1288 = vadd.f32 %v1130, %v1253
      %v1289 = vadd.f32 %v1131, %v1256
      %v1290 = vadd.f32 %v1132, %v1258
      %v1291 = vadd.f32 %v1133, %v1261
      %v1292 = vadd.f32 %v1134, %v1263
      %v1293 = vadd.f32 %v1135, %v1266
      %v1294 = vadd.f32 %v1136, %v1268
      %v1295 = vadd.f32 %v1137, %v1271
      %v1296 = vadd.f32 %v1138, %v1273
      %v1297 = vadd.f32 %v1139, %v1276
      %v1298 = vadd.f32 %v1140, %v1278
      %v1299 = vadd.f32 %v1141, %v1281
      %v1300 = vadd.f32 %v1142, %v1283
      %v1302 = vrot.slane %v270, 5
      %v1303 = vrot.slane %v1302, 4
      %v1304 = vrot.slane %v271, 5
      %v1305 = vsel %vm788, %v1303, %v1304
      %v1306 = vrot.slane %v1304, 4
      %v1307 = vrot.slane %v272, 5
      %v1308 = vsel %vm788, %v1306, %v1307
      %s1309 = scalar_lea.vmem %s1, 320
      %v1310 = vld [vmem:[%s1309] sm:$0xf]
      %v1311 = vld [vmem:[%s1309 + $0x4] sm:$0xf]
      %v1312 = vld [vmem:[%s1309 + $0x8] sm:$0xf]
      %v1313 = vld [vmem:[%s1309 + $0xc] sm:$0xf]
      %v1314 = vld [vmem:[%s1309 + $0x10] sm:$0xf]
      %v1315 = vld [vmem:[%s1309 + $0x14] sm:$0xf]
      %v1316 = vld [vmem:[%s1309 + $0x18] sm:$0xf]
      %v1317 = vld [vmem:[%s1309 + $0x1c] sm:$0xf]
      %v1318 = vld [vmem:[%s1309 + $0x20] sm:$0xf]
      %v1319 = vld [vmem:[%s1309 + $0x24] sm:$0xf]
      %v1320 = vld [vmem:[%s1309 + $0x28] sm:$0xf]
      %v1321 = vld [vmem:[%s1309 + $0x2c] sm:$0xf]
      %v1322 = vld [vmem:[%s1309 + $0x30] sm:$0xf]
      %v1323 = vld [vmem:[%s1309 + $0x34] sm:$0xf]
      %v1324 = vld [vmem:[%s1309 + $0x38] sm:$0xf]
      %v1325 = vld [vmem:[%s1309 + $0x3c] sm:$0xf]
      %v1326 = vunpack.c.l.b16 %v1305
      %v1327 = vunpack.c.l.b16 %v1308
      %v1328 = vpack.c.b16 %v1327, %v1326
      %v1346 = vunpack.c.l.b16 %v1310
      %v1347 = vunpack.c.l.b16 %v1311
      %v1348 = vunpack.c.l.b16 %v1312
      %v1349 = vunpack.c.l.b16 %v1313
      %v1350 = vunpack.c.l.b16 %v1314
      %v1351 = vunpack.c.l.b16 %v1315
      %v1352 = vunpack.c.l.b16 %v1316
      %v1353 = vunpack.c.l.b16 %v1317
      %v1354 = vunpack.c.l.b16 %v1318
      %v1355 = vunpack.c.l.b16 %v1319
      %v1356 = vunpack.c.l.b16 %v1320
      %v1357 = vunpack.c.l.b16 %v1321
      %v1358 = vunpack.c.l.b16 %v1322
      %v1359 = vunpack.c.l.b16 %v1323
      %v1360 = vunpack.c.l.b16 %v1324
      %v1361 = vunpack.c.l.b16 %v1325
      %v1362 = vpack.c.b16 %v1347, %v1346
      %v1363 = vpack.c.b16 %v1349, %v1348
      %v1364 = vpack.c.b16 %v1351, %v1350
      %v1365 = vpack.c.b16 %v1353, %v1352
      %v1366 = vpack.c.b16 %v1355, %v1354
      %v1367 = vpack.c.b16 %v1357, %v1356
      %v1368 = vpack.c.b16 %v1359, %v1358
      %v1369 = vpack.c.b16 %v1361, %v1360
      %1378 = vmatpush.bf16.msra.mxu0 %v1369
      %1379 = vmatpush.bf16.msra.mxu0 %v1368
      %1380 = vmatpush.bf16.msra.mxu0 %v1367
      %1381 = vmatpush.bf16.msra.mxu0 %v1366
      %1382 = vmatpush.bf16.msra.mxu0 %v1365
      %1383 = vmatpush.bf16.msra.mxu0 %v1364
      %1384 = vmatpush.bf16.msra.mxu0 %v1363
      %1385 = vmatpush.bf16.msra.mxu0 %v1362
      %1386 = vmatmul.bf16.gmra.mxu0 %v879
      %v1387 = vpop.f32.mrf.mxu0
      %v1388 = vadd.f32 0.0, %v1387
      %v1389 = vpop.f32.mrf.mxu0
      %v1390 = vadd.f32 0.0, %v1389
      %1391 = vmatmul.bf16.gmra.mxu0 %v880
      %v1392 = vpop.f32.mrf.mxu0
      %v1393 = vadd.f32 0.0, %v1392
      %v1394 = vpop.f32.mrf.mxu0
      %v1395 = vadd.f32 0.0, %v1394
      %1396 = vmatmul.bf16.gmra.mxu0 %v881
      %v1397 = vpop.f32.mrf.mxu0
      %v1398 = vadd.f32 0.0, %v1397
      %v1399 = vpop.f32.mrf.mxu0
      %v1400 = vadd.f32 0.0, %v1399
      %1401 = vmatmul.bf16.gmra.mxu0 %v882
      %v1402 = vpop.f32.mrf.mxu0
      %v1403 = vadd.f32 0.0, %v1402
      %v1404 = vpop.f32.mrf.mxu0
      %v1405 = vadd.f32 0.0, %v1404
      %1406 = vmatmul.bf16.gmra.mxu0 %v883
      %v1407 = vpop.f32.mrf.mxu0
      %v1408 = vadd.f32 0.0, %v1407
      %v1409 = vpop.f32.mrf.mxu0
      %v1410 = vadd.f32 0.0, %v1409
      %1411 = vmatmul.bf16.gmra.mxu0 %v884
      %v1412 = vpop.f32.mrf.mxu0
      %v1413 = vadd.f32 0.0, %v1412
      %v1414 = vpop.f32.mrf.mxu0
      %v1415 = vadd.f32 0.0, %v1414
      %1416 = vmatmul.bf16.gmra.mxu0 %v885
      %v1417 = vpop.f32.mrf.mxu0
      %v1418 = vadd.f32 0.0, %v1417
      %v1419 = vpop.f32.mrf.mxu0
      %v1420 = vadd.f32 0.0, %v1419
      %1421 = vmatmul.bf16.gmra.mxu0 %v1328
      %v1422 = vpop.f32.mrf.mxu0
      %v1423 = vadd.f32 0.0, %v1422
      %v1424 = vpop.f32.mrf.mxu0
      %v1425 = vadd.f32 0.0, %v1424
      %1426 = vdwg.mxu0
      %v1427 = vadd.f32 %v1285, %v1388
      %v1428 = vadd.f32 %v1286, %v1390
      %v1429 = vadd.f32 %v1287, %v1393
      %v1430 = vadd.f32 %v1288, %v1395
      %v1431 = vadd.f32 %v1289, %v1398
      %v1432 = vadd.f32 %v1290, %v1400
      %v1433 = vadd.f32 %v1291, %v1403
      %v1434 = vadd.f32 %v1292, %v1405
      %v1435 = vadd.f32 %v1293, %v1408
      %v1436 = vadd.f32 %v1294, %v1410
      %v1437 = vadd.f32 %v1295, %v1413
      %v1438 = vadd.f32 %v1296, %v1415
      %v1439 = vadd.f32 %v1297, %v1418
      %v1440 = vadd.f32 %v1298, %v1420
      %v1441 = vadd.f32 %v1299, %v1423
      %v1442 = vadd.f32 %v1300, %v1425
      %s1443 = scalar_lea.vmem %s1, 384
      %v1444 = vld [vmem:[%s1443] sm:$0xf]
      %v1445 = vld [vmem:[%s1443 + $0x4] sm:$0xf]
      %v1446 = vld [vmem:[%s1443 + $0x8] sm:$0xf]
      %v1447 = vld [vmem:[%s1443 + $0xc] sm:$0xf]
      %v1448 = vld [vmem:[%s1443 + $0x10] sm:$0xf]
      %v1449 = vld [vmem:[%s1443 + $0x14] sm:$0xf]
      %v1450 = vld [vmem:[%s1443 + $0x18] sm:$0xf]
      %v1451 = vld [vmem:[%s1443 + $0x1c] sm:$0xf]
      %v1452 = vld [vmem:[%s1443 + $0x20] sm:$0xf]
      %v1453 = vld [vmem:[%s1443 + $0x24] sm:$0xf]
      %v1454 = vld [vmem:[%s1443 + $0x28] sm:$0xf]
      %v1455 = vld [vmem:[%s1443 + $0x2c] sm:$0xf]
      %v1456 = vld [vmem:[%s1443 + $0x30] sm:$0xf]
      %v1457 = vld [vmem:[%s1443 + $0x34] sm:$0xf]
      %v1458 = vld [vmem:[%s1443 + $0x38] sm:$0xf]
      %v1459 = vld [vmem:[%s1443 + $0x3c] sm:$0xf]
      %v1462 = vunpack.c.l.b16 %v273
      %v1463 = vunpack.c.l.b16 %v274
      %v1464 = vpack.c.b16 %v1463, %v1462
      %v1482 = vunpack.c.l.b16 %v1444
      %v1483 = vunpack.c.l.b16 %v1445
      %v1484 = vunpack.c.l.b16 %v1446
      %v1485 = vunpack.c.l.b16 %v1447
      %v1486 = vunpack.c.l.b16 %v1448
      %v1487 = vunpack.c.l.b16 %v1449
      %v1488 = vunpack.c.l.b16 %v1450
      %v1489 = vunpack.c.l.b16 %v1451
      %v1490 = vunpack.c.l.b16 %v1452
      %v1491 = vunpack.c.l.b16 %v1453
      %v1492 = vunpack.c.l.b16 %v1454
      %v1493 = vunpack.c.l.b16 %v1455
      %v1494 = vunpack.c.l.b16 %v1456
      %v1495 = vunpack.c.l.b16 %v1457
      %v1496 = vunpack.c.l.b16 %v1458
      %v1497 = vunpack.c.l.b16 %v1459
      %v1498 = vpack.c.b16 %v1483, %v1482
      %v1499 = vpack.c.b16 %v1485, %v1484
      %v1500 = vpack.c.b16 %v1487, %v1486
      %v1501 = vpack.c.b16 %v1489, %v1488
      %v1502 = vpack.c.b16 %v1491, %v1490
      %v1503 = vpack.c.b16 %v1493, %v1492
      %v1504 = vpack.c.b16 %v1495, %v1494
      %v1505 = vpack.c.b16 %v1497, %v1496
      %1514 = vmatpush.bf16.msra.mxu0 %v1505
      %1515 = vmatpush.bf16.msra.mxu0 %v1504
      %1516 = vmatpush.bf16.msra.mxu0 %v1503
      %1517 = vmatpush.bf16.msra.mxu0 %v1502
      %1518 = vmatpush.bf16.msra.mxu0 %v1501
      %1519 = vmatpush.bf16.msra.mxu0 %v1500
      %1520 = vmatpush.bf16.msra.mxu0 %v1499
      %1521 = vmatpush.bf16.msra.mxu0 %v1498
      %1522 = vmatmul.bf16.gmra.mxu0 %v667
      %v1523 = vpop.f32.mrf.mxu0
      %v1524 = vadd.f32 0.0, %v1523
      %v1525 = vpop.f32.mrf.mxu0
      %v1526 = vadd.f32 0.0, %v1525
      %1527 = vmatmul.bf16.gmra.mxu0 %v668
      %v1528 = vpop.f32.mrf.mxu0
      %v1529 = vadd.f32 0.0, %v1528
      %v1530 = vpop.f32.mrf.mxu0
      %v1531 = vadd.f32 0.0, %v1530
      %1532 = vmatmul.bf16.gmra.mxu0 %v669
      %v1533 = vpop.f32.mrf.mxu0
      %v1534 = vadd.f32 0.0, %v1533
      %v1535 = vpop.f32.mrf.mxu0
      %v1536 = vadd.f32 0.0, %v1535
      %1537 = vmatmul.bf16.gmra.mxu0 %v670
      %v1538 = vpop.f32.mrf.mxu0
      %v1539 = vadd.f32 0.0, %v1538
      %v1540 = vpop.f32.mrf.mxu0
      %v1541 = vadd.f32 0.0, %v1540
      %1542 = vmatmul.bf16.gmra.mxu0 %v671
      %v1543 = vpop.f32.mrf.mxu0
      %v1544 = vadd.f32 0.0, %v1543
      %v1545 = vpop.f32.mrf.mxu0
      %v1546 = vadd.f32 0.0, %v1545
      %1547 = vmatmul.bf16.gmra.mxu0 %v672
      %v1548 = vpop.f32.mrf.mxu0
      %v1549 = vadd.f32 0.0, %v1548
      %v1550 = vpop.f32.mrf.mxu0
      %v1551 = vadd.f32 0.0, %v1550
      %1552 = vmatmul.bf16.gmra.mxu0 %v1028
      %v1553 = vpop.f32.mrf.mxu0
      %v1554 = vadd.f32 0.0, %v1553
      %v1555 = vpop.f32.mrf.mxu0
      %v1556 = vadd.f32 0.0, %v1555
      %1557 = vmatmul.bf16.gmra.mxu0 %v1464
      %v1558 = vpop.f32.mrf.mxu0
      %v1559 = vadd.f32 0.0, %v1558
      %v1560 = vpop.f32.mrf.mxu0
      %v1561 = vadd.f32 0.0, %v1560
      %1562 = vdwg.mxu0
      %v1563 = vadd.f32 %v1427, %v1524
      %v1564 = vadd.f32 %v1428, %v1526
      %v1565 = vadd.f32 %v1429, %v1529
      %v1566 = vadd.f32 %v1430, %v1531
      %v1567 = vadd.f32 %v1431, %v1534
      %v1568 = vadd.f32 %v1432, %v1536
      %v1569 = vadd.f32 %v1433, %v1539
      %v1570 = vadd.f32 %v1434, %v1541
      %v1571 = vadd.f32 %v1435, %v1544
      %v1572 = vadd.f32 %v1436, %v1546
      %v1573 = vadd.f32 %v1437, %v1549
      %v1574 = vadd.f32 %v1438, %v1551
      %v1575 = vadd.f32 %v1439, %v1554
      %v1576 = vadd.f32 %v1440, %v1556
      %v1577 = vadd.f32 %v1441, %v1559
      %v1578 = vadd.f32 %v1442, %v1561
      %v1580 = vshrl.u32 %v273, 16
      %v1582 = vrot.slane %v1580, 4
      %v1583 = vshll.u32 %v273, 16
      %v1585 = vrot.slane %v1583, 5
      %v1586 = vor.u32 %v1582, %v1585
      %v1587 = vrot.slane %v1586, 4
      %v1589 = vshll.u32 %v274, 16
      %v1591 = vrot.slane %v1589, 5
      %v1592 = vsel %vm294, %v1587, %v1591
      %v1593 = vshrl.u32 %v274, 16
      %v1595 = vrot.slane %v1593, 4
      %v1596 = vor.u32 %v1595, %v1591
      %v1597 = vrot.slane %v1596, 4
      %v1599 = vshll.u32 %v275, 16
      %v1601 = vrot.slane %v1599, 5
      %v1602 = vsel %vm294, %v1597, %v1601
      %s1603 = scalar_lea.vmem %s1, 448
      %v1604 = vld [vmem:[%s1603] sm:$0xf]
      %v1605 = vld [vmem:[%s1603 + $0x4] sm:$0xf]
      %v1606 = vld [vmem:[%s1603 + $0x8] sm:$0xf]
      %v1607 = vld [vmem:[%s1603 + $0xc] sm:$0xf]
      %v1608 = vld [vmem:[%s1603 + $0x10] sm:$0xf]
      %v1609 = vld [vmem:[%s1603 + $0x14] sm:$0xf]
      %v1610 = vld [vmem:[%s1603 + $0x18] sm:$0xf]
      %v1611 = vld [vmem:[%s1603 + $0x1c] sm:$0xf]
      %v1612 = vld [vmem:[%s1603 + $0x20] sm:$0xf]
      %v1613 = vld [vmem:[%s1603 + $0x24] sm:$0xf]
      %v1614 = vld [vmem:[%s1603 + $0x28] sm:$0xf]
      %v1615 = vld [vmem:[%s1603 + $0x2c] sm:$0xf]
      %v1616 = vld [vmem:[%s1603 + $0x30] sm:$0xf]
      %v1617 = vld [vmem:[%s1603 + $0x34] sm:$0xf]
      %v1618 = vld [vmem:[%s1603 + $0x38] sm:$0xf]
      %v1619 = vld [vmem:[%s1603 + $0x3c] sm:$0xf]
      %v1620 = vunpack.c.l.b16 %v1592
      %v1621 = vunpack.c.l.b16 %v1602
      %v1622 = vpack.c.b16 %v1621, %v1620
      %v1640 = vunpack.c.l.b16 %v1604
      %v1641 = vunpack.c.l.b16 %v1605
      %v1642 = vunpack.c.l.b16 %v1606
      %v1643 = vunpack.c.l.b16 %v1607
      %v1644 = vunpack.c.l.b16 %v1608
      %v1645 = vunpack.c.l.b16 %v1609
      %v1646 = vunpack.c.l.b16 %v1610
      %v1647 = vunpack.c.l.b16 %v1611
      %v1648 = vunpack.c.l.b16 %v1612
      %v1649 = vunpack.c.l.b16 %v1613
      %v1650 = vunpack.c.l.b16 %v1614
      %v1651 = vunpack.c.l.b16 %v1615
      %v1652 = vunpack.c.l.b16 %v1616
      %v1653 = vunpack.c.l.b16 %v1617
      %v1654 = vunpack.c.l.b16 %v1618
      %v1655 = vunpack.c.l.b16 %v1619
      %v1656 = vpack.c.b16 %v1641, %v1640
      %v1657 = vpack.c.b16 %v1643, %v1642
      %v1658 = vpack.c.b16 %v1645, %v1644
      %v1659 = vpack.c.b16 %v1647, %v1646
      %v1660 = vpack.c.b16 %v1649, %v1648
      %v1661 = vpack.c.b16 %v1651, %v1650
      %v1662 = vpack.c.b16 %v1653, %v1652
      %v1663 = vpack.c.b16 %v1655, %v1654
      %1672 = vmatpush.bf16.msra.mxu0 %v1663
      %1673 = vmatpush.bf16.msra.mxu0 %v1662
      %1674 = vmatpush.bf16.msra.mxu0 %v1661
      %1675 = vmatpush.bf16.msra.mxu0 %v1660
      %1676 = vmatpush.bf16.msra.mxu0 %v1659
      %1677 = vmatpush.bf16.msra.mxu0 %v1658
      %1678 = vmatpush.bf16.msra.mxu0 %v1657
      %1679 = vmatpush.bf16.msra.mxu0 %v1656
      %1680 = vmatmul.bf16.gmra.mxu0 %v522
      %v1681 = vpop.f32.mrf.mxu0
      %v1682 = vadd.f32 0.0, %v1681
      %v1683 = vpop.f32.mrf.mxu0
      %v1684 = vadd.f32 0.0, %v1683
      %1685 = vmatmul.bf16.gmra.mxu0 %v523
      %v1686 = vpop.f32.mrf.mxu0
      %v1687 = vadd.f32 0.0, %v1686
      %v1688 = vpop.f32.mrf.mxu0
      %v1689 = vadd.f32 0.0, %v1688
      %1690 = vmatmul.bf16.gmra.mxu0 %v524
      %v1691 = vpop.f32.mrf.mxu0
      %v1692 = vadd.f32 0.0, %v1691
      %v1693 = vpop.f32.mrf.mxu0
      %v1694 = vadd.f32 0.0, %v1693
      %1695 = vmatmul.bf16.gmra.mxu0 %v525
      %v1696 = vpop.f32.mrf.mxu0
      %v1697 = vadd.f32 0.0, %v1696
      %v1698 = vpop.f32.mrf.mxu0
      %v1699 = vadd.f32 0.0, %v1698
      %1700 = vmatmul.bf16.gmra.mxu0 %v526
      %v1701 = vpop.f32.mrf.mxu0
      %v1702 = vadd.f32 0.0, %v1701
      %v1703 = vpop.f32.mrf.mxu0
      %v1704 = vadd.f32 0.0, %v1703
      %1705 = vmatmul.bf16.gmra.mxu0 %v527
      %v1706 = vpop.f32.mrf.mxu0
      %v1707 = vadd.f32 0.0, %v1706
      %v1708 = vpop.f32.mrf.mxu0
      %v1709 = vadd.f32 0.0, %v1708
      %1710 = vmatmul.bf16.gmra.mxu0 %v1186
      %v1711 = vpop.f32.mrf.mxu0
      %v1712 = vadd.f32 0.0, %v1711
      %v1713 = vpop.f32.mrf.mxu0
      %v1714 = vadd.f32 0.0, %v1713
      %1715 = vmatmul.bf16.gmra.mxu0 %v1622
      %v1716 = vpop.f32.mrf.mxu0
      %v1717 = vadd.f32 0.0, %v1716
      %v1718 = vpop.f32.mrf.mxu0
      %v1719 = vadd.f32 0.0, %v1718
      %1720 = vdwg.mxu0
      %v1721 = vadd.f32 %v1563, %v1682
      %v1722 = vadd.f32 %v1564, %v1684
      %v1723 = vadd.f32 %v1565, %v1687
      %v1724 = vadd.f32 %v1566, %v1689
      %v1725 = vadd.f32 %v1567, %v1692
      %v1726 = vadd.f32 %v1568, %v1694
      %v1727 = vadd.f32 %v1569, %v1697
      %v1728 = vadd.f32 %v1570, %v1699
      %v1729 = vadd.f32 %v1571, %v1702
      %v1730 = vadd.f32 %v1572, %v1704
      %v1731 = vadd.f32 %v1573, %v1707
      %v1732 = vadd.f32 %v1574, %v1709
      %v1733 = vadd.f32 %v1575, %v1712
      %v1734 = vadd.f32 %v1576, %v1714
      %v1735 = vadd.f32 %v1577, %v1717
      %v1736 = vadd.f32 %v1578, %v1719
      %v1738 = vrot.slane %v273, 5
      %v1739 = vrot.slane %v1738, 4
      %v1740 = vrot.slane %v274, 5
      %v1741 = vsel %vm788, %v1739, %v1740
      %v1742 = vrot.slane %v1740, 4
      %v1743 = vrot.slane %v275, 5
      %v1744 = vsel %vm788, %v1742, %v1743
      %s1745 = scalar_lea.vmem %s1, 512
      %v1746 = vld [vmem:[%s1745] sm:$0xf]
      %v1747 = vld [vmem:[%s1745 + $0x4] sm:$0xf]
      %v1748 = vld [vmem:[%s1745 + $0x8] sm:$0xf]
      %v1749 = vld [vmem:[%s1745 + $0xc] sm:$0xf]
      %v1750 = vld [vmem:[%s1745 + $0x10] sm:$0xf]
      %v1751 = vld [vmem:[%s1745 + $0x14] sm:$0xf]
      %v1752 = vld [vmem:[%s1745 + $0x18] sm:$0xf]
      %v1753 = vld [vmem:[%s1745 + $0x1c] sm:$0xf]
      %v1754 = vld [vmem:[%s1745 + $0x20] sm:$0xf]
      %v1755 = vld [vmem:[%s1745 + $0x24] sm:$0xf]
      %v1756 = vld [vmem:[%s1745 + $0x28] sm:$0xf]
      %v1757 = vld [vmem:[%s1745 + $0x2c] sm:$0xf]
      %v1758 = vld [vmem:[%s1745 + $0x30] sm:$0xf]
      %v1759 = vld [vmem:[%s1745 + $0x34] sm:$0xf]
      %v1760 = vld [vmem:[%s1745 + $0x38] sm:$0xf]
      %v1761 = vld [vmem:[%s1745 + $0x3c] sm:$0xf]
      %v1762 = vunpack.c.l.b16 %v1741
      %v1763 = vunpack.c.l.b16 %v1744
      %v1764 = vpack.c.b16 %v1763, %v1762
      %v1782 = vunpack.c.l.b16 %v1746
      %v1783 = vunpack.c.l.b16 %v1747
      %v1784 = vunpack.c.l.b16 %v1748
      %v1785 = vunpack.c.l.b16 %v1749
      %v1786 = vunpack.c.l.b16 %v1750
      %v1787 = vunpack.c.l.b16 %v1751
      %v1788 = vunpack.c.l.b16 %v1752
      %v1789 = vunpack.c.l.b16 %v1753
      %v1790 = vunpack.c.l.b16 %v1754
      %v1791 = vunpack.c.l.b16 %v1755
      %v1792 = vunpack.c.l.b16 %v1756
      %v1793 = vunpack.c.l.b16 %v1757
      %v1794 = vunpack.c.l.b16 %v1758
      %v1795 = vunpack.c.l.b16 %v1759
      %v1796 = vunpack.c.l.b16 %v1760
      %v1797 = vunpack.c.l.b16 %v1761
      %v1798 = vpack.c.b16 %v1783, %v1782
      %v1799 = vpack.c.b16 %v1785, %v1784
      %v1800 = vpack.c.b16 %v1787, %v1786
      %v1801 = vpack.c.b16 %v1789, %v1788
      %v1802 = vpack.c.b16 %v1791, %v1790
      %v1803 = vpack.c.b16 %v1793, %v1792
      %v1804 = vpack.c.b16 %v1795, %v1794
      %v1805 = vpack.c.b16 %v1797, %v1796
      %1814 = vmatpush.bf16.msra.mxu0 %v1805
      %1815 = vmatpush.bf16.msra.mxu0 %v1804
      %1816 = vmatpush.bf16.msra.mxu0 %v1803
      %1817 = vmatpush.bf16.msra.mxu0 %v1802
      %1818 = vmatpush.bf16.msra.mxu0 %v1801
      %1819 = vmatpush.bf16.msra.mxu0 %v1800
      %1820 = vmatpush.bf16.msra.mxu0 %v1799
      %1821 = vmatpush.bf16.msra.mxu0 %v1798
      %1822 = vmatmul.bf16.gmra.mxu0 %v880
      %v1823 = vpop.f32.mrf.mxu0
      %v1824 = vadd.f32 0.0, %v1823
      %v1825 = vpop.f32.mrf.mxu0
      %v1826 = vadd.f32 0.0, %v1825
      %1827 = vmatmul.bf16.gmra.mxu0 %v881
      %v1828 = vpop.f32.mrf.mxu0
      %v1829 = vadd.f32 0.0, %v1828
      %v1830 = vpop.f32.mrf.mxu0
      %v1831 = vadd.f32 0.0, %v1830
      %1832 = vmatmul.bf16.gmra.mxu0 %v882
      %v1833 = vpop.f32.mrf.mxu0
      %v1834 = vadd.f32 0.0, %v1833
      %v1835 = vpop.f32.mrf.mxu0
      %v1836 = vadd.f32 0.0, %v1835
      %1837 = vmatmul.bf16.gmra.mxu0 %v883
      %v1838 = vpop.f32.mrf.mxu0
      %v1839 = vadd.f32 0.0, %v1838
      %v1840 = vpop.f32.mrf.mxu0
      %v1841 = vadd.f32 0.0, %v1840
      %1842 = vmatmul.bf16.gmra.mxu0 %v884
      %v1843 = vpop.f32.mrf.mxu0
      %v1844 = vadd.f32 0.0, %v1843
      %v1845 = vpop.f32.mrf.mxu0
      %v1846 = vadd.f32 0.0, %v1845
      %1847 = vmatmul.bf16.gmra.mxu0 %v885
      %v1848 = vpop.f32.mrf.mxu0
      %v1849 = vadd.f32 0.0, %v1848
      %v1850 = vpop.f32.mrf.mxu0
      %v1851 = vadd.f32 0.0, %v1850
      %1852 = vmatmul.bf16.gmra.mxu0 %v1328
      %v1853 = vpop.f32.mrf.mxu0
      %v1854 = vadd.f32 0.0, %v1853
      %v1855 = vpop.f32.mrf.mxu0
      %v1856 = vadd.f32 0.0, %v1855
      %1857 = vmatmul.bf16.gmra.mxu0 %v1764
      %v1858 = vpop.f32.mrf.mxu0
      %v1859 = vadd.f32 0.0, %v1858
      %v1860 = vpop.f32.mrf.mxu0
      %v1861 = vadd.f32 0.0, %v1860
      %1862 = vdwg.mxu0
      %v1863 = vadd.f32 %v1721, %v1824
      %v1864 = vadd.f32 %v1722, %v1826
      %v1865 = vadd.f32 %v1723, %v1829
      %v1866 = vadd.f32 %v1724, %v1831
      %v1867 = vadd.f32 %v1725, %v1834
      %v1868 = vadd.f32 %v1726, %v1836
      %v1869 = vadd.f32 %v1727, %v1839
      %v1870 = vadd.f32 %v1728, %v1841
      %v1871 = vadd.f32 %v1729, %v1844
      %v1872 = vadd.f32 %v1730, %v1846
      %v1873 = vadd.f32 %v1731, %v1849
      %v1874 = vadd.f32 %v1732, %v1851
      %v1875 = vadd.f32 %v1733, %v1854
      %v1876 = vadd.f32 %v1734, %v1856
      %v1877 = vadd.f32 %v1735, %v1859
      %v1878 = vadd.f32 %v1736, %v1861
      %v1879 = vld [vmem:[%s2] sm:$0x1]
      %v1881 = vperm.slane %v1879, 0
      %v1883 = vadd.f32 %v1863, %v1881
      %v1884 = vadd.f32 %v1864, %v1881
      %v1885 = vadd.f32 %v1865, %v1881
      %v1886 = vadd.f32 %v1866, %v1881
      %v1887 = vadd.f32 %v1867, %v1881
      %v1888 = vadd.f32 %v1868, %v1881
      %v1889 = vadd.f32 %v1869, %v1881
      %v1890 = vadd.f32 %v1870, %v1881
      %v1891 = vadd.f32 %v1871, %v1881
      %v1892 = vadd.f32 %v1872, %v1881
      %v1893 = vadd.f32 %v1873, %v1881
      %v1894 = vadd.f32 %v1874, %v1881
      %v1895 = vadd.f32 %v1875, %v1881
      %v1896 = vadd.f32 %v1876, %v1881
      %v1897 = vadd.f32 %v1877, %v1881
      %v1898 = vadd.f32 %v1878, %v1881
      %1899 = vst [vmem:[%s240] sm:$0xff] %v1883
      %1900 = vst [vmem:[%s240 + $0x8] sm:$0xff] %v1884
      %1901 = vst [vmem:[%s240 + $0x10] sm:$0xff] %v1885
      %1902 = vst [vmem:[%s240 + $0x18] sm:$0xff] %v1886
      %1903 = vst [vmem:[%s240 + $0x20] sm:$0xff] %v1887
      %1904 = vst [vmem:[%s240 + $0x28] sm:$0xff] %v1888
      %1905 = vst [vmem:[%s240 + $0x30] sm:$0xff] %v1889
      %1906 = vst [vmem:[%s240 + $0x38] sm:$0xff] %v1890
      %1907 = vst [vmem:[%s240 + $0x40] sm:$0xff] %v1891
      %1908 = vst [vmem:[%s240 + $0x48] sm:$0xff] %v1892
      %1909 = vst [vmem:[%s240 + $0x50] sm:$0xff] %v1893
      %1910 = vst [vmem:[%s240 + $0x58] sm:$0xff] %v1894
      %1911 = vst [vmem:[%s240 + $0x60] sm:$0xff] %v1895
      %1912 = vst [vmem:[%s240 + $0x68] sm:$0xff] %v1896
      %1913 = vst [vmem:[%s240 + $0x70] sm:$0xff] %v1897
      %1914 = vst [vmem:[%s240 + $0x78] sm:$0xff] %v1898
      %p1915 = scmp.eq.s32.totalorder %s21, 0
      // Predicated region
      $region33: #{residual_block_forward.3} parent=31 // pred_check
        %p1916 = pneg %p1915
      $region34: #{residual_block_forward.3} parent=31 // pred_check_branch
        %1918 = sbr.rel (%p1916) target = $region36
      $region35: #{residual_block_forward.3} parent=31 // pred_region
        %1919 = vst [vmem:[%s245] sm:$0x3] 0.0
      $region36: #{residual_block_forward.3} parent=31 // pred_fallthru
        _
      %v1920 = vadd.f32 %v1883, %v1884
      %v1921 = vadd.f32 %v1920, %v1885
      %v1922 = vadd.f32 %v1921, %v1886
      %v1923 = vadd.f32 %v1922, %v1887
      %v1924 = vadd.f32 %v1923, %v1888
      %v1925 = vadd.f32 %v1924, %v1889
      %v1926 = vadd.f32 %v1925, %v1890
      %v1927 = vadd.f32 %v1926, %v1891
      %v1928 = vadd.f32 %v1927, %v1892
      %v1929 = vadd.f32 %v1928, %v1893
      %v1930 = vadd.f32 %v1929, %v1894
      %v1931 = vadd.f32 %v1930, %v1895
      %v1932 = vadd.f32 %v1931, %v1896
      %v1933 = vadd.f32 %v1932, %v1897
      %v1934 = vadd.f32 %v1933, %v1898
      %v1935 = vrot.slane %v1934, 4
      %v1936 = vadd.f32 %v1934, %v1935
      %v1937 = vrot.slane %v1936, 2
      %v1938 = vadd.f32 %v1936, %v1937
      %v1939 = vrot.slane %v1938, 1
      %v1940 = vadd.f32 %v1938, %v1939
      %v1941 = vmul.f32 %v1883, %v1883
      %v1942 = vmul.f32 %v1884, %v1884
      %v1943 = vmul.f32 %v1885, %v1885
      %v1944 = vmul.f32 %v1886, %v1886
      %v1945 = vmul.f32 %v1887, %v1887
      %v1946 = vmul.f32 %v1888, %v1888
      %v1947 = vmul.f32 %v1889, %v1889
      %v1948 = vmul.f32 %v1890, %v1890
      %v1949 = vmul.f32 %v1891, %v1891
      %v1950 = vmul.f32 %v1892, %v1892
      %v1951 = vmul.f32 %v1893, %v1893
      %v1952 = vmul.f32 %v1894, %v1894
      %v1953 = vmul.f32 %v1895, %v1895
      %v1954 = vmul.f32 %v1896, %v1896
      %v1955 = vmul.f32 %v1897, %v1897
      %v1956 = vmul.f32 %v1898, %v1898
      %v1957 = vadd.f32 %v1941, %v1942
      %v1958 = vadd.f32 %v1957, %v1943
      %v1959 = vadd.f32 %v1958, %v1944
      %v1960 = vadd.f32 %v1959, %v1945
      %v1961 = vadd.f32 %v1960, %v1946
      %v1962 = vadd.f32 %v1961, %v1947
      %v1963 = vadd.f32 %v1962, %v1948
      %v1964 = vadd.f32 %v1963, %v1949
      %v1965 = vadd.f32 %v1964, %v1950
      %v1966 = vadd.f32 %v1965, %v1951
      %v1967 = vadd.f32 %v1966, %v1952
      %v1968 = vadd.f32 %v1967, %v1953
      %v1969 = vadd.f32 %v1968, %v1954
      %v1970 = vadd.f32 %v1969, %v1955
      %v1971 = vadd.f32 %v1970, %v1956
      %v1972 = vrot.slane %v1971, 4
      %v1973 = vadd.f32 %v1971, %v1972
      %v1974 = vrot.slane %v1973, 2
      %v1975 = vadd.f32 %v1973, %v1974
      %v1976 = vrot.slane %v1975, 1
      %v1977 = vadd.f32 %v1975, %v1976
      %v1978 = vld [vmem:[%s245] sm:$0x3]
      %vm1979 = vcmask 1040384
      %v1980 = vsel %vm1979, %v1940, %v1977
      %v1981 = vadd.f32 %v1978, %v1980
      %1982 = vst [vmem:[%s245] sm:$0x3] %v1981
      %s1983 = smul.u32 16, %s21
      %p1984 = scmp.lt.s32.totalorder %s20, 1
      %s1985 = scalar_select %p1984, %s20, 1
      %p1986 = scmp.lt.s32.totalorder %s1983, 31
      %s1987 = scalar_select %p1986, %s1983, 31
      %s1988 = smul.addr %s1985, 32
      %s1989 = sadd.s32 %s1987, %s1988
      %s1990 = smul.addr %s1989, 8
      %s1991 = scalar_lea.vmem %s3, %s1990
      %p1992 = scmp.lt.s32.totalorder %s20, 1
      %s1993 = scalar_select %p1992, %s20, 1
      %s1994 = smul.addr %s1993, 2
      %s1995 = scalar_lea.vmem %s4, %s1994
      // Predicated region
      $region37: #{residual_block_forward.3} parent=31 // pred_check
        %p1996 = pneg %p118
      $region38: #{residual_block_forward.3} parent=31 // pred_check_branch
        %1998 = sbr.rel (%p1996) target = $region40
      $region39: #{residual_block_forward.3} parent=31 // pred_region
        %s1999 = smul.u32 16, %s21
      $region40: #{residual_block_forward.3} parent=31 // pred_fallthru
        _
      // Predicated region
      $region41: #{residual_block_forward.3} parent=31 // pred_check
        %p2000 = pneg %p144
      $region42: #{residual_block_forward.3} parent=31 // pred_check_branch
        %2002 = sbr.rel (%p2000) target = $region44
      $region43: #{residual_block_forward.3} parent=31 // pred_region
        _
      $region44: #{residual_block_forward.3} parent=31 // pred_fallthru
        _
    $region32: #{residual_block_forward.3} parent=5 // pred_fallthru
      _
    %p2003 = scmp.le.s32.totalorder 2, %s11
    // Predicated region
    $region45: #{residual_block_forward.3} parent=5 // pred_check
      %p2004 = pneg %p2003
    $region46: #{residual_block_forward.3} parent=5 // pred_check_branch
      %2006 = sbr.rel (%p2004) target = $region48
    $region47: #{residual_block_forward.3} parent=5 // pred_region
      %s2007 = ssub.s32 %s11, 2
      // Predicated region
      $region49: #{residual_block_forward.3} parent=47 // pred_check
        %p2008 = pneg %p124
      $region50: #{residual_block_forward.3} parent=47 // pred_check_branch
        %2010 = sbr.rel (%p2008) target = $region52
      $region51: #{residual_block_forward.3} parent=47 // pred_region
        %s2011 = smul.u32 16, %s23
        %p2012 = scmp.lt.s32.totalorder %s22, 1
        %s2013 = scalar_select %p2012, %s22, 1
        %p2014 = scmp.lt.s32.totalorder %s2011, 31
        %s2015 = scalar_select %p2014, %s2011, 31
        %s2016 = smul.addr %s2013, 32
        %s2017 = sadd.s32 %s2015, %s2016
        %s2018 = smul.addr %s2017, 8
        %s2019 = scalar_lea.vmem %s3, %s2018
      $region52: #{residual_block_forward.3} parent=47 // pred_fallthru
        _
      // Predicated region
      $region53: #{residual_block_forward.3} parent=47 // pred_check
        %p2020 = pneg %p150
      $region54: #{residual_block_forward.3} parent=47 // pred_check_branch
        %2022 = sbr.rel (%p2020) target = $region56
      $region55: #{residual_block_forward.3} parent=47 // pred_region
        %p2023 = scmp.lt.s32.totalorder %s22, 1
        %s2024 = scalar_select %p2023, %s22, 1
        %s2025 = smul.addr %s2024, 2
        %s2026 = scalar_lea.vmem %s4, %s2025
      $region56: #{residual_block_forward.3} parent=47 // pred_fallthru
        _
    $region48: #{residual_block_forward.3} parent=5 // pred_fallthru
      _
  $region6: #{residual_block_forward.3} parent=0 // loop_footer
    %s15 = sadd.s32 1, %s11
  $region7: #{residual_block_forward.3} parent=0 // loop_footer_branch
    %10 = sbr.rel target = $region3
  $region8: #{residual_block_forward.3} parent=0 // loop_exit
    _

// kernel: residual_block_forward.4
$region0: #{residual_block_forward.4}
  #allocation0 [shape = 'u32[]', space=smem, size = 0x4, offset = 0x4, fixed_abs, tag = 'smem constant byte address 0x4 - core index']
  #allocation1 [shape = 'u32[72,128]{1,0:T(1,128)}', space=vmem, size = 0x9000, scoped, tag = 'internal scratch']
  %s0 = inlined_call_operand.vmem [shape: f32[2,2,10,18,128], index: 0, kind: input, shape index: {}]
  %s1 = inlined_call_operand.vmem [shape: f32[2,2,128], index: 1, kind: input, shape index: {}]
  %s2 = inlined_call_operand.vmem [shape: bf16[3,3,128,128], index: 2, kind: input, shape index: {}]
  %s3 = inlined_call_operand.vmem [shape: f32[1,128], index: 3, kind: input, shape index: {}]
  %s4 = inlined_call_operand.vmem [shape: f32[2,256,128], index: 4, kind: output, shape index: {0}]
  %s5 = inlined_call_operand.vmem [shape: f32[2,2,128], index: 5, kind: output, shape index: {1}]
  %6 = xla_tuple %s4, %s5
  %s7 = sld [smem:[#allocation0]]
  $region61: #{residual_block_forward.4} parent=0
    _
  %s9 = ssub.s32 1, %s7
  %s10 = scalar_select 0, %s9, %s7
  loop: start=0, step=1, limit=6
  $region2: #{residual_block_forward.4} parent=0 // loop_pre_header
    _
  $region3: #{residual_block_forward.4} parent=0 // loop_header
    %s12 = sphi 0, %s16
    %p13 = scmp.ge.s32.totalorder %s12, 6
    %s19 = sphi 0, %s31
    %s20 = sphi 0, %s27
    %s21 = sphi 0, %s19
    %s22 = sphi 0, %s20
    %s23 = sphi 0, %s21
    %s24 = sphi 0, %s22
    %s36 = sphi 0, %s38
    %s39 = sphi 0, %s36
    %s40 = sphi 0, %s39
    %s56 = sphi 0, %s40
    %s62 = sphi 0, %s64
    %s65 = sphi 0, %s62
    %s66 = sphi 0, %s65
    %s82 = sphi 0, %s66
    %s86 = sphi 0, %s86
    %s88 = sphi 0, %s86
    %s89 = sphi 0, %s88
    %s103 = sphi 0, %s89
    %s107 = sphi 0, %s107
    %s109 = sphi 0, %s107
    %s110 = sphi 0, %s109
    %s124 = sphi 0, %s110
    %s132 = sphi 0, %s134
    %s135 = sphi 0, %s132
    %s136 = sphi 0, %s135
    %s152 = sphi 0, %s136
    %s158 = sphi 0, %s160
    %s161 = sphi 0, %s158
    %s162 = sphi 0, %s161
    %s178 = sphi 0, %s162
  $region4: #{residual_block_forward.4} parent=0 // loop_header_branch
    %15 = sbr.rel (%p13) target = $region8
  $region5: #{residual_block_forward.4} parent=0 // loop_body
    %s17 = ssub.s32 %s12, 1
    %s18 = ssub.s32 %s12, 2
    %s25 = sadd.s32 1, %s20
    %p26 = scmp.ge.s32.totalorder %s25, 2
    %s27 = scalar_select %p26, 0, %s25
    %s28 = sadd.s32 1, %s19
    %s29 = scalar_select %p26, %s28, %s19
    %p30 = scmp.ge.s32.totalorder %s29, 2
    %s31 = scalar_select %p30, 0, %s29
    %s32 = ssub.s32 %s19, %s31
    %s33 = ssub.s32 %s20, %s27
    %s34 = sor.u32 %s32, %s33
    %p35 = scmp.eq.s32.totalorder %s34, 0
    %s37 = sadd.s32 %s36, 1
    %s38 = scalar_select %p35, %s36, %s37
    %p41 = pneg %p35
    %p42 = scmp.eq.s32.totalorder %s12, 3
    %p43 = por %p41, %p42
    %p44 = scmp.ne.s32.totalorder %s36, %s39
    %p45 = scmp.eq.s32.totalorder %s12, 0
    %p46 = por %p44, %p45
    %p47 = scmp.ne.s32.totalorder %s36, %s39
    %p48 = scmp.eq.s32.totalorder %s17, 3
    %p49 = por %p47, %p48
    %p50 = scmp.ne.s32.totalorder %s39, %s40
    %p51 = scmp.eq.s32.totalorder %s17, 0
    %p52 = por %p50, %p51
    %p53 = scmp.ne.s32.totalorder %s39, %s40
    %p54 = scmp.eq.s32.totalorder %s18, 3
    %p55 = por %p53, %p54
    %p57 = scmp.ne.s32.totalorder %s40, %s56
    %p58 = scmp.eq.s32.totalorder %s18, 0
    %p59 = por %p57, %p58
    %s60 = ssub.s32 %s19, %s31
    %p61 = scmp.eq.s32.totalorder %s60, 0
    %s63 = sadd.s32 %s62, 1
    %s64 = scalar_select %p61, %s62, %s63
    %p67 = pneg %p61
    %p68 = scmp.eq.s32.totalorder %s12, 3
    %p69 = por %p67, %p68
    %p70 = scmp.ne.s32.totalorder %s62, %s65
    %p71 = scmp.eq.s32.totalorder %s12, 0
    %p72 = por %p70, %p71
    %p73 = scmp.ne.s32.totalorder %s62, %s65
    %p74 = scmp.eq.s32.totalorder %s17, 3
    %p75 = por %p73, %p74
    %p76 = scmp.ne.s32.totalorder %s65, %s66
    %p77 = scmp.eq.s32.totalorder %s17, 0
    %p78 = por %p76, %p77
    %p79 = scmp.ne.s32.totalorder %s65, %s66
    %p80 = scmp.eq.s32.totalorder %s18, 3
    %p81 = por %p79, %p80
    %p83 = scmp.ne.s32.totalorder %s66, %s82
    %p84 = scmp.eq.s32.totalorder %s18, 0
    %p85 = por %p83, %p84
    %s87 = sadd.s32 %s86, 1
    %p90 = scmp.eq.s32.totalorder %s12, 3
    %p91 = scmp.ne.s32.totalorder %s86, %s88
    %p92 = scmp.eq.s32.totalorder %s12, 0
    %p93 = por %p91, %p92
    %p94 = scmp.ne.s32.totalorder %s86, %s88
    %p95 = scmp.eq.s32.totalorder %s17, 3
    %p96 = por %p94, %p95
    %p97 = scmp.ne.s32.totalorder %s88, %s89
    %p98 = scmp.eq.s32.totalorder %s17, 0
    %p99 = por %p97, %p98
    %p100 = scmp.ne.s32.totalorder %s88, %s89
    %p101 = scmp.eq.s32.totalorder %s18, 3
    %p102 = por %p100, %p101
    %p104 = scmp.ne.s32.totalorder %s89, %s103
    %p105 = scmp.eq.s32.totalorder %s18, 0
    %p106 = por %p104, %p105
    %s108 = sadd.s32 %s107, 1
    %p111 = scmp.eq.s32.totalorder %s12, 3
    %p112 = scmp.ne.s32.totalorder %s107, %s109
    %p113 = scmp.eq.s32.totalorder %s12, 0
    %p114 = por %p112, %p113
    %p115 = scmp.ne.s32.totalorder %s107, %s109
    %p116 = scmp.eq.s32.totalorder %s17, 3
    %p117 = por %p115, %p116
    %p118 = scmp.ne.s32.totalorder %s109, %s110
    %p119 = scmp.eq.s32.totalorder %s17, 0
    %p120 = por %p118, %p119
    %p121 = scmp.ne.s32.totalorder %s109, %s110
    %p122 = scmp.eq.s32.totalorder %s18, 3
    %p123 = por %p121, %p122
    %p125 = scmp.ne.s32.totalorder %s110, %s124
    %p126 = scmp.eq.s32.totalorder %s18, 0
    %p127 = por %p125, %p126
    %s128 = ssub.s32 %s19, %s31
    %s129 = ssub.s32 %s20, %s27
    %s130 = sor.u32 %s128, %s129
    %p131 = scmp.eq.s32.totalorder %s130, 0
    %s133 = sadd.s32 %s132, 1
    %s134 = scalar_select %p131, %s132, %s133
    %p137 = pneg %p131
    %p138 = scmp.eq.s32.totalorder %s12, 3
    %p139 = por %p137, %p138
    %p140 = scmp.ne.s32.totalorder %s132, %s135
    %p141 = scmp.eq.s32.totalorder %s12, 0
    %p142 = por %p140, %p141
    %p143 = scmp.ne.s32.totalorder %s132, %s135
    %p144 = scmp.eq.s32.totalorder %s17, 3
    %p145 = por %p143, %p144
    %p146 = scmp.ne.s32.totalorder %s135, %s136
    %p147 = scmp.eq.s32.totalorder %s17, 0
    %p148 = por %p146, %p147
    %p149 = scmp.ne.s32.totalorder %s135, %s136
    %p150 = scmp.eq.s32.totalorder %s18, 3
    %p151 = por %p149, %p150
    %p153 = scmp.ne.s32.totalorder %s136, %s152
    %p154 = scmp.eq.s32.totalorder %s18, 0
    %p155 = por %p153, %p154
    %s156 = ssub.s32 %s19, %s31
    %p157 = scmp.eq.s32.totalorder %s156, 0
    %s159 = sadd.s32 %s158, 1
    %s160 = scalar_select %p157, %s158, %s159
    %p163 = pneg %p157
    %p164 = scmp.eq.s32.totalorder %s12, 3
    %p165 = por %p163, %p164
    %p166 = scmp.ne.s32.totalorder %s158, %s161
    %p167 = scmp.eq.s32.totalorder %s12, 0
    %p168 = por %p166, %p167
    %p169 = scmp.ne.s32.totalorder %s158, %s161
    %p170 = scmp.eq.s32.totalorder %s17, 3
    %p171 = por %p169, %p170
    %p172 = scmp.ne.s32.totalorder %s161, %s162
    %p173 = scmp.eq.s32.totalorder %s17, 0
    %p174 = por %p172, %p173
    %p175 = scmp.ne.s32.totalorder %s161, %s162
    %p176 = scmp.eq.s32.totalorder %s18, 3
    %p177 = por %p175, %p176
    %p179 = scmp.ne.s32.totalorder %s162, %s178
    %p180 = scmp.eq.s32.totalorder %s18, 0
    %p181 = por %p179, %p180
    %p182 = scmp.le.s32.totalorder 1, %s12
    %p183 = scmp.lt.s32.totalorder %s12, 5
    %p184 = pnand %p182, %p183
    %p185 = pneg %p184
    // Predicated region
    $region9: #{residual_block_forward.4} parent=5 // pred_check
      _
    $region10: #{residual_block_forward.4} parent=5 // pred_check_branch
      %187 = sbr.rel (%p184) target = $region12
    $region11: #{residual_block_forward.4} parent=5 // pred_region
      %s188 = ssub.s32 %s12, 1
      // Predicated region
      $region13: #{residual_block_forward.4} parent=11 // pred_check
        %p189 = pneg %p99
      $region14: #{residual_block_forward.4} parent=11 // pred_check_branch
        %191 = sbr.rel (%p189) target = $region16
      $region15: #{residual_block_forward.4} parent=11 // pred_region
        _
      $region16: #{residual_block_forward.4} parent=11 // pred_fallthru
        _
      // Predicated region
      $region17: #{residual_block_forward.4} parent=11 // pred_check
        %p192 = pneg %p120
      $region18: #{residual_block_forward.4} parent=11 // pred_check_branch
        %194 = sbr.rel (%p192) target = $region20
      $region19: #{residual_block_forward.4} parent=11 // pred_region
        _
      $region20: #{residual_block_forward.4} parent=11 // pred_fallthru
        _
    $region12: #{residual_block_forward.4} parent=5 // pred_fallthru
      _
    %p195 = scmp.lt.s32.totalorder %s12, 4
    // Predicated region
    $region21: #{residual_block_forward.4} parent=5 // pred_check
      %p196 = pneg %p195
    $region22: #{residual_block_forward.4} parent=5 // pred_check_branch
      %198 = sbr.rel (%p196) target = $region24
    $region23: #{residual_block_forward.4} parent=5 // pred_region
      // Predicated region
      $region25: #{residual_block_forward.4} parent=23 // pred_check
        %p199 = pneg %p46
      $region26: #{residual_block_forward.4} parent=23 // pred_check_branch
        %201 = sbr.rel (%p199) target = $region28
      $region27: #{residual_block_forward.4} parent=23 // pred_region
        %p202 = scmp.lt.s32.totalorder %s19, 1
        %s203 = scalar_select %p202, %s19, 1
        %p204 = scmp.lt.s32.totalorder %s20, 1
        %s205 = scalar_select %p204, %s20, 1
        %s206 = smul.addr %s205, 30
        %s207 = smul.addr %s203, 60
        %s208 = sadd.s32 %s206, %s207
        %s209 = smul.addr %s208, 8
        %s210 = scalar_lea.vmem %s0, %s209
      $region28: #{residual_block_forward.4} parent=23 // pred_fallthru
        _
      // Predicated region
      $region29: #{residual_block_forward.4} parent=23 // pred_check
        %p211 = pneg %p72
      $region30: #{residual_block_forward.4} parent=23 // pred_check_branch
        %213 = sbr.rel (%p211) target = $region32
      $region31: #{residual_block_forward.4} parent=23 // pred_region
        %p214 = scmp.lt.s32.totalorder %s19, 1
        %s215 = scalar_select %p214, %s19, 1
        %s216 = smul.addr %s215, 2
        %s217 = scalar_lea.vmem %s1, %s216
      $region32: #{residual_block_forward.4} parent=23 // pred_fallthru
        _
    $region24: #{residual_block_forward.4} parent=5 // pred_fallthru
      _
    %p218 = scmp.le.s32.totalorder 1, %s12
    %p219 = scmp.lt.s32.totalorder %s12, 5
    %p220 = pnand %p218, %p219
    %p221 = pneg %p220
    // Predicated region
    $region33: #{residual_block_forward.4} parent=5 // pred_check
      _
    $region34: #{residual_block_forward.4} parent=5 // pred_check_branch
      %223 = sbr.rel (%p220) target = $region36
    $region35: #{residual_block_forward.4} parent=5 // pred_region
      %s224 = ssub.s32 %s12, 1
      %p225 = scmp.lt.s32.totalorder %s21, 1
      %s226 = scalar_select %p225, %s21, 1
      %p227 = scmp.lt.s32.totalorder %s22, 1
      %s228 = scalar_select %p227, %s22, 1
      %s229 = smul.addr %s228, 30
      %s230 = smul.addr %s226, 60
      %s231 = sadd.s32 %s229, %s230
      %s232 = smul.addr %s231, 8
      %s233 = scalar_lea.vmem %s0, %s232
      %p234 = pneg %p52
      %p235 = pneg %p49
      %p236 = scmp.lt.s32.totalorder %s21, 1
      %s237 = scalar_select %p236, %s21, 1
      %s238 = smul.addr %s237, 2
      %s239 = scalar_lea.vmem %s1, %s238
      %p240 = pneg %p78
      %p241 = pneg %p75
      %p242 = pneg %p99
      %p243 = pneg %p96
      %p244 = pneg %p120
      %p245 = pneg %p117
      %p246 = pneg %p148
      %p247 = pneg %p145
      %s248 = smul.u32 16, %s22
      %p249 = scmp.lt.s32.totalorder %s21, 1
      %s250 = scalar_select %p249, %s21, 1
      %p251 = scmp.lt.s32.totalorder %s248, 31
      %s252 = scalar_select %p251, %s248, 31
      %s253 = smul.addr %s250, 32
      %s254 = sadd.s32 %s252, %s253
      %s255 = smul.addr %s254, 8
      %s256 = scalar_lea.vmem %s4, %s255
      %p257 = pneg %p174
      %p258 = pneg %p171
      %p259 = scmp.lt.s32.totalorder %s21, 1
      %s260 = scalar_select %p259, %s21, 1
      %s261 = smul.addr %s260, 2
      %s262 = scalar_lea.vmem %s5, %s261
      %p263 = scmp.lt.s32.totalorder %s21, 1
      %s264 = scalar_select %p263, %s21, 1
      %p265 = scmp.lt.s32.totalorder %s22, 1
      %s266 = scalar_select %p265, %s22, 1
      %s267 = smul.addr %s266, 30
      %s268 = smul.addr %s264, 60
      %s269 = sadd.s32 %s267, %s268
      %s270 = smul.addr %s269, 8
      %s271 = scalar_lea.vmem %s0, %s270
      %p272 = scmp.lt.s32.totalorder %s21, 1
      %s273 = scalar_select %p272, %s21, 1
      %s274 = smul.addr %s273, 2
      %s275 = scalar_lea.vmem %s1, %s274
      %s276 = smul.u32 16, %s22
      %p277 = scmp.lt.s32.totalorder %s21, 1
      %s278 = scalar_select %p277, %s21, 1
      %p279 = scmp.lt.s32.totalorder %s276, 31
      %s280 = scalar_select %p279, %s276, 31
      %s281 = smul.addr %s278, 32
      %s282 = sadd.s32 %s280, %s281
      %s283 = smul.addr %s282, 8
      %s284 = scalar_lea.vmem %s4, %s283
      %s285 = smul.u32 16, %s22
      %p286 = scmp.lt.s32.totalorder %s21, 1
      %s287 = scalar_select %p286, %s21, 1
      %s288 = smul.addr %s287, 2
      %s289 = scalar_lea.vmem %s5, %s288
      %v290 = vld [vmem:[%s275] sm:$0x3]
      %v291 = vmul.f32 %v290, 0.00390625
      %v292 = vmul.f32 %v291, %v291
      %v294 = vrot.slane %v292, 7
      %v296 = vsub.f32 %v291, %v294
      %v297 = vmax.f32 %v296, 0.0
      %v298 = vadd.f32 %v297, 1e-05
      %v299 = vrsqrt.pop %v298
      %v300 = vmul.f32 %v299, %v298
      %v301 = vmul.f32 %v300, %v299
      %v302 = vmul.f32 0.5, %v301
      %v303 = vsub.f32 1.5, %v302
      %v304 = vmul.f32 %v299, %v303
      %vm305 = vweird.f32 %v298
      %vm306 = vweird.f32 %v299
      %vm307 = vmor %vm305, %vm306
      %v308 = vsel %vm307, %v299, %v304
      %v309 = vld [vmem:[%s271] sm:$0xff]
      %v310 = vld [vmem:[%s271 + $0x8] sm:$0xff]
      %v311 = vld [vmem:[%s271 + $0x10] sm:$0x3]
      %v312 = vld [vmem:[%s271 + $0x18] sm:$0xff]
      %v313 = vld [vmem:[%s271 + $0x20] sm:$0xff]
      %v314 = vld [vmem:[%s271 + $0x28] sm:$0x3]
      %v315 = vld [vmem:[%s271 + $0x30] sm:$0xff]
      %v316 = vld [vmem:[%s271 + $0x38] sm:$0xff]
      %v317 = vld [vmem:[%s271 + $0x40] sm:$0x3]
      %v318 = vld [vmem:[%s271 + $0x48] sm:$0xff]
      %v319 = vld [vmem:[%s271 + $0x50] sm:$0xff]
      %v320 = vld [vmem:[%s271 + $0x58] sm:$0x3]
      %v321 = vld [vmem:[%s271 + $0x60] sm:$0xff]
      %v322 = vld [vmem:[%s271 + $0x68] sm:$0xff]
      %v323 = vld [vmem:[%s271 + $0x70] sm:$0x3]
      %v324 = vld [vmem:[%s271 + $0x78] sm:$0xff]
      %v325 = vld [vmem:[%s271 + $0x80] sm:$0xff]
      %v326 = vld [vmem:[%s271 + $0x88] sm:$0x3]
      %v327 = vld [vmem:[%s271 + $0x90] sm:$0xff]
      %v328 = vld [vmem:[%s271 + $0x98] sm:$0xff]
      %v329 = vld [vmem:[%s271 + $0xa0] sm:$0x3]
      %v330 = vld [vmem:[%s271 + $0xa8] sm:$0xff]
      %v331 = vld [vmem:[%s271 + $0xb0] sm:$0xff]
      %v332 = vld [vmem:[%s271 + $0xb8] sm:$0x3]
      %v333 = vld [vmem:[%s271 + $0xc0] sm:$0xff]
      %v334 = vld [vmem:[%s271 + $0xc8] sm:$0xff]
      %v335 = vld [vmem:[%s271 + $0xd0] sm:$0x3]
      %v336 = vld [vmem:[%s271 + $0xd8] sm:$0xff]
      %v337 = vld [vmem:[%s271 + $0xe0] sm:$0xff]
      %v338 = vld [vmem:[%s271 + $0xe8] sm:$0x3]
      %v339 = vperm.slane %v291, 0
      %v340 = vsub.f32 %v309, %v339
      %v341 = vsub.f32 %v310, %v339
      %v342 = vsub.f32 %v311, %v339
      %v343 = vsub.f32 %v312, %v339
      %v344 = vsub.f32 %v313, %v339
      %v345 = vsub.f32 %v314, %v339
      %v346 = vsub.f32 %v315, %v339
      %v347 = vsub.f32 %v316, %v339
      %v348 = vsub.f32 %v317, %v339
      %v349 = vsub.f32 %v318, %v339
      %v350 = vsub.f32 %v319, %v339
      %v351 = vsub.f32 %v320, %v339
      %v352 = vsub.f32 %v321, %v339
      %v353 = vsub.f32 %v322, %v339
      %v354 = vsub.f32 %v323, %v339
      %v355 = vsub.f32 %v324, %v339
      %v356 = vsub.f32 %v325, %v339
      %v357 = vsub.f32 %v326, %v339
      %v358 = vsub.f32 %v327, %v339
      %v359 = vsub.f32 %v328, %v339
      %v360 = vsub.f32 %v329, %v339
      %v361 = vsub.f32 %v330, %v339
      %v362 = vsub.f32 %v331, %v339
      %v363 = vsub.f32 %v332, %v339
      %v364 = vsub.f32 %v333, %v339
      %v365 = vsub.f32 %v334, %v339
      %v366 = vsub.f32 %v335, %v339
      %v367 = vsub.f32 %v336, %v339
      %v368 = vsub.f32 %v337, %v339
      %v369 = vsub.f32 %v338, %v339
      %v370 = vperm.slane %v308, 1
      %v371 = vmul.f32 %v340, %v370
      %v372 = vmul.f32 %v341, %v370
      %v373 = vmul.f32 %v342, %v370
      %v374 = vmul.f32 %v343, %v370
      %v375 = vmul.f32 %v344, %v370
      %v376 = vmul.f32 %v345, %v370
      %v377 = vmul.f32 %v346, %v370
      %v378 = vmul.f32 %v347, %v370
      %v379 = vmul.f32 %v348, %v370
      %v380 = vmul.f32 %v349, %v370
      %v381 = vmul.f32 %v350, %v370
      %v382 = vmul.f32 %v351, %v370
      %v383 = vmul.f32 %v352, %v370
      %v384 = vmul.f32 %v353, %v370
      %v385 = vmul.f32 %v354, %v370
      %v386 = vmul.f32 %v355, %v370
      %v387 = vmul.f32 %v356, %v370
      %v388 = vmul.f32 %v357, %v370
      %v389 = vmul.f32 %v358, %v370
      %v390 = vmul.f32 %v359, %v370
      %v391 = vmul.f32 %v360, %v370
      %v392 = vmul.f32 %v361, %v370
      %v393 = vmul.f32 %v362, %v370
      %v394 = vmul.f32 %v363, %v370
      %v395 = vmul.f32 %v364, %v370
      %v396 = vmul.f32 %v365, %v370
      %v397 = vmul.f32 %v366, %v370
      %v398 = vmul.f32 %v367, %v370
      %v399 = vmul.f32 %v368, %v370
      %v400 = vmul.f32 %v369, %v370
      %v401 = vmax.f32 %v371, 0.0
      %v402 = vmax.f32 %v372, 0.0
      %v403 = vmax.f32 %v373, 0.0
      %v404 = vmax.f32 %v374, 0.0
      %v405 = vmax.f32 %v375, 0.0
      %v406 = vmax.f32 %v376, 0.0
      %v407 = vmax.f32 %v377, 0.0
      %v408 = vmax.f32 %v378, 0.0
      %v409 = vmax.f32 %v379, 0.0
      %v410 = vmax.f32 %v380, 0.0
      %v411 = vmax.f32 %v381, 0.0
      %v412 = vmax.f32 %v382, 0.0
      %v413 = vmax.f32 %v383, 0.0
      %v414 = vmax.f32 %v384, 0.0
      %v415 = vmax.f32 %v385, 0.0
      %v416 = vmax.f32 %v386, 0.0
      %v417 = vmax.f32 %v387, 0.0
      %v418 = vmax.f32 %v388, 0.0
      %v419 = vmax.f32 %v389, 0.0
      %v420 = vmax.f32 %v390, 0.0
      %v421 = vmax.f32 %v391, 0.0
      %v422 = vmax.f32 %v392, 0.0
      %v423 = vmax.f32 %v393, 0.0
      %v424 = vmax.f32 %v394, 0.0
      %v425 = vmax.f32 %v395, 0.0
      %v426 = vmax.f32 %v396, 0.0
      %v427 = vmax.f32 %v397, 0.0
      %v428 = vmax.f32 %v398, 0.0
      %v429 = vmax.f32 %v399, 0.0
      %v430 = vmax.f32 %v400, 0.0
      %v431 = vpack.c.bf16 %v401, %v401
      %v432 = vpack.c.bf16 %v402, %v402
      %v433 = vpack.c.bf16 %v403, %v403
      %v434 = vpack.c.bf16 %v404, %v404
      %v435 = vpack.c.bf16 %v405, %v405
      %v436 = vpack.c.bf16 %v406, %v406
      %v437 = vpack.c.bf16 %v407, %v407
      %v438 = vpack.c.bf16 %v408, %v408
      %v439 = vpack.c.bf16 %v409, %v409
      %v440 = vpack.c.bf16 %v410, %v410
      %v441 = vpack.c.bf16 %v411, %v411
      %v442 = vpack.c.bf16 %v412, %v412
      %v443 = vpack.c.bf16 %v413, %v413
      %v444 = vpack.c.bf16 %v414, %v414
      %v445 = vpack.c.bf16 %v415, %v415
      %v446 = vpack.c.bf16 %v416, %v416
      %v447 = vpack.c.bf16 %v417, %v417
      %v448 = vpack.c.bf16 %v418, %v418
      %v449 = vpack.c.bf16 %v419, %v419
      %v450 = vpack.c.bf16 %v420, %v420
      %v451 = vpack.c.bf16 %v421, %v421
      %v452 = vpack.c.bf16 %v422, %v422
      %v453 = vpack.c.bf16 %v423, %v423
      %v454 = vpack.c.bf16 %v424, %v424
      %v455 = vpack.c.bf16 %v425, %v425
      %v456 = vpack.c.bf16 %v426, %v426
      %v457 = vpack.c.bf16 %v427, %v427
      %v458 = vpack.c.bf16 %v428, %v428
      %v459 = vpack.c.bf16 %v429, %v429
      %v460 = vpack.c.bf16 %v430, %v430
      %v461 = vld [vmem:[%s2] sm:$0xf]
      %v462 = vld [vmem:[%s2 + $0x4] sm:$0xf]
      %v463 = vld [vmem:[%s2 + $0x8] sm:$0xf]
      %v464 = vld [vmem:[%s2 + $0xc] sm:$0xf]
      %v465 = vld [vmem:[%s2 + $0x10] sm:$0xf]
      %v466 = vld [vmem:[%s2 + $0x14] sm:$0xf]
      %v467 = vld [vmem:[%s2 + $0x18] sm:$0xf]
      %v468 = vld [vmem:[%s2 + $0x1c] sm:$0xf]
      %v469 = vld [vmem:[%s2 + $0x20] sm:$0xf]
      %v470 = vld [vmem:[%s2 + $0x24] sm:$0xf]
      %v471 = vld [vmem:[%s2 + $0x28] sm:$0xf]
      %v472 = vld [vmem:[%s2 + $0x2c] sm:$0xf]
      %v473 = vld [vmem:[%s2 + $0x30] sm:$0xf]
      %v474 = vld [vmem:[%s2 + $0x34] sm:$0xf]
      %v475 = vld [vmem:[%s2 + $0x38] sm:$0xf]
      %v476 = vld [vmem:[%s2 + $0x3c] sm:$0xf]
      %vm477 = vsmask.f32 3328
      %vm478 = vsmask.f32 7440
      %vm479 = vmor %vm477, %vm478
      %v481 = vshrl.u32 %v431, 16
      %v483 = vrot.slane %v481, 4
      %v484 = vshll.u32 %v431, 16
      %v486 = vrot.slane %v484, 5
      %v487 = vor.u32 %v483, %v486
      %v488 = vrot.slane %v487, 4
      %v490 = vshll.u32 %v432, 16
      %v492 = vrot.slane %v490, 5
      %v493 = vsel %vm479, %v488, %v492
      %v494 = vshrl.u32 %v432, 16
      %v496 = vrot.slane %v494, 4
      %v497 = vor.u32 %v496, %v492
      %v498 = vrot.slane %v497, 4
      %v500 = vshll.u32 %v433, 16
      %v502 = vrot.slane %v500, 5
      %v503 = vsel %vm479, %v498, %v502
      %v505 = vshrl.u32 %v434, 16
      %v507 = vrot.slane %v505, 4
      %v508 = vshll.u32 %v434, 16
      %v510 = vrot.slane %v508, 5
      %v511 = vor.u32 %v507, %v510
      %v512 = vrot.slane %v511, 4
      %v514 = vshll.u32 %v435, 16
      %v516 = vrot.slane %v514, 5
      %v517 = vsel %vm479, %v512, %v516
      %v518 = vshrl.u32 %v435, 16
      %v520 = vrot.slane %v518, 4
      %v521 = vor.u32 %v520, %v516
      %v522 = vrot.slane %v521, 4
      %v524 = vshll.u32 %v436, 16
      %v526 = vrot.slane %v524, 5
      %v527 = vsel %vm479, %v522, %v526
      %v529 = vshrl.u32 %v437, 16
      %v531 = vrot.slane %v529, 4
      %v532 = vshll.u32 %v437, 16
      %v534 = vrot.slane %v532, 5
      %v535 = vor.u32 %v531, %v534
      %v536 = vrot.slane %v535, 4
      %v538 = vshll.u32 %v438, 16
      %v540 = vrot.slane %v538, 5
      %v541 = vsel %vm479, %v536, %v540
      %v542 = vshrl.u32 %v438, 16
      %v544 = vrot.slane %v542, 4
      %v545 = vor.u32 %v544, %v540
      %v546 = vrot.slane %v545, 4
      %v548 = vshll.u32 %v439, 16
      %v550 = vrot.slane %v548, 5
      %v551 = vsel %vm479, %v546, %v550
      %v553 = vshrl.u32 %v440, 16
      %v555 = vrot.slane %v553, 4
      %v556 = vshll.u32 %v440, 16
      %v558 = vrot.slane %v556, 5
      %v559 = vor.u32 %v555, %v558
      %v560 = vrot.slane %v559, 4
      %v562 = vshll.u32 %v441, 16
      %v564 = vrot.slane %v562, 5
      %v565 = vsel %vm479, %v560, %v564
      %v566 = vshrl.u32 %v441, 16
      %v568 = vrot.slane %v566, 4
      %v569 = vor.u32 %v568, %v564
      %v570 = vrot.slane %v569, 4
      %v572 = vshll.u32 %v442, 16
      %v574 = vrot.slane %v572, 5
      %v575 = vsel %vm479, %v570, %v574
      %v577 = vshrl.u32 %v443, 16
      %v579 = vrot.slane %v577, 4
      %v580 = vshll.u32 %v443, 16
      %v582 = vrot.slane %v580, 5
      %v583 = vor.u32 %v579, %v582
      %v584 = vrot.slane %v583, 4
      %v586 = vshll.u32 %v444, 16
      %v588 = vrot.slane %v586, 5
      %v589 = vsel %vm479, %v584, %v588
      %v590 = vshrl.u32 %v444, 16
      %v592 = vrot.slane %v590, 4
      %v593 = vor.u32 %v592, %v588
      %v594 = vrot.slane %v593, 4
      %v596 = vshll.u32 %v445, 16
      %v598 = vrot.slane %v596, 5
      %v599 = vsel %vm479, %v594, %v598
      %v601 = vshrl.u32 %v446, 16
      %v603 = vrot.slane %v601, 4
      %v604 = vshll.u32 %v446, 16
      %v606 = vrot.slane %v604, 5
      %v607 = vor.u32 %v603, %v606
      %v608 = vrot.slane %v607, 4
      %v610 = vshll.u32 %v447, 16
      %v612 = vrot.slane %v610, 5
      %v613 = vsel %vm479, %v608, %v612
      %v614 = vshrl.u32 %v447, 16
      %v616 = vrot.slane %v614, 4
      %v617 = vor.u32 %v616, %v612
      %v618 = vrot.slane %v617, 4
      %v620 = vshll.u32 %v448, 16
      %v622 = vrot.slane %v620, 5
      %v623 = vsel %vm479, %v618, %v622
      %v625 = vshrl.u32 %v449, 16
      %v627 = vrot.slane %v625, 4
      %v628 = vshll.u32 %v449, 16
      %v630 = vrot.slane %v628, 5
      %v631 = vor.u32 %v627, %v630
      %v632 = vrot.slane %v631, 4
      %v634 = vshll.u32 %v450, 16
      %v636 = vrot.slane %v634, 5
      %v637 = vsel %vm479, %v632, %v636
      %v638 = vshrl.u32 %v450, 16
      %v640 = vrot.slane %v638, 4
      %v641 = vor.u32 %v640, %v636
      %v642 = vrot.slane %v641, 4
      %v644 = vshll.u32 %v451, 16
      %v646 = vrot.slane %v644, 5
      %v647 = vsel %vm479, %v642, %v646
      %v649 = vshrl.u32 %v452, 16
      %v651 = vrot.slane %v649, 4
      %v652 = vshll.u32 %v452, 16
      %v654 = vrot.slane %v652, 5
      %v655 = vor.u32 %v651, %v654
      %v656 = vrot.slane %v655, 4
      %v658 = vshll.u32 %v453, 16
      %v660 = vrot.slane %v658, 5
      %v661 = vsel %vm479, %v656, %v660
      %v662 = vshrl.u32 %v453, 16
      %v664 = vrot.slane %v662, 4
      %v665 = vor.u32 %v664, %v660
      %v666 = vrot.slane %v665, 4
      %v668 = vshll.u32 %v454, 16
      %v670 = vrot.slane %v668, 5
      %v671 = vsel %vm479, %v666, %v670
      %s672 = scalar_lea.vmem %s2, 64
      %v673 = vld [vmem:[%s672] sm:$0xf]
      %v674 = vld [vmem:[%s672 + $0x4] sm:$0xf]
      %v675 = vld [vmem:[%s672 + $0x8] sm:$0xf]
      %v676 = vld [vmem:[%s672 + $0xc] sm:$0xf]
      %v677 = vld [vmem:[%s672 + $0x10] sm:$0xf]
      %v678 = vld [vmem:[%s672 + $0x14] sm:$0xf]
      %v679 = vld [vmem:[%s672 + $0x18] sm:$0xf]
      %v680 = vld [vmem:[%s672 + $0x1c] sm:$0xf]
      %v681 = vld [vmem:[%s672 + $0x20] sm:$0xf]
      %v682 = vld [vmem:[%s672 + $0x24] sm:$0xf]
      %v683 = vld [vmem:[%s672 + $0x28] sm:$0xf]
      %v684 = vld [vmem:[%s672 + $0x2c] sm:$0xf]
      %v685 = vld [vmem:[%s672 + $0x30] sm:$0xf]
      %v686 = vld [vmem:[%s672 + $0x34] sm:$0xf]
      %v687 = vld [vmem:[%s672 + $0x38] sm:$0xf]
      %v688 = vld [vmem:[%s672 + $0x3c] sm:$0xf]
      %v689 = vunpack.c.l.b16 %v493
      %v690 = vunpack.c.l.b16 %v503
      %v691 = vunpack.c.l.b16 %v517
      %v692 = vunpack.c.l.b16 %v527
      %v693 = vunpack.c.l.b16 %v541
      %v694 = vunpack.c.l.b16 %v551
      %v695 = vunpack.c.l.b16 %v565
      %v696 = vunpack.c.l.b16 %v575
      %v697 = vunpack.c.l.b16 %v589
      %v698 = vunpack.c.l.b16 %v599
      %v699 = vunpack.c.l.b16 %v613
      %v700 = vunpack.c.l.b16 %v623
      %v701 = vunpack.c.l.b16 %v637
      %v702 = vunpack.c.l.b16 %v647
      %v703 = vunpack.c.l.b16 %v661
      %v704 = vunpack.c.l.b16 %v671
      %v705 = vpack.c.b16 %v690, %v689
      %v706 = vpack.c.b16 %v692, %v691
      %v707 = vpack.c.b16 %v694, %v693
      %v708 = vpack.c.b16 %v696, %v695
      %v709 = vpack.c.b16 %v698, %v697
      %v710 = vpack.c.b16 %v700, %v699
      %v711 = vpack.c.b16 %v702, %v701
      %v712 = vpack.c.b16 %v704, %v703
      %v737 = vunpack.c.l.b16 %v673
      %v738 = vunpack.c.l.b16 %v674
      %v739 = vunpack.c.l.b16 %v675
      %v740 = vunpack.c.l.b16 %v676
      %v741 = vunpack.c.l.b16 %v677
      %v742 = vunpack.c.l.b16 %v678
      %v743 = vunpack.c.l.b16 %v679
      %v744 = vunpack.c.l.b16 %v680
      %v745 = vunpack.c.l.b16 %v681
      %v746 = vunpack.c.l.b16 %v682
      %v747 = vunpack.c.l.b16 %v683
      %v748 = vunpack.c.l.b16 %v684
      %v749 = vunpack.c.l.b16 %v685
      %v750 = vunpack.c.l.b16 %v686
      %v751 = vunpack.c.l.b16 %v687
      %v752 = vunpack.c.l.b16 %v688
      %v753 = vpack.c.b16 %v738, %v737
      %v754 = vpack.c.b16 %v740, %v739
      %v755 = vpack.c.b16 %v742, %v741
      %v756 = vpack.c.b16 %v744, %v743
      %v757 = vpack.c.b16 %v746, %v745
      %v758 = vpack.c.b16 %v748, %v747
      %v759 = vpack.c.b16 %v750, %v749
      %v760 = vpack.c.b16 %v752, %v751
      %769 = vmatpush.bf16.msra.mxu0 %v760
      %770 = vmatpush.bf16.msra.mxu0 %v759
      %771 = vmatpush.bf16.msra.mxu0 %v758
      %772 = vmatpush.bf16.msra.mxu0 %v757
      %773 = vmatpush.bf16.msra.mxu0 %v756
      %774 = vmatpush.bf16.msra.mxu0 %v755
      %775 = vmatpush.bf16.msra.mxu0 %v754
      %776 = vmatpush.bf16.msra.mxu0 %v753
      %777 = vmatmul.bf16.gmra.mxu0 %v705
      %v778 = vpop.f32.mrf.mxu0
      %v779 = vadd.f32 0.0, %v778
      %v780 = vpop.f32.mrf.mxu0
      %v781 = vadd.f32 0.0, %v780
      %782 = vmatmul.bf16.gmra.mxu0 %v706
      %v783 = vpop.f32.mrf.mxu0
      %v784 = vadd.f32 0.0, %v783
      %v785 = vpop.f32.mrf.mxu0
      %v786 = vadd.f32 0.0, %v785
      %787 = vmatmul.bf16.gmra.mxu0 %v707
      %v788 = vpop.f32.mrf.mxu0
      %v789 = vadd.f32 0.0, %v788
      %v790 = vpop.f32.mrf.mxu0
      %v791 = vadd.f32 0.0, %v790
      %792 = vmatmul.bf16.gmra.mxu0 %v708
      %v793 = vpop.f32.mrf.mxu0
      %v794 = vadd.f32 0.0, %v793
      %v795 = vpop.f32.mrf.mxu0
      %v796 = vadd.f32 0.0, %v795
      %797 = vmatmul.bf16.gmra.mxu0 %v709
      %v798 = vpop.f32.mrf.mxu0
      %v799 = vadd.f32 0.0, %v798
      %v800 = vpop.f32.mrf.mxu0
      %v801 = vadd.f32 0.0, %v800
      %802 = vmatmul.bf16.gmra.mxu0 %v710
      %v803 = vpop.f32.mrf.mxu0
      %v804 = vadd.f32 0.0, %v803
      %v805 = vpop.f32.mrf.mxu0
      %v806 = vadd.f32 0.0, %v805
      %807 = vmatmul.bf16.gmra.mxu0 %v711
      %v808 = vpop.f32.mrf.mxu0
      %v809 = vadd.f32 0.0, %v808
      %v810 = vpop.f32.mrf.mxu0
      %v811 = vadd.f32 0.0, %v810
      %812 = vmatmul.bf16.gmra.mxu0 %v712
      %v813 = vpop.f32.mrf.mxu0
      %v814 = vadd.f32 0.0, %v813
      %v815 = vpop.f32.mrf.mxu0
      %v816 = vadd.f32 0.0, %v815
      %817 = vdwg.mxu0
      %v834 = vunpack.c.l.b16 %v431
      %v835 = vunpack.c.l.b16 %v432
      %v836 = vunpack.c.l.b16 %v434
      %v837 = vunpack.c.l.b16 %v435
      %v838 = vunpack.c.l.b16 %v437
      %v839 = vunpack.c.l.b16 %v438
      %v840 = vunpack.c.l.b16 %v440
      %v841 = vunpack.c.l.b16 %v441
      %v842 = vunpack.c.l.b16 %v443
      %v843 = vunpack.c.l.b16 %v444
      %v844 = vunpack.c.l.b16 %v446
      %v845 = vunpack.c.l.b16 %v447
      %v846 = vunpack.c.l.b16 %v449
      %v847 = vunpack.c.l.b16 %v450
      %v848 = vunpack.c.l.b16 %v452
      %v849 = vunpack.c.l.b16 %v453
      %v850 = vpack.c.b16 %v835, %v834
      %v851 = vpack.c.b16 %v837, %v836
      %v852 = vpack.c.b16 %v839, %v838
      %v853 = vpack.c.b16 %v841, %v840
      %v854 = vpack.c.b16 %v843, %v842
      %v855 = vpack.c.b16 %v845, %v844
      %v856 = vpack.c.b16 %v847, %v846
      %v857 = vpack.c.b16 %v849, %v848
      %v882 = vunpack.c.l.b16 %v461
      %v883 = vunpack.c.l.b16 %v462
      %v884 = vunpack.c.l.b16 %v463
      %v885 = vunpack.c.l.b16 %v464
      %v886 = vunpack.c.l.b16 %v465
      %v887 = vunpack.c.l.b16 %v466
      %v888 = vunpack.c.l.b16 %v467
      %v889 = vunpack.c.l.b16 %v468
      %v890 = vunpack.c.l.b16 %v469
      %v891 = vunpack.c.l.b16 %v470
      %v892 = vunpack.c.l.b16 %v471
      %v893 = vunpack.c.l.b16 %v472
      %v894 = vunpack.c.l.b16 %v473
      %v895 = vunpack.c.l.b16 %v474
      %v896 = vunpack.c.l.b16 %v475
      %v897 = vunpack.c.l.b16 %v476
      %v898 = vpack.c.b16 %v883, %v882
      %v899 = vpack.c.b16 %v885, %v884
      %v900 = vpack.c.b16 %v887, %v886
      %v901 = vpack.c.b16 %v889, %v888
      %v902 = vpack.c.b16 %v891, %v890
      %v903 = vpack.c.b16 %v893, %v892
      %v904 = vpack.c.b16 %v895, %v894
      %v905 = vpack.c.b16 %v897, %v896
      %914 = vmatpush.bf16.msra.mxu0 %v905
      %915 = vmatpush.bf16.msra.mxu0 %v904
      %916 = vmatpush.bf16.msra.mxu0 %v903
      %917 = vmatpush.bf16.msra.mxu0 %v902
      %918 = vmatpush.bf16.msra.mxu0 %v901
      %919 = vmatpush.bf16.msra.mxu0 %v900
      %920 = vmatpush.bf16.msra.mxu0 %v899
      %921 = vmatpush.bf16.msra.mxu0 %v898
      %922 = vmatmul.bf16.gmra.mxu0 %v850
      %v923 = vpop.f32.mrf.mxu0
      %v924 = vadd.f32 %v779, %v923
      %v925 = vpop.f32.mrf.mxu0
      %v926 = vadd.f32 %v781, %v925
      %927 = vmatmul.bf16.gmra.mxu0 %v851
      %v928 = vpop.f32.mrf.mxu0
      %v929 = vadd.f32 %v784, %v928
      %v930 = vpop.f32.mrf.mxu0
      %v931 = vadd.f32 %v786, %v930
      %932 = vmatmul.bf16.gmra.mxu0 %v852
      %v933 = vpop.f32.mrf.mxu0
      %v934 = vadd.f32 %v789, %v933
      %v935 = vpop.f32.mrf.mxu0
      %v936 = vadd.f32 %v791, %v935
      %937 = vmatmul.bf16.gmra.mxu0 %v853
      %v938 = vpop.f32.mrf.mxu0
      %v939 = vadd.f32 %v794, %v938
      %v940 = vpop.f32.mrf.mxu0
      %v941 = vadd.f32 %v796, %v940
      %942 = vmatmul.bf16.gmra.mxu0 %v854
      %v943 = vpop.f32.mrf.mxu0
      %v944 = vadd.f32 %v799, %v943
      %v945 = vpop.f32.mrf.mxu0
      %v946 = vadd.f32 %v801, %v945
      %947 = vmatmul.bf16.gmra.mxu0 %v855
      %v948 = vpop.f32.mrf.mxu0
      %v949 = vadd.f32 %v804, %v948
      %v950 = vpop.f32.mrf.mxu0
      %v951 = vadd.f32 %v806, %v950
      %952 = vmatmul.bf16.gmra.mxu0 %v856
      %v953 = vpop.f32.mrf.mxu0
      %v954 = vadd.f32 %v809, %v953
      %v955 = vpop.f32.mrf.mxu0
      %v956 = vadd.f32 %v811, %v955
      %957 = vmatmul.bf16.gmra.mxu0 %v857
      %v958 = vpop.f32.mrf.mxu0
      %v959 = vadd.f32 %v814, %v958
      %v960 = vpop.f32.mrf.mxu0
      %v961 = vadd.f32 %v816, %v960
      %962 = vdwg.mxu0
      %vm971 = vcmask 1042432
      %vm972 = vcmask 1046532
      %vm973 = vmor %vm971, %vm972
      %v974 = vrot.slane %v431, 5
      %v975 = vrot.slane %v974, 4
      %v976 = vrot.slane %v432, 5
      %v977 = vsel %vm973, %v975, %v976
      %v978 = vrot.slane %v976, 4
      %v979 = vrot.slane %v433, 5
      %v980 = vsel %vm973, %v978, %v979
      %v981 = vrot.slane %v434, 5
      %v982 = vrot.slane %v981, 4
      %v983 = vrot.slane %v435, 5
      %v984 = vsel %vm973, %v982, %v983
      %v985 = vrot.slane %v983, 4
      %v986 = vrot.slane %v436, 5
      %v987 = vsel %vm973, %v985, %v986
      %v988 = vrot.slane %v437, 5
      %v989 = vrot.slane %v988, 4
      %v990 = vrot.slane %v438, 5
      %v991 = vsel %vm973, %v989, %v990
      %v992 = vrot.slane %v990, 4
      %v993 = vrot.slane %v439, 5
      %v994 = vsel %vm973, %v992, %v993
      %v995 = vrot.slane %v440, 5
      %v996 = vrot.slane %v995, 4
      %v997 = vrot.slane %v441, 5
      %v998 = vsel %vm973, %v996, %v997
      %v999 = vrot.slane %v997, 4
      %v1000 = vrot.slane %v442, 5
      %v1001 = vsel %vm973, %v999, %v1000
      %v1002 = vrot.slane %v443, 5
      %v1003 = vrot.slane %v1002, 4
      %v1004 = vrot.slane %v444, 5
      %v1005 = vsel %vm973, %v1003, %v1004
      %v1006 = vrot.slane %v1004, 4
      %v1007 = vrot.slane %v445, 5
      %v1008 = vsel %vm973, %v1006, %v1007
      %v1009 = vrot.slane %v446, 5
      %v1010 = vrot.slane %v1009, 4
      %v1011 = vrot.slane %v447, 5
      %v1012 = vsel %vm973, %v1010, %v1011
      %v1013 = vrot.slane %v1011, 4
      %v1014 = vrot.slane %v448, 5
      %v1015 = vsel %vm973, %v1013, %v1014
      %v1016 = vrot.slane %v449, 5
      %v1017 = vrot.slane %v1016, 4
      %v1018 = vrot.slane %v450, 5
      %v1019 = vsel %vm973, %v1017, %v1018
      %v1020 = vrot.slane %v1018, 4
      %v1021 = vrot.slane %v451, 5
      %v1022 = vsel %vm973, %v1020, %v1021
      %v1023 = vrot.slane %v452, 5
      %v1024 = vrot.slane %v1023, 4
      %v1025 = vrot.slane %v453, 5
      %v1026 = vsel %vm973, %v1024, %v1025
      %v1027 = vrot.slane %v1025, 4
      %v1028 = vrot.slane %v454, 5
      %v1029 = vsel %vm973, %v1027, %v1028
      %s1030 = scalar_lea.vmem %s2, 128
      %v1031 = vld [vmem:[%s1030] sm:$0xf]
      %v1032 = vld [vmem:[%s1030 + $0x4] sm:$0xf]
      %v1033 = vld [vmem:[%s1030 + $0x8] sm:$0xf]
      %v1034 = vld [vmem:[%s1030 + $0xc] sm:$0xf]
      %v1035 = vld [vmem:[%s1030 + $0x10] sm:$0xf]
      %v1036 = vld [vmem:[%s1030 + $0x14] sm:$0xf]
      %v1037 = vld [vmem:[%s1030 + $0x18] sm:$0xf]
      %v1038 = vld [vmem:[%s1030 + $0x1c] sm:$0xf]
      %v1039 = vld [vmem:[%s1030 + $0x20] sm:$0xf]
      %v1040 = vld [vmem:[%s1030 + $0x24] sm:$0xf]
      %v1041 = vld [vmem:[%s1030 + $0x28] sm:$0xf]
      %v1042 = vld [vmem:[%s1030 + $0x2c] sm:$0xf]
      %v1043 = vld [vmem:[%s1030 + $0x30] sm:$0xf]
      %v1044 = vld [vmem:[%s1030 + $0x34] sm:$0xf]
      %v1045 = vld [vmem:[%s1030 + $0x38] sm:$0xf]
      %v1046 = vld [vmem:[%s1030 + $0x3c] sm:$0xf]
      %v1047 = vunpack.c.l.b16 %v977
      %v1048 = vunpack.c.l.b16 %v980
      %v1049 = vunpack.c.l.b16 %v984
      %v1050 = vunpack.c.l.b16 %v987
      %v1051 = vunpack.c.l.b16 %v991
      %v1052 = vunpack.c.l.b16 %v994
      %v1053 = vunpack.c.l.b16 %v998
      %v1054 = vunpack.c.l.b16 %v1001
      %v1055 = vunpack.c.l.b16 %v1005
      %v1056 = vunpack.c.l.b16 %v1008
      %v1057 = vunpack.c.l.b16 %v1012
      %v1058 = vunpack.c.l.b16 %v1015
      %v1059 = vunpack.c.l.b16 %v1019
      %v1060 = vunpack.c.l.b16 %v1022
      %v1061 = vunpack.c.l.b16 %v1026
      %v1062 = vunpack.c.l.b16 %v1029
      %v1063 = vpack.c.b16 %v1048, %v1047
      %v1064 = vpack.c.b16 %v1050, %v1049
      %v1065 = vpack.c.b16 %v1052, %v1051
      %v1066 = vpack.c.b16 %v1054, %v1053
      %v1067 = vpack.c.b16 %v1056, %v1055
      %v1068 = vpack.c.b16 %v1058, %v1057
      %v1069 = vpack.c.b16 %v1060, %v1059
      %v1070 = vpack.c.b16 %v1062, %v1061
      %v1095 = vunpack.c.l.b16 %v1031
      %v1096 = vunpack.c.l.b16 %v1032
      %v1097 = vunpack.c.l.b16 %v1033
      %v1098 = vunpack.c.l.b16 %v1034
      %v1099 = vunpack.c.l.b16 %v1035
      %v1100 = vunpack.c.l.b16 %v1036
      %v1101 = vunpack.c.l.b16 %v1037
      %v1102 = vunpack.c.l.b16 %v1038
      %v1103 = vunpack.c.l.b16 %v1039
      %v1104 = vunpack.c.l.b16 %v1040
      %v1105 = vunpack.c.l.b16 %v1041
      %v1106 = vunpack.c.l.b16 %v1042
      %v1107 = vunpack.c.l.b16 %v1043
      %v1108 = vunpack.c.l.b16 %v1044
      %v1109 = vunpack.c.l.b16 %v1045
      %v1110 = vunpack.c.l.b16 %v1046
      %v1111 = vpack.c.b16 %v1096, %v1095
      %v1112 = vpack.c.b16 %v1098, %v1097
      %v1113 = vpack.c.b16 %v1100, %v1099
      %v1114 = vpack.c.b16 %v1102, %v1101
      %v1115 = vpack.c.b16 %v1104, %v1103
      %v1116 = vpack.c.b16 %v1106, %v1105
      %v1117 = vpack.c.b16 %v1108, %v1107
      %v1118 = vpack.c.b16 %v1110, %v1109
      %1127 = vmatpush.bf16.msra.mxu0 %v1118
      %1128 = vmatpush.bf16.msra.mxu0 %v1117
      %1129 = vmatpush.bf16.msra.mxu0 %v1116
      %1130 = vmatpush.bf16.msra.mxu0 %v1115
      %1131 = vmatpush.bf16.msra.mxu0 %v1114
      %1132 = vmatpush.bf16.msra.mxu0 %v1113
      %1133 = vmatpush.bf16.msra.mxu0 %v1112
      %1134 = vmatpush.bf16.msra.mxu0 %v1111
      %1135 = vmatmul.bf16.gmra.mxu0 %v1063
      %v1136 = vpop.f32.mrf.mxu0
      %v1137 = vadd.f32 0.0, %v1136
      %v1138 = vpop.f32.mrf.mxu0
      %v1139 = vadd.f32 0.0, %v1138
      %1140 = vmatmul.bf16.gmra.mxu0 %v1064
      %v1141 = vpop.f32.mrf.mxu0
      %v1142 = vadd.f32 0.0, %v1141
      %v1143 = vpop.f32.mrf.mxu0
      %v1144 = vadd.f32 0.0, %v1143
      %1145 = vmatmul.bf16.gmra.mxu0 %v1065
      %v1146 = vpop.f32.mrf.mxu0
      %v1147 = vadd.f32 0.0, %v1146
      %v1148 = vpop.f32.mrf.mxu0
      %v1149 = vadd.f32 0.0, %v1148
      %1150 = vmatmul.bf16.gmra.mxu0 %v1066
      %v1151 = vpop.f32.mrf.mxu0
      %v1152 = vadd.f32 0.0, %v1151
      %v1153 = vpop.f32.mrf.mxu0
      %v1154 = vadd.f32 0.0, %v1153
      %1155 = vmatmul.bf16.gmra.mxu0 %v1067
      %v1156 = vpop.f32.mrf.mxu0
      %v1157 = vadd.f32 0.0, %v1156
      %v1158 = vpop.f32.mrf.mxu0
      %v1159 = vadd.f32 0.0, %v1158
      %1160 = vmatmul.bf16.gmra.mxu0 %v1068
      %v1161 = vpop.f32.mrf.mxu0
      %v1162 = vadd.f32 0.0, %v1161
      %v1163 = vpop.f32.mrf.mxu0
      %v1164 = vadd.f32 0.0, %v1163
      %1165 = vmatmul.bf16.gmra.mxu0 %v1069
      %v1166 = vpop.f32.mrf.mxu0
      %v1167 = vadd.f32 0.0, %v1166
      %v1168 = vpop.f32.mrf.mxu0
      %v1169 = vadd.f32 0.0, %v1168
      %1170 = vmatmul.bf16.gmra.mxu0 %v1070
      %v1171 = vpop.f32.mrf.mxu0
      %v1172 = vadd.f32 0.0, %v1171
      %v1173 = vpop.f32.mrf.mxu0
      %v1174 = vadd.f32 0.0, %v1173
      %1175 = vdwg.mxu0
      %v1176 = vadd.f32 %v924, %v1137
      %v1177 = vadd.f32 %v926, %v1139
      %v1178 = vadd.f32 %v929, %v1142
      %v1179 = vadd.f32 %v931, %v1144
      %v1180 = vadd.f32 %v934, %v1147
      %v1181 = vadd.f32 %v936, %v1149
      %v1182 = vadd.f32 %v939, %v1152
      %v1183 = vadd.f32 %v941, %v1154
      %v1184 = vadd.f32 %v944, %v1157
      %v1185 = vadd.f32 %v946, %v1159
      %v1186 = vadd.f32 %v949, %v1162
      %v1187 = vadd.f32 %v951, %v1164
      %v1188 = vadd.f32 %v954, %v1167
      %v1189 = vadd.f32 %v956, %v1169
      %v1190 = vadd.f32 %v959, %v1172
      %v1191 = vadd.f32 %v961, %v1174
      %s1192 = scalar_lea.vmem %s2, 192
      %v1193 = vld [vmem:[%s1192] sm:$0xf]
      %v1194 = vld [vmem:[%s1192 + $0x4] sm:$0xf]
      %v1195 = vld [vmem:[%s1192 + $0x8] sm:$0xf]
      %v1196 = vld [vmem:[%s1192 + $0xc] sm:$0xf]
      %v1197 = vld [vmem:[%s1192 + $0x10] sm:$0xf]
      %v1198 = vld [vmem:[%s1192 + $0x14] sm:$0xf]
      %v1199 = vld [vmem:[%s1192 + $0x18] sm:$0xf]
      %v1200 = vld [vmem:[%s1192 + $0x1c] sm:$0xf]
      %v1201 = vld [vmem:[%s1192 + $0x20] sm:$0xf]
      %v1202 = vld [vmem:[%s1192 + $0x24] sm:$0xf]
      %v1203 = vld [vmem:[%s1192 + $0x28] sm:$0xf]
      %v1204 = vld [vmem:[%s1192 + $0x2c] sm:$0xf]
      %v1205 = vld [vmem:[%s1192 + $0x30] sm:$0xf]
      %v1206 = vld [vmem:[%s1192 + $0x34] sm:$0xf]
      %v1207 = vld [vmem:[%s1192 + $0x38] sm:$0xf]
      %v1208 = vld [vmem:[%s1192 + $0x3c] sm:$0xf]
      %v1211 = vunpack.c.l.b16 %v455
      %v1212 = vunpack.c.l.b16 %v456
      %v1213 = vpack.c.b16 %v1212, %v1211
      %v1231 = vunpack.c.l.b16 %v1193
      %v1232 = vunpack.c.l.b16 %v1194
      %v1233 = vunpack.c.l.b16 %v1195
      %v1234 = vunpack.c.l.b16 %v1196
      %v1235 = vunpack.c.l.b16 %v1197
      %v1236 = vunpack.c.l.b16 %v1198
      %v1237 = vunpack.c.l.b16 %v1199
      %v1238 = vunpack.c.l.b16 %v1200
      %v1239 = vunpack.c.l.b16 %v1201
      %v1240 = vunpack.c.l.b16 %v1202
      %v1241 = vunpack.c.l.b16 %v1203
      %v1242 = vunpack.c.l.b16 %v1204
      %v1243 = vunpack.c.l.b16 %v1205
      %v1244 = vunpack.c.l.b16 %v1206
      %v1245 = vunpack.c.l.b16 %v1207
      %v1246 = vunpack.c.l.b16 %v1208
      %v1247 = vpack.c.b16 %v1232, %v1231
      %v1248 = vpack.c.b16 %v1234, %v1233
      %v1249 = vpack.c.b16 %v1236, %v1235
      %v1250 = vpack.c.b16 %v1238, %v1237
      %v1251 = vpack.c.b16 %v1240, %v1239
      %v1252 = vpack.c.b16 %v1242, %v1241
      %v1253 = vpack.c.b16 %v1244, %v1243
      %v1254 = vpack.c.b16 %v1246, %v1245
      %1263 = vmatpush.bf16.msra.mxu0 %v1254
      %1264 = vmatpush.bf16.msra.mxu0 %v1253
      %1265 = vmatpush.bf16.msra.mxu0 %v1252
      %1266 = vmatpush.bf16.msra.mxu0 %v1251
      %1267 = vmatpush.bf16.msra.mxu0 %v1250
      %1268 = vmatpush.bf16.msra.mxu0 %v1249
      %1269 = vmatpush.bf16.msra.mxu0 %v1248
      %1270 = vmatpush.bf16.msra.mxu0 %v1247
      %1271 = vmatmul.bf16.gmra.mxu0 %v851
      %v1272 = vpop.f32.mrf.mxu0
      %v1273 = vadd.f32 0.0, %v1272
      %v1274 = vpop.f32.mrf.mxu0
      %v1275 = vadd.f32 0.0, %v1274
      %1276 = vmatmul.bf16.gmra.mxu0 %v852
      %v1277 = vpop.f32.mrf.mxu0
      %v1278 = vadd.f32 0.0, %v1277
      %v1279 = vpop.f32.mrf.mxu0
      %v1280 = vadd.f32 0.0, %v1279
      %1281 = vmatmul.bf16.gmra.mxu0 %v853
      %v1282 = vpop.f32.mrf.mxu0
      %v1283 = vadd.f32 0.0, %v1282
      %v1284 = vpop.f32.mrf.mxu0
      %v1285 = vadd.f32 0.0, %v1284
      %1286 = vmatmul.bf16.gmra.mxu0 %v854
      %v1287 = vpop.f32.mrf.mxu0
      %v1288 = vadd.f32 0.0, %v1287
      %v1289 = vpop.f32.mrf.mxu0
      %v1290 = vadd.f32 0.0, %v1289
      %1291 = vmatmul.bf16.gmra.mxu0 %v855
      %v1292 = vpop.f32.mrf.mxu0
      %v1293 = vadd.f32 0.0, %v1292
      %v1294 = vpop.f32.mrf.mxu0
      %v1295 = vadd.f32 0.0, %v1294
      %1296 = vmatmul.bf16.gmra.mxu0 %v856
      %v1297 = vpop.f32.mrf.mxu0
      %v1298 = vadd.f32 0.0, %v1297
      %v1299 = vpop.f32.mrf.mxu0
      %v1300 = vadd.f32 0.0, %v1299
      %1301 = vmatmul.bf16.gmra.mxu0 %v857
      %v1302 = vpop.f32.mrf.mxu0
      %v1303 = vadd.f32 0.0, %v1302
      %v1304 = vpop.f32.mrf.mxu0
      %v1305 = vadd.f32 0.0, %v1304
      %1306 = vmatmul.bf16.gmra.mxu0 %v1213
      %v1307 = vpop.f32.mrf.mxu0
      %v1308 = vadd.f32 0.0, %v1307
      %v1309 = vpop.f32.mrf.mxu0
      %v1310 = vadd.f32 0.0, %v1309
      %1311 = vdwg.mxu0
      %v1312 = vadd.f32 %v1176, %v1273
      %v1313 = vadd.f32 %v1177, %v1275
      %v1314 = vadd.f32 %v1178, %v1278
      %v1315 = vadd.f32 %v1179, %v1280
      %v1316 = vadd.f32 %v1180, %v1283
      %v1317 = vadd.f32 %v1181, %v1285
      %v1318 = vadd.f32 %v1182, %v1288
      %v1319 = vadd.f32 %v1183, %v1290
      %v1320 = vadd.f32 %v1184, %v1293
      %v1321 = vadd.f32 %v1185, %v1295
      %v1322 = vadd.f32 %v1186, %v1298
      %v1323 = vadd.f32 %v1187, %v1300
      %v1324 = vadd.f32 %v1188, %v1303
      %v1325 = vadd.f32 %v1189, %v1305
      %v1326 = vadd.f32 %v1190, %v1308
      %v1327 = vadd.f32 %v1191, %v1310
      %v1329 = vshrl.u32 %v455, 16
      %v1331 = vrot.slane %v1329, 4
      %v1332 = vshll.u32 %v455, 16
      %v1334 = vrot.slane %v1332, 5
      %v1335 = vor.u32 %v1331, %v1334
      %v1336 = vrot.slane %v1335, 4
      %v1338 = vshll.u32 %v456, 16
      %v1340 = vrot.slane %v1338, 5
      %v1341 = vsel %vm479, %v1336, %v1340
      %v1342 = vshrl.u32 %v456, 16
      %v1344 = vrot.slane %v1342, 4
      %v1345 = vor.u32 %v1344, %v1340
      %v1346 = vrot.slane %v1345, 4
      %v1348 = vshll.u32 %v457, 16
      %v1350 = vrot.slane %v1348, 5
      %v1351 = vsel %vm479, %v1346, %v1350
      %s1352 = scalar_lea.vmem %s2, 256
      %v1353 = vld [vmem:[%s1352] sm:$0xf]
      %v1354 = vld [vmem:[%s1352 + $0x4] sm:$0xf]
      %v1355 = vld [vmem:[%s1352 + $0x8] sm:$0xf]
      %v1356 = vld [vmem:[%s1352 + $0xc] sm:$0xf]
      %v1357 = vld [vmem:[%s1352 + $0x10] sm:$0xf]
      %v1358 = vld [vmem:[%s1352 + $0x14] sm:$0xf]
      %v1359 = vld [vmem:[%s1352 + $0x18] sm:$0xf]
      %v1360 = vld [vmem:[%s1352 + $0x1c] sm:$0xf]
      %v1361 = vld [vmem:[%s1352 + $0x20] sm:$0xf]
      %v1362 = vld [vmem:[%s1352 + $0x24] sm:$0xf]
      %v1363 = vld [vmem:[%s1352 + $0x28] sm:$0xf]
      %v1364 = vld [vmem:[%s1352 + $0x2c] sm:$0xf]
      %v1365 = vld [vmem:[%s1352 + $0x30] sm:$0xf]
      %v1366 = vld [vmem:[%s1352 + $0x34] sm:$0xf]
      %v1367 = vld [vmem:[%s1352 + $0x38] sm:$0xf]
      %v1368 = vld [vmem:[%s1352 + $0x3c] sm:$0xf]
      %v1369 = vunpack.c.l.b16 %v1341
      %v1370 = vunpack.c.l.b16 %v1351
      %v1371 = vpack.c.b16 %v1370, %v1369
      %v1389 = vunpack.c.l.b16 %v1353
      %v1390 = vunpack.c.l.b16 %v1354
      %v1391 = vunpack.c.l.b16 %v1355
      %v1392 = vunpack.c.l.b16 %v1356
      %v1393 = vunpack.c.l.b16 %v1357
      %v1394 = vunpack.c.l.b16 %v1358
      %v1395 = vunpack.c.l.b16 %v1359
      %v1396 = vunpack.c.l.b16 %v1360
      %v1397 = vunpack.c.l.b16 %v1361
      %v1398 = vunpack.c.l.b16 %v1362
      %v1399 = vunpack.c.l.b16 %v1363
      %v1400 = vunpack.c.l.b16 %v1364
      %v1401 = vunpack.c.l.b16 %v1365
      %v1402 = vunpack.c.l.b16 %v1366
      %v1403 = vunpack.c.l.b16 %v1367
      %v1404 = vunpack.c.l.b16 %v1368
      %v1405 = vpack.c.b16 %v1390, %v1389
      %v1406 = vpack.c.b16 %v1392, %v1391
      %v1407 = vpack.c.b16 %v1394, %v1393
      %v1408 = vpack.c.b16 %v1396, %v1395
      %v1409 = vpack.c.b16 %v1398, %v1397
      %v1410 = vpack.c.b16 %v1400, %v1399
      %v1411 = vpack.c.b16 %v1402, %v1401
      %v1412 = vpack.c.b16 %v1404, %v1403
      %1421 = vmatpush.bf16.msra.mxu0 %v1412
      %1422 = vmatpush.bf16.msra.mxu0 %v1411
      %1423 = vmatpush.bf16.msra.mxu0 %v1410
      %1424 = vmatpush.bf16.msra.mxu0 %v1409
      %1425 = vmatpush.bf16.msra.mxu0 %v1408
      %1426 = vmatpush.bf16.msra.mxu0 %v1407
      %1427 = vmatpush.bf16.msra.mxu0 %v1406
      %1428 = vmatpush.bf16.msra.mxu0 %v1405
      %1429 = vmatmul.bf16.gmra.mxu0 %v706
      %v1430 = vpop.f32.mrf.mxu0
      %v1431 = vadd.f32 0.0, %v1430
      %v1432 = vpop.f32.mrf.mxu0
      %v1433 = vadd.f32 0.0, %v1432
      %1434 = vmatmul.bf16.gmra.mxu0 %v707
      %v1435 = vpop.f32.mrf.mxu0
      %v1436 = vadd.f32 0.0, %v1435
      %v1437 = vpop.f32.mrf.mxu0
      %v1438 = vadd.f32 0.0, %v1437
      %1439 = vmatmul.bf16.gmra.mxu0 %v708
      %v1440 = vpop.f32.mrf.mxu0
      %v1441 = vadd.f32 0.0, %v1440
      %v1442 = vpop.f32.mrf.mxu0
      %v1443 = vadd.f32 0.0, %v1442
      %1444 = vmatmul.bf16.gmra.mxu0 %v709
      %v1445 = vpop.f32.mrf.mxu0
      %v1446 = vadd.f32 0.0, %v1445
      %v1447 = vpop.f32.mrf.mxu0
      %v1448 = vadd.f32 0.0, %v1447
      %1449 = vmatmul.bf16.gmra.mxu0 %v710
      %v1450 = vpop.f32.mrf.mxu0
      %v1451 = vadd.f32 0.0, %v1450
      %v1452 = vpop.f32.mrf.mxu0
      %v1453 = vadd.f32 0.0, %v1452
      %1454 = vmatmul.bf16.gmra.mxu0 %v711
      %v1455 = vpop.f32.mrf.mxu0
      %v1456 = vadd.f32 0.0, %v1455
      %v1457 = vpop.f32.mrf.mxu0
      %v1458 = vadd.f32 0.0, %v1457
      %1459 = vmatmul.bf16.gmra.mxu0 %v712
      %v1460 = vpop.f32.mrf.mxu0
      %v1461 = vadd.f32 0.0, %v1460
      %v1462 = vpop.f32.mrf.mxu0
      %v1463 = vadd.f32 0.0, %v1462
      %1464 = vmatmul.bf16.gmra.mxu0 %v1371
      %v1465 = vpop.f32.mrf.mxu0
      %v1466 = vadd.f32 0.0, %v1465
      %v1467 = vpop.f32.mrf.mxu0
      %v1468 = vadd.f32 0.0, %v1467
      %1469 = vdwg.mxu0
      %v1470 = vadd.f32 %v1312, %v1431
      %v1471 = vadd.f32 %v1313, %v1433
      %v1472 = vadd.f32 %v1314, %v1436
      %v1473 = vadd.f32 %v1315, %v1438
      %v1474 = vadd.f32 %v1316, %v1441
      %v1475 = vadd.f32 %v1317, %v1443
      %v1476 = vadd.f32 %v1318, %v1446
      %v1477 = vadd.f32 %v1319, %v1448
      %v1478 = vadd.f32 %v1320, %v1451
      %v1479 = vadd.f32 %v1321, %v1453
      %v1480 = vadd.f32 %v1322, %v1456
      %v1481 = vadd.f32 %v1323, %v1458
      %v1482 = vadd.f32 %v1324, %v1461
      %v1483 = vadd.f32 %v1325, %v1463
      %v1484 = vadd.f32 %v1326, %v1466
      %v1485 = vadd.f32 %v1327, %v1468
      %v1487 = vrot.slane %v455, 5
      %v1488 = vrot.slane %v1487, 4
      %v1489 = vrot.slane %v456, 5
      %v1490 = vsel %vm973, %v1488, %v1489
      %v1491 = vrot.slane %v1489, 4
      %v1492 = vrot.slane %v457, 5
      %v1493 = vsel %vm973, %v1491, %v1492
      %s1494 = scalar_lea.vmem %s2, 320
      %v1495 = vld [vmem:[%s1494] sm:$0xf]
      %v1496 = vld [vmem:[%s1494 + $0x4] sm:$0xf]
      %v1497 = vld [vmem:[%s1494 + $0x8] sm:$0xf]
      %v1498 = vld [vmem:[%s1494 + $0xc] sm:$0xf]
      %v1499 = vld [vmem:[%s1494 + $0x10] sm:$0xf]
      %v1500 = vld [vmem:[%s1494 + $0x14] sm:$0xf]
      %v1501 = vld [vmem:[%s1494 + $0x18] sm:$0xf]
      %v1502 = vld [vmem:[%s1494 + $0x1c] sm:$0xf]
      %v1503 = vld [vmem:[%s1494 + $0x20] sm:$0xf]
      %v1504 = vld [vmem:[%s1494 + $0x24] sm:$0xf]
      %v1505 = vld [vmem:[%s1494 + $0x28] sm:$0xf]
      %v1506 = vld [vmem:[%s1494 + $0x2c] sm:$0xf]
      %v1507 = vld [vmem:[%s1494 + $0x30] sm:$0xf]
      %v1508 = vld [vmem:[%s1494 + $0x34] sm:$0xf]
      %v1509 = vld [vmem:[%s1494 + $0x38] sm:$0xf]
      %v1510 = vld [vmem:[%s1494 + $0x3c] sm:$0xf]
      %v1511 = vunpack.c.l.b16 %v1490
      %v1512 = vunpack.c.l.b16 %v1493
      %v1513 = vpack.c.b16 %v1512, %v1511
      %v1531 = vunpack.c.l.b16 %v1495
      %v1532 = vunpack.c.l.b16 %v1496
      %v1533 = vunpack.c.l.b16 %v1497
      %v1534 = vunpack.c.l.b16 %v1498
      %v1535 = vunpack.c.l.b16 %v1499
      %v1536 = vunpack.c.l.b16 %v1500
      %v1537 = vunpack.c.l.b16 %v1501
      %v1538 = vunpack.c.l.b16 %v1502
      %v1539 = vunpack.c.l.b16 %v1503
      %v1540 = vunpack.c.l.b16 %v1504
      %v1541 = vunpack.c.l.b16 %v1505
      %v1542 = vunpack.c.l.b16 %v1506
      %v1543 = vunpack.c.l.b16 %v1507
      %v1544 = vunpack.c.l.b16 %v1508
      %v1545 = vunpack.c.l.b16 %v1509
      %v1546 = vunpack.c.l.b16 %v1510
      %v1547 = vpack.c.b16 %v1532, %v1531
      %v1548 = vpack.c.b16 %v1534, %v1533
      %v1549 = vpack.c.b16 %v1536, %v1535
      %v1550 = vpack.c.b16 %v1538, %v1537
      %v1551 = vpack.c.b16 %v1540, %v1539
      %v1552 = vpack.c.b16 %v1542, %v1541
      %v1553 = vpack.c.b16 %v1544, %v1543
      %v1554 = vpack.c.b16 %v1546, %v1545
      %1563 = vmatpush.bf16.msra.mxu0 %v1554
      %1564 = vmatpush.bf16.msra.mxu0 %v1553
      %1565 = vmatpush.bf16.msra.mxu0 %v1552
      %1566 = vmatpush.bf16.msra.mxu0 %v1551
      %1567 = vmatpush.bf16.msra.mxu0 %v1550
      %1568 = vmatpush.bf16.msra.mxu0 %v1549
      %1569 = vmatpush.bf16.msra.mxu0 %v1548
      %1570 = vmatpush.bf16.msra.mxu0 %v1547
      %1571 = vmatmul.bf16.gmra.mxu0 %v1064
      %v1572 = vpop.f32.mrf.mxu0
      %v1573 = vadd.f32 0.0, %v1572
      %v1574 = vpop.f32.mrf.mxu0
      %v1575 = vadd.f32 0.0, %v1574
      %1576 = vmatmul.bf16.gmra.mxu0 %v1065
      %v1577 = vpop.f32.mrf.mxu0
      %v1578 = vadd.f32 0.0, %v1577
      %v1579 = vpop.f32.mrf.mxu0
      %v1580 = vadd.f32 0.0, %v1579
      %1581 = vmatmul.bf16.gmra.mxu0 %v1066
      %v1582 = vpop.f32.mrf.mxu0
      %v1583 = vadd.f32 0.0, %v1582
      %v1584 = vpop.f32.mrf.mxu0
      %v1585 = vadd.f32 0.0, %v1584
      %1586 = vmatmul.bf16.gmra.mxu0 %v1067
      %v1587 = vpop.f32.mrf.mxu0
      %v1588 = vadd.f32 0.0, %v1587
      %v1589 = vpop.f32.mrf.mxu0
      %v1590 = vadd.f32 0.0, %v1589
      %1591 = vmatmul.bf16.gmra.mxu0 %v1068
      %v1592 = vpop.f32.mrf.mxu0
      %v1593 = vadd.f32 0.0, %v1592
      %v1594 = vpop.f32.mrf.mxu0
      %v1595 = vadd.f32 0.0, %v1594
      %1596 = vmatmul.bf16.gmra.mxu0 %v1069
      %v1597 = vpop.f32.mrf.mxu0
      %v1598 = vadd.f32 0.0, %v1597
      %v1599 = vpop.f32.mrf.mxu0
      %v1600 = vadd.f32 0.0, %v1599
      %1601 = vmatmul.bf16.gmra.mxu0 %v1070
      %v1602 = vpop.f32.mrf.mxu0
      %v1603 = vadd.f32 0.0, %v1602
      %v1604 = vpop.f32.mrf.mxu0
      %v1605 = vadd.f32 0.0, %v1604
      %1606 = vmatmul.bf16.gmra.mxu0 %v1513
      %v1607 = vpop.f32.mrf.mxu0
      %v1608 = vadd.f32 0.0, %v1607
      %v1609 = vpop.f32.mrf.mxu0
      %v1610 = vadd.f32 0.0, %v1609
      %1611 = vdwg.mxu0
      %v1612 = vadd.f32 %v1470, %v1573
      %v1613 = vadd.f32 %v1471, %v1575
      %v1614 = vadd.f32 %v1472, %v1578
      %v1615 = vadd.f32 %v1473, %v1580
      %v1616 = vadd.f32 %v1474, %v1583
      %v1617 = vadd.f32 %v1475, %v1585
      %v1618 = vadd.f32 %v1476, %v1588
      %v1619 = vadd.f32 %v1477, %v1590
      %v1620 = vadd.f32 %v1478, %v1593
      %v1621 = vadd.f32 %v1479, %v1595
      %v1622 = vadd.f32 %v1480, %v1598
      %v1623 = vadd.f32 %v1481, %v1600
      %v1624 = vadd.f32 %v1482, %v1603
      %v1625 = vadd.f32 %v1483, %v1605
      %v1626 = vadd.f32 %v1484, %v1608
      %v1627 = vadd.f32 %v1485, %v1610
      %s1628 = scalar_lea.vmem %s2, 384
      %v1629 = vld [vmem:[%s1628] sm:$0xf]
      %v1630 = vld [vmem:[%s1628 + $0x4] sm:$0xf]
      %v1631 = vld [vmem:[%s1628 + $0x8] sm:$0xf]
      %v1632 = vld [vmem:[%s1628 + $0xc] sm:$0xf]
      %v1633 = vld [vmem:[%s1628 + $0x10] sm:$0xf]
      %v1634 = vld [vmem:[%s1628 + $0x14] sm:$0xf]
      %v1635 = vld [vmem:[%s1628 + $0x18] sm:$0xf]
      %v1636 = vld [vmem:[%s1628 + $0x1c] sm:$0xf]
      %v1637 = vld [vmem:[%s1628 + $0x20] sm:$0xf]
      %v1638 = vld [vmem:[%s1628 + $0x24] sm:$0xf]
      %v1639 = vld [vmem:[%s1628 + $0x28] sm:$0xf]
      %v1640 = vld [vmem:[%s1628 + $0x2c] sm:$0xf]
      %v1641 = vld [vmem:[%s1628 + $0x30] sm:$0xf]
      %v1642 = vld [vmem:[%s1628 + $0x34] sm:$0xf]
      %v1643 = vld [vmem:[%s1628 + $0x38] sm:$0xf]
      %v1644 = vld [vmem:[%s1628 + $0x3c] sm:$0xf]
      %v1647 = vunpack.c.l.b16 %v458
      %v1648 = vunpack.c.l.b16 %v459
      %v1649 = vpack.c.b16 %v1648, %v1647
      %v1667 = vunpack.c.l.b16 %v1629
      %v1668 = vunpack.c.l.b16 %v1630
      %v1669 = vunpack.c.l.b16 %v1631
      %v1670 = vunpack.c.l.b16 %v1632
      %v1671 = vunpack.c.l.b16 %v1633
      %v1672 = vunpack.c.l.b16 %v1634
      %v1673 = vunpack.c.l.b16 %v1635
      %v1674 = vunpack.c.l.b16 %v1636
      %v1675 = vunpack.c.l.b16 %v1637
      %v1676 = vunpack.c.l.b16 %v1638
      %v1677 = vunpack.c.l.b16 %v1639
      %v1678 = vunpack.c.l.b16 %v1640
      %v1679 = vunpack.c.l.b16 %v1641
      %v1680 = vunpack.c.l.b16 %v1642
      %v1681 = vunpack.c.l.b16 %v1643
      %v1682 = vunpack.c.l.b16 %v1644
      %v1683 = vpack.c.b16 %v1668, %v1667
      %v1684 = vpack.c.b16 %v1670, %v1669
      %v1685 = vpack.c.b16 %v1672, %v1671
      %v1686 = vpack.c.b16 %v1674, %v1673
      %v1687 = vpack.c.b16 %v1676, %v1675
      %v1688 = vpack.c.b16 %v1678, %v1677
      %v1689 = vpack.c.b16 %v1680, %v1679
      %v1690 = vpack.c.b16 %v1682, %v1681
      %1699 = vmatpush.bf16.msra.mxu0 %v1690
      %1700 = vmatpush.bf16.msra.mxu0 %v1689
      %1701 = vmatpush.bf16.msra.mxu0 %v1688
      %1702 = vmatpush.bf16.msra.mxu0 %v1687
      %1703 = vmatpush.bf16.msra.mxu0 %v1686
      %1704 = vmatpush.bf16.msra.mxu0 %v1685
      %1705 = vmatpush.bf16.msra.mxu0 %v1684
      %1706 = vmatpush.bf16.msra.mxu0 %v1683
      %1707 = vmatmul.bf16.gmra.mxu0 %v852
      %v1708 = vpop.f32.mrf.mxu0
      %v1709 = vadd.f32 0.0, %v1708
      %v1710 = vpop.f32.mrf.mxu0
      %v1711 = vadd.f32 0.0, %v1710
      %1712 = vmatmul.bf16.gmra.mxu0 %v853
      %v1713 = vpop.f32.mrf.mxu0
      %v1714 = vadd.f32 0.0, %v1713
      %v1715 = vpop.f32.mrf.mxu0
      %v1716 = vadd.f32 0.0, %v1715
      %1717 = vmatmul.bf16.gmra.mxu0 %v854
      %v1718 = vpop.f32.mrf.mxu0
      %v1719 = vadd.f32 0.0, %v1718
      %v1720 = vpop.f32.mrf.mxu0
      %v1721 = vadd.f32 0.0, %v1720
      %1722 = vmatmul.bf16.gmra.mxu0 %v855
      %v1723 = vpop.f32.mrf.mxu0
      %v1724 = vadd.f32 0.0, %v1723
      %v1725 = vpop.f32.mrf.mxu0
      %v1726 = vadd.f32 0.0, %v1725
      %1727 = vmatmul.bf16.gmra.mxu0 %v856
      %v1728 = vpop.f32.mrf.mxu0
      %v1729 = vadd.f32 0.0, %v1728
      %v1730 = vpop.f32.mrf.mxu0
      %v1731 = vadd.f32 0.0, %v1730
      %1732 = vmatmul.bf16.gmra.mxu0 %v857
      %v1733 = vpop.f32.mrf.mxu0
      %v1734 = vadd.f32 0.0, %v1733
      %v1735 = vpop.f32.mrf.mxu0
      %v1736 = vadd.f32 0.0, %v1735
      %1737 = vmatmul.bf16.gmra.mxu0 %v1213
      %v1738 = vpop.f32.mrf.mxu0
      %v1739 = vadd.f32 0.0, %v1738
      %v1740 = vpop.f32.mrf.mxu0
      %v1741 = vadd.f32 0.0, %v1740
      %1742 = vmatmul.bf16.gmra.mxu0 %v1649
      %v1743 = vpop.f32.mrf.mxu0
      %v1744 = vadd.f32 0.0, %v1743
      %v1745 = vpop.f32.mrf.mxu0
      %v1746 = vadd.f32 0.0, %v1745
      %1747 = vdwg.mxu0
      %v1748 = vadd.f32 %v1612, %v1709
      %v1749 = vadd.f32 %v1613, %v1711
      %v1750 = vadd.f32 %v1614, %v1714
      %v1751 = vadd.f32 %v1615, %v1716
      %v1752 = vadd.f32 %v1616, %v1719
      %v1753 = vadd.f32 %v1617, %v1721
      %v1754 = vadd.f32 %v1618, %v1724
      %v1755 = vadd.f32 %v1619, %v1726
      %v1756 = vadd.f32 %v1620, %v1729
      %v1757 = vadd.f32 %v1621, %v1731
      %v1758 = vadd.f32 %v1622, %v1734
      %v1759 = vadd.f32 %v1623, %v1736
      %v1760 = vadd.f32 %v1624, %v1739
      %v1761 = vadd.f32 %v1625, %v1741
      %v1762 = vadd.f32 %v1626, %v1744
      %v1763 = vadd.f32 %v1627, %v1746
      %v1765 = vshrl.u32 %v458, 16
      %v1767 = vrot.slane %v1765, 4
      %v1768 = vshll.u32 %v458, 16
      %v1770 = vrot.slane %v1768, 5
      %v1771 = vor.u32 %v1767, %v1770
      %v1772 = vrot.slane %v1771, 4
      %v1774 = vshll.u32 %v459, 16
      %v1776 = vrot.slane %v1774, 5
      %v1777 = vsel %vm479, %v1772, %v1776
      %v1778 = vshrl.u32 %v459, 16
      %v1780 = vrot.slane %v1778, 4
      %v1781 = vor.u32 %v1780, %v1776
      %v1782 = vrot.slane %v1781, 4
      %v1784 = vshll.u32 %v460, 16
      %v1786 = vrot.slane %v1784, 5
      %v1787 = vsel %vm479, %v1782, %v1786
      %s1788 = scalar_lea.vmem %s2, 448
      %v1789 = vld [vmem:[%s1788] sm:$0xf]
      %v1790 = vld [vmem:[%s1788 + $0x4] sm:$0xf]
      %v1791 = vld [vmem:[%s1788 + $0x8] sm:$0xf]
      %v1792 = vld [vmem:[%s1788 + $0xc] sm:$0xf]
      %v1793 = vld [vmem:[%s1788 + $0x10] sm:$0xf]
      %v1794 = vld [vmem:[%s1788 + $0x14] sm:$0xf]
      %v1795 = vld [vmem:[%s1788 + $0x18] sm:$0xf]
      %v1796 = vld [vmem:[%s1788 + $0x1c] sm:$0xf]
      %v1797 = vld [vmem:[%s1788 + $0x20] sm:$0xf]
      %v1798 = vld [vmem:[%s1788 + $0x24] sm:$0xf]
      %v1799 = vld [vmem:[%s1788 + $0x28] sm:$0xf]
      %v1800 = vld [vmem:[%s1788 + $0x2c] sm:$0xf]
      %v1801 = vld [vmem:[%s1788 + $0x30] sm:$0xf]
      %v1802 = vld [vmem:[%s1788 + $0x34] sm:$0xf]
      %v1803 = vld [vmem:[%s1788 + $0x38] sm:$0xf]
      %v1804 = vld [vmem:[%s1788 + $0x3c] sm:$0xf]
      %v1805 = vunpack.c.l.b16 %v1777
      %v1806 = vunpack.c.l.b16 %v1787
      %v1807 = vpack.c.b16 %v1806, %v1805
      %v1825 = vunpack.c.l.b16 %v1789
      %v1826 = vunpack.c.l.b16 %v1790
      %v1827 = vunpack.c.l.b16 %v1791
      %v1828 = vunpack.c.l.b16 %v1792
      %v1829 = vunpack.c.l.b16 %v1793
      %v1830 = vunpack.c.l.b16 %v1794
      %v1831 = vunpack.c.l.b16 %v1795
      %v1832 = vunpack.c.l.b16 %v1796
      %v1833 = vunpack.c.l.b16 %v1797
      %v1834 = vunpack.c.l.b16 %v1798
      %v1835 = vunpack.c.l.b16 %v1799
      %v1836 = vunpack.c.l.b16 %v1800
      %v1837 = vunpack.c.l.b16 %v1801
      %v1838 = vunpack.c.l.b16 %v1802
      %v1839 = vunpack.c.l.b16 %v1803
      %v1840 = vunpack.c.l.b16 %v1804
      %v1841 = vpack.c.b16 %v1826, %v1825
      %v1842 = vpack.c.b16 %v1828, %v1827
      %v1843 = vpack.c.b16 %v1830, %v1829
      %v1844 = vpack.c.b16 %v1832, %v1831
      %v1845 = vpack.c.b16 %v1834, %v1833
      %v1846 = vpack.c.b16 %v1836, %v1835
      %v1847 = vpack.c.b16 %v1838, %v1837
      %v1848 = vpack.c.b16 %v1840, %v1839
      %1857 = vmatpush.bf16.msra.mxu0 %v1848
      %1858 = vmatpush.bf16.msra.mxu0 %v1847
      %1859 = vmatpush.bf16.msra.mxu0 %v1846
      %1860 = vmatpush.bf16.msra.mxu0 %v1845
      %1861 = vmatpush.bf16.msra.mxu0 %v1844
      %1862 = vmatpush.bf16.msra.mxu0 %v1843
      %1863 = vmatpush.bf16.msra.mxu0 %v1842
      %1864 = vmatpush.bf16.msra.mxu0 %v1841
      %1865 = vmatmul.bf16.gmra.mxu0 %v707
      %v1866 = vpop.f32.mrf.mxu0
      %v1867 = vadd.f32 0.0, %v1866
      %v1868 = vpop.f32.mrf.mxu0
      %v1869 = vadd.f32 0.0, %v1868
      %1870 = vmatmul.bf16.gmra.mxu0 %v708
      %v1871 = vpop.f32.mrf.mxu0
      %v1872 = vadd.f32 0.0, %v1871
      %v1873 = vpop.f32.mrf.mxu0
      %v1874 = vadd.f32 0.0, %v1873
      %1875 = vmatmul.bf16.gmra.mxu0 %v709
      %v1876 = vpop.f32.mrf.mxu0
      %v1877 = vadd.f32 0.0, %v1876
      %v1878 = vpop.f32.mrf.mxu0
      %v1879 = vadd.f32 0.0, %v1878
      %1880 = vmatmul.bf16.gmra.mxu0 %v710
      %v1881 = vpop.f32.mrf.mxu0
      %v1882 = vadd.f32 0.0, %v1881
      %v1883 = vpop.f32.mrf.mxu0
      %v1884 = vadd.f32 0.0, %v1883
      %1885 = vmatmul.bf16.gmra.mxu0 %v711
      %v1886 = vpop.f32.mrf.mxu0
      %v1887 = vadd.f32 0.0, %v1886
      %v1888 = vpop.f32.mrf.mxu0
      %v1889 = vadd.f32 0.0, %v1888
      %1890 = vmatmul.bf16.gmra.mxu0 %v712
      %v1891 = vpop.f32.mrf.mxu0
      %v1892 = vadd.f32 0.0, %v1891
      %v1893 = vpop.f32.mrf.mxu0
      %v1894 = vadd.f32 0.0, %v1893
      %1895 = vmatmul.bf16.gmra.mxu0 %v1371
      %v1896 = vpop.f32.mrf.mxu0
      %v1897 = vadd.f32 0.0, %v1896
      %v1898 = vpop.f32.mrf.mxu0
      %v1899 = vadd.f32 0.0, %v1898
      %1900 = vmatmul.bf16.gmra.mxu0 %v1807
      %v1901 = vpop.f32.mrf.mxu0
      %v1902 = vadd.f32 0.0, %v1901
      %v1903 = vpop.f32.mrf.mxu0
      %v1904 = vadd.f32 0.0, %v1903
      %1905 = vdwg.mxu0
      %v1906 = vadd.f32 %v1748, %v1867
      %v1907 = vadd.f32 %v1749, %v1869
      %v1908 = vadd.f32 %v1750, %v1872
      %v1909 = vadd.f32 %v1751, %v1874
      %v1910 = vadd.f32 %v1752, %v1877
      %v1911 = vadd.f32 %v1753, %v1879
      %v1912 = vadd.f32 %v1754, %v1882
      %v1913 = vadd.f32 %v1755, %v1884
      %v1914 = vadd.f32 %v1756, %v1887
      %v1915 = vadd.f32 %v1757, %v1889
      %v1916 = vadd.f32 %v1758, %v1892
      %v1917 = vadd.f32 %v1759, %v1894
      %v1918 = vadd.f32 %v1760, %v1897
      %v1919 = vadd.f32 %v1761, %v1899
      %v1920 = vadd.f32 %v1762, %v1902
      %v1921 = vadd.f32 %v1763, %v1904
      %v1923 = vrot.slane %v458, 5
      %v1924 = vrot.slane %v1923, 4
      %v1925 = vrot.slane %v459, 5
      %v1926 = vsel %vm973, %v1924, %v1925
      %v1927 = vrot.slane %v1925, 4
      %v1928 = vrot.slane %v460, 5
      %v1929 = vsel %vm973, %v1927, %v1928
      %s1930 = scalar_lea.vmem %s2, 512
      %v1931 = vld [vmem:[%s1930] sm:$0xf]
      %v1932 = vld [vmem:[%s1930 + $0x4] sm:$0xf]
      %v1933 = vld [vmem:[%s1930 + $0x8] sm:$0xf]
      %v1934 = vld [vmem:[%s1930 + $0xc] sm:$0xf]
      %v1935 = vld [vmem:[%s1930 + $0x10] sm:$0xf]
      %v1936 = vld [vmem:[%s1930 + $0x14] sm:$0xf]
      %v1937 = vld [vmem:[%s1930 + $0x18] sm:$0xf]
      %v1938 = vld [vmem:[%s1930 + $0x1c] sm:$0xf]
      %v1939 = vld [vmem:[%s1930 + $0x20] sm:$0xf]
      %v1940 = vld [vmem:[%s1930 + $0x24] sm:$0xf]
      %v1941 = vld [vmem:[%s1930 + $0x28] sm:$0xf]
      %v1942 = vld [vmem:[%s1930 + $0x2c] sm:$0xf]
      %v1943 = vld [vmem:[%s1930 + $0x30] sm:$0xf]
      %v1944 = vld [vmem:[%s1930 + $0x34] sm:$0xf]
      %v1945 = vld [vmem:[%s1930 + $0x38] sm:$0xf]
      %v1946 = vld [vmem:[%s1930 + $0x3c] sm:$0xf]
      %v1947 = vunpack.c.l.b16 %v1926
      %v1948 = vunpack.c.l.b16 %v1929
      %v1949 = vpack.c.b16 %v1948, %v1947
      %v1967 = vunpack.c.l.b16 %v1931
      %v1968 = vunpack.c.l.b16 %v1932
      %v1969 = vunpack.c.l.b16 %v1933
      %v1970 = vunpack.c.l.b16 %v1934
      %v1971 = vunpack.c.l.b16 %v1935
      %v1972 = vunpack.c.l.b16 %v1936
      %v1973 = vunpack.c.l.b16 %v1937
      %v1974 = vunpack.c.l.b16 %v1938
      %v1975 = vunpack.c.l.b16 %v1939
      %v1976 = vunpack.c.l.b16 %v1940
      %v1977 = vunpack.c.l.b16 %v1941
      %v1978 = vunpack.c.l.b16 %v1942
      %v1979 = vunpack.c.l.b16 %v1943
      %v1980 = vunpack.c.l.b16 %v1944
      %v1981 = vunpack.c.l.b16 %v1945
      %v1982 = vunpack.c.l.b16 %v1946
      %v1983 = vpack.c.b16 %v1968, %v1967
      %v1984 = vpack.c.b16 %v1970, %v1969
      %v1985 = vpack.c.b16 %v1972, %v1971
      %v1986 = vpack.c.b16 %v1974, %v1973
      %v1987 = vpack.c.b16 %v1976, %v1975
      %v1988 = vpack.c.b16 %v1978, %v1977
      %v1989 = vpack.c.b16 %v1980, %v1979
      %v1990 = vpack.c.b16 %v1982, %v1981
      %1999 = vmatpush.bf16.msra.mxu0 %v1990
      %2000 = vmatpush.bf16.msra.mxu0 %v1989
      %2001 = vmatpush.bf16.msra.mxu0 %v1988
      %2002 = vmatpush.bf16.msra.mxu0 %v1987
      %2003 = vmatpush.bf16.msra.mxu0 %v1986
      %2004 = vmatpush.bf16.msra.mxu0 %v1985
      %2005 = vmatpush.bf16.msra.mxu0 %v1984
      %2006 = vmatpush.bf16.msra.mxu0 %v1983
      %2007 = vmatmul.bf16.gmra.mxu0 %v1065
      %v2008 = vpop.f32.mrf.mxu0
      %v2009 = vadd.f32 0.0, %v2008
      %v2010 = vpop.f32.mrf.mxu0
      %v2011 = vadd.f32 0.0, %v2010
      %2012 = vmatmul.bf16.gmra.mxu0 %v1066
      %v2013 = vpop.f32.mrf.mxu0
      %v2014 = vadd.f32 0.0, %v2013
      %v2015 = vpop.f32.mrf.mxu0
      %v2016 = vadd.f32 0.0, %v2015
      %2017 = vmatmul.bf16.gmra.mxu0 %v1067
      %v2018 = vpop.f32.mrf.mxu0
      %v2019 = vadd.f32 0.0, %v2018
      %v2020 = vpop.f32.mrf.mxu0
      %v2021 = vadd.f32 0.0, %v2020
      %2022 = vmatmul.bf16.gmra.mxu0 %v1068
      %v2023 = vpop.f32.mrf.mxu0
      %v2024 = vadd.f32 0.0, %v2023
      %v2025 = vpop.f32.mrf.mxu0
      %v2026 = vadd.f32 0.0, %v2025
      %2027 = vmatmul.bf16.gmra.mxu0 %v1069
      %v2028 = vpop.f32.mrf.mxu0
      %v2029 = vadd.f32 0.0, %v2028
      %v2030 = vpop.f32.mrf.mxu0
      %v2031 = vadd.f32 0.0, %v2030
      %2032 = vmatmul.bf16.gmra.mxu0 %v1070
      %v2033 = vpop.f32.mrf.mxu0
      %v2034 = vadd.f32 0.0, %v2033
      %v2035 = vpop.f32.mrf.mxu0
      %v2036 = vadd.f32 0.0, %v2035
      %2037 = vmatmul.bf16.gmra.mxu0 %v1513
      %v2038 = vpop.f32.mrf.mxu0
      %v2039 = vadd.f32 0.0, %v2038
      %v2040 = vpop.f32.mrf.mxu0
      %v2041 = vadd.f32 0.0, %v2040
      %2042 = vmatmul.bf16.gmra.mxu0 %v1949
      %v2043 = vpop.f32.mrf.mxu0
      %v2044 = vadd.f32 0.0, %v2043
      %v2045 = vpop.f32.mrf.mxu0
      %v2046 = vadd.f32 0.0, %v2045
      %2047 = vdwg.mxu0
      %v2048 = vadd.f32 %v1906, %v2009
      %v2049 = vadd.f32 %v1907, %v2011
      %v2050 = vadd.f32 %v1908, %v2014
      %v2051 = vadd.f32 %v1909, %v2016
      %v2052 = vadd.f32 %v1910, %v2019
      %v2053 = vadd.f32 %v1911, %v2021
      %v2054 = vadd.f32 %v1912, %v2024
      %v2055 = vadd.f32 %v1913, %v2026
      %v2056 = vadd.f32 %v1914, %v2029
      %v2057 = vadd.f32 %v1915, %v2031
      %v2058 = vadd.f32 %v1916, %v2034
      %v2059 = vadd.f32 %v1917, %v2036
      %v2060 = vadd.f32 %v1918, %v2039
      %v2061 = vadd.f32 %v1919, %v2041
      %v2062 = vadd.f32 %v1920, %v2044
      %v2063 = vadd.f32 %v1921, %v2046
      %v2064 = vld [vmem:[%s3] sm:$0x1]
      %v2066 = vperm.slane %v2064, 0
      %v2068 = vadd.f32 %v2048, %v2066
      %v2069 = vadd.f32 %v2049, %v2066
      %v2070 = vadd.f32 %v2050, %v2066
      %v2071 = vadd.f32 %v2051, %v2066
      %v2072 = vadd.f32 %v2052, %v2066
      %v2073 = vadd.f32 %v2053, %v2066
      %v2074 = vadd.f32 %v2054, %v2066
      %v2075 = vadd.f32 %v2055, %v2066
      %v2076 = vadd.f32 %v2056, %v2066
      %v2077 = vadd.f32 %v2057, %v2066
      %v2078 = vadd.f32 %v2058, %v2066
      %v2079 = vadd.f32 %v2059, %v2066
      %v2080 = vadd.f32 %v2060, %v2066
      %v2081 = vadd.f32 %v2061, %v2066
      %v2082 = vadd.f32 %v2062, %v2066
      %v2083 = vadd.f32 %v2063, %v2066
      %2084 = vst [vmem:[%s284] sm:$0xff] %v2068
      %2085 = vst [vmem:[%s284 + $0x8] sm:$0xff] %v2069
      %2086 = vst [vmem:[%s284 + $0x10] sm:$0xff] %v2070
      %2087 = vst [vmem:[%s284 + $0x18] sm:$0xff] %v2071
      %2088 = vst [vmem:[%s284 + $0x20] sm:$0xff] %v2072
      %2089 = vst [vmem:[%s284 + $0x28] sm:$0xff] %v2073
      %2090 = vst [vmem:[%s284 + $0x30] sm:$0xff] %v2074
      %2091 = vst [vmem:[%s284 + $0x38] sm:$0xff] %v2075
      %2092 = vst [vmem:[%s284 + $0x40] sm:$0xff] %v2076
      %2093 = vst [vmem:[%s284 + $0x48] sm:$0xff] %v2077
      %2094 = vst [vmem:[%s284 + $0x50] sm:$0xff] %v2078
      %2095 = vst [vmem:[%s284 + $0x58] sm:$0xff] %v2079
      %2096 = vst [vmem:[%s284 + $0x60] sm:$0xff] %v2080
      %2097 = vst [vmem:[%s284 + $0x68] sm:$0xff] %v2081
      %2098 = vst [vmem:[%s284 + $0x70] sm:$0xff] %v2082
      %2099 = vst [vmem:[%s284 + $0x78] sm:$0xff] %v2083
      %p2100 = scmp.eq.s32.totalorder %s22, 0
      // Predicated region
      $region37: #{residual_block_forward.4} parent=35 // pred_check
        %p2101 = pneg %p2100
      $region38: #{residual_block_forward.4} parent=35 // pred_check_branch
        %2103 = sbr.rel (%p2101) target = $region40
      $region39: #{residual_block_forward.4} parent=35 // pred_region
        %2104 = vst [vmem:[%s289] sm:$0x3] 0.0
      $region40: #{residual_block_forward.4} parent=35 // pred_fallthru
        _
      %v2105 = vadd.f32 %v2068, %v2069
      %v2106 = vadd.f32 %v2105, %v2070
      %v2107 = vadd.f32 %v2106, %v2071
      %v2108 = vadd.f32 %v2107, %v2072
      %v2109 = vadd.f32 %v2108, %v2073
      %v2110 = vadd.f32 %v2109, %v2074
      %v2111 = vadd.f32 %v2110, %v2075
      %v2112 = vadd.f32 %v2111, %v2076
      %v2113 = vadd.f32 %v2112, %v2077
      %v2114 = vadd.f32 %v2113, %v2078
      %v2115 = vadd.f32 %v2114, %v2079
      %v2116 = vadd.f32 %v2115, %v2080
      %v2117 = vadd.f32 %v2116, %v2081
      %v2118 = vadd.f32 %v2117, %v2082
      %v2119 = vadd.f32 %v2118, %v2083
      %v2120 = vrot.slane %v2119, 4
      %v2121 = vadd.f32 %v2119, %v2120
      %v2122 = vrot.slane %v2121, 2
      %v2123 = vadd.f32 %v2121, %v2122
      %v2124 = vrot.slane %v2123, 1
      %v2125 = vadd.f32 %v2123, %v2124
      %v2126 = vmul.f32 %v2068, %v2068
      %v2127 = vmul.f32 %v2069, %v2069
      %v2128 = vmul.f32 %v2070, %v2070
      %v2129 = vmul.f32 %v2071, %v2071
      %v2130 = vmul.f32 %v2072, %v2072
      %v2131 = vmul.f32 %v2073, %v2073
      %v2132 = vmul.f32 %v2074, %v2074
      %v2133 = vmul.f32 %v2075, %v2075
      %v2134 = vmul.f32 %v2076, %v2076
      %v2135 = vmul.f32 %v2077, %v2077
      %v2136 = vmul.f32 %v2078, %v2078
      %v2137 = vmul.f32 %v2079, %v2079
      %v2138 = vmul.f32 %v2080, %v2080
      %v2139 = vmul.f32 %v2081, %v2081
      %v2140 = vmul.f32 %v2082, %v2082
      %v2141 = vmul.f32 %v2083, %v2083
      %v2142 = vadd.f32 %v2126, %v2127
      %v2143 = vadd.f32 %v2142, %v2128
      %v2144 = vadd.f32 %v2143, %v2129
      %v2145 = vadd.f32 %v2144, %v2130
      %v2146 = vadd.f32 %v2145, %v2131
      %v2147 = vadd.f32 %v2146, %v2132
      %v2148 = vadd.f32 %v2147, %v2133
      %v2149 = vadd.f32 %v2148, %v2134
      %v2150 = vadd.f32 %v2149, %v2135
      %v2151 = vadd.f32 %v2150, %v2136
      %v2152 = vadd.f32 %v2151, %v2137
      %v2153 = vadd.f32 %v2152, %v2138
      %v2154 = vadd.f32 %v2153, %v2139
      %v2155 = vadd.f32 %v2154, %v2140
      %v2156 = vadd.f32 %v2155, %v2141
      %v2157 = vrot.slane %v2156, 4
      %v2158 = vadd.f32 %v2156, %v2157
      %v2159 = vrot.slane %v2158, 2
      %v2160 = vadd.f32 %v2158, %v2159
      %v2161 = vrot.slane %v2160, 1
      %v2162 = vadd.f32 %v2160, %v2161
      %v2163 = vld [vmem:[%s289] sm:$0x3]
      %vm2164 = vcmask 1040384
      %v2165 = vsel %vm2164, %v2125, %v2162
      %v2166 = vadd.f32 %v2163, %v2165
      %2167 = vst [vmem:[%s289] sm:$0x3] %v2166
      %s2168 = smul.u32 16, %s22
      %p2169 = scmp.lt.s32.totalorder %s21, 1
      %s2170 = scalar_select %p2169, %s21, 1
      %p2171 = scmp.lt.s32.totalorder %s2168, 31
      %s2172 = scalar_select %p2171, %s2168, 31
      %s2173 = smul.addr %s2170, 32
      %s2174 = sadd.s32 %s2172, %s2173
      %s2175 = smul.addr %s2174, 8
      %s2176 = scalar_lea.vmem %s4, %s2175
      %p2177 = scmp.lt.s32.totalorder %s21, 1
      %s2178 = scalar_select %p2177, %s21, 1
      %s2179 = smul.addr %s2178, 2
      %s2180 = scalar_lea.vmem %s5, %s2179
      // Predicated region
      $region41: #{residual_block_forward.4} parent=35 // pred_check
        %p2181 = pneg %p145
      $region42: #{residual_block_forward.4} parent=35 // pred_check_branch
        %2183 = sbr.rel (%p2181) target = $region44
      $region43: #{residual_block_forward.4} parent=35 // pred_region
        %s2184 = smul.u32 16, %s22
      $region44: #{residual_block_forward.4} parent=35 // pred_fallthru
        _
      // Predicated region
      $region45: #{residual_block_forward.4} parent=35 // pred_check
        %p2185 = pneg %p171
      $region46: #{residual_block_forward.4} parent=35 // pred_check_branch
        %2187 = sbr.rel (%p2185) target = $region48
      $region47: #{residual_block_forward.4} parent=35 // pred_region
        _
      $region48: #{residual_block_forward.4} parent=35 // pred_fallthru
        _
    $region36: #{residual_block_forward.4} parent=5 // pred_fallthru
      _
    %p2188 = scmp.le.s32.totalorder 2, %s12
    // Predicated region
    $region49: #{residual_block_forward.4} parent=5 // pred_check
      %p2189 = pneg %p2188
    $region50: #{residual_block_forward.4} parent=5 // pred_check_branch
      %2191 = sbr.rel (%p2189) target = $region52
    $region51: #{residual_block_forward.4} parent=5 // pred_region
      %s2192 = ssub.s32 %s12, 2
      // Predicated region
      $region53: #{residual_block_forward.4} parent=51 // pred_check
        %p2193 = pneg %p151
      $region54: #{residual_block_forward.4} parent=51 // pred_check_branch
        %2195 = sbr.rel (%p2193) target = $region56
      $region55: #{residual_block_forward.4} parent=51 // pred_region
        %s2196 = smul.u32 16, %s24
        %p2197 = scmp.lt.s32.totalorder %s23, 1
        %s2198 = scalar_select %p2197, %s23, 1
        %p2199 = scmp.lt.s32.totalorder %s2196, 31
        %s2200 = scalar_select %p2199, %s2196, 31
        %s2201 = smul.addr %s2198, 32
        %s2202 = sadd.s32 %s2200, %s2201
        %s2203 = smul.addr %s2202, 8
        %s2204 = scalar_lea.vmem %s4, %s2203
      $region56: #{residual_block_forward.4} parent=51 // pred_fallthru
        _
      // Predicated region
      $region57: #{residual_block_forward.4} parent=51 // pred_check
        %p2205 = pneg %p177
      $region58: #{residual_block_forward.4} parent=51 // pred_check_branch
        %2207 = sbr.rel (%p2205) target = $region60
      $region59: #{residual_block_forward.4} parent=51 // pred_region
        %p2208 = scmp.lt.s32.totalorder %s23, 1
        %s2209 = scalar_select %p2208, %s23, 1
        %s2210 = smul.addr %s2209, 2
        %s2211 = scalar_lea.vmem %s5, %s2210
      $region60: #{residual_block_forward.4} parent=51 // pred_fallthru
        _
    $region52: #{residual_block_forward.4} parent=5 // pred_fallthru
      _
  $region6: #{residual_block_forward.4} parent=0 // loop_footer
    %s16 = sadd.s32 1, %s12
  $region7: #{residual_block_forward.4} parent=0 // loop_footer_branch
    %11 = sbr.rel target = $region3
  $region8: #{residual_block_forward.4} parent=0 // loop_exit
    _

</llo_original>
